<compile_context>
chip_gen: v5e
topology: v5e:2x2
jax: 0.10.0
libtpu: 0.0.40
codegen_flags: <defaults>
</compile_context>

<pallas_src>
import numpy as np
import jax
import jax.numpy as jnp
from jax.experimental import pallas as pl
from jax.experimental.pallas import tpu as pltpu

HIGH = jax.lax.Precision.HIGHEST
_LANES = 128


# ------------------------------------------------------------------
# scipy.ndimage reimplementation (gaussian_filter / laplace, mode='reflect')
# (host-side numpy; only used to build the fixed EEM conv weights)
# ------------------------------------------------------------------
def _reflect_idx(idx, n):
    idx = np.asarray(idx)
    period = 2 * n
    m = np.mod(idx, period)
    return np.where(m >= n, period - 1 - m, m)


def _correlate1d_reflect(a, w, axis):
    n = a.shape[axis]
    r = len(w) // 2
    a = np.moveaxis(a, axis, 0)
    out = np.zeros(a.shape, dtype=np.float64)
    base = np.arange(n)
    for k, wk in enumerate(w):
        out += wk * a[_reflect_idx(base + k - r, n)]
    return np.moveaxis(out, 0, axis)


def _gaussian_filter_nd(a, sigma, truncate=4.0):
    radius = int(truncate * float(sigma) + 0.5)
    x = np.arange(-radius, radius + 1)
    w = np.exp(-0.5 * (x / float(sigma)) ** 2)
    w = w / w.sum()
    out = a.astype(np.float64)
    for ax in range(a.ndim):
        out = _correlate1d_reflect(out, w, ax)
    return out


def _laplace_nd(a):
    w = np.array([1.0, -2.0, 1.0])
    out = np.zeros(a.shape, dtype=np.float64)
    for ax in range(a.ndim):
        out += _correlate1d_reflect(a.astype(np.float64), w, ax)
    return out


def gaussiankernel_np(ch_out, ch_in, ksize, sigma, value):
    n = np.zeros((ch_out, ch_in, ksize, ksize))
    n[:, :, (ksize - 1) // 2, (ksize - 1) // 2] = value
    return _gaussian_filter_nd(n, sigma).astype(np.float32)


def laplaceiankernel_np(ch_out, ch_in, ksize, value):
    n = np.zeros((ch_out, ch_in, ksize, ksize))
    n[:, :, (ksize - 1) // 2, (ksize - 1) // 2] = value
    return _laplace_nd(n).astype(np.float32)


# ------------------------------------------------------------------
# Weight preprocessing (numpy, at init).
# ------------------------------------------------------------------
def _grouped_to_dense(w_oihw, groups):
    w_oihw = np.asarray(w_oihw, np.float32)
    co, cig, kh, kw = w_oihw.shape
    cog, ci = co // groups, cig * groups
    d = np.zeros((co, ci, kh, kw), np.float32)
    for g in range(groups):
        d[g * cog:(g + 1) * cog, g * cig:(g + 1) * cig] = \
            w_oihw[g * cog:(g + 1) * cog]
    return d


def _dense_1x1(w_oihw, groups):
    """Grouped (Co, Ci/g, 1, 1) -> dense (Co, Ci)."""
    return _grouped_to_dense(w_oihw, groups)[:, :, 0, 0]


def _dense_3x3(w_oihw, groups):
    """Grouped (Co, Ci/g, 3, 3) -> tap-column-major dense (Co, 9*Ci).

    Column block [t*Ci:(t+1)*Ci] holds W[:, :, t//3, t%3] so a 3x3 conv is a
    single matmul against the stacked (9*Ci, S) tap tile."""
    d = _grouped_to_dense(w_oihw, groups)              # (Co, Ci, 3, 3)
    co, ci = d.shape[:2]
    return np.transpose(d, (0, 2, 3, 1)).reshape(co, 9 * ci)


def _group_avg(c, groups):
    """(C, C) matrix that replaces per-channel means by their group mean."""
    cg = c // groups
    m = np.zeros((c, c), np.float32)
    for g in range(groups):
        m[g * cg:(g + 1) * cg, g * cg:(g + 1) * cg] = 1.0 / cg
    return m


def pack_params(params):
    """Pack every parameter into one (R, 128) f32 blob.

    Each entry gets an 8-aligned row offset and occupies columns [0:cols].
    Returns (blob, layout) where layout[name] = (row_offset, (rows, cols))."""
    layout, items, rows = {}, [], 0
    for name, arr in params.items():
        a = np.asarray(arr, np.float32)
        if a.ndim == 1:
            a = a[:, None]
        assert a.ndim == 2 and a.shape[1] <= _LANES, (name, a.shape)
        layout[name] = (rows, a.shape)
        items.append((rows, a))
        rows += ((a.shape[0] + 7) // 8) * 8
    total = ((rows + 7) // 8) * 8
    blob = np.zeros((total, _LANES), np.float32)
    for r0, a in items:
        blob[r0:r0 + a.shape[0], :a.shape[1]] = a
    return jnp.asarray(blob), layout


# ------------------------------------------------------------------
# Fused PFM forward: one pallas_call, grid over image groups.
# ------------------------------------------------------------------
def _pick_images_per_step(n):
    # Keep >= 2 parallel grid steps (both v7x TCs fed); amortize per-step
    # overhead for larger batches.  Blocks stay tiny (<1 MiB) for any choice,
    # so the v5e 16 MiB scoped / v7x 64 MiB physical VMEM limits are safe.
    for b in (8, 4, 2):
        if n % b == 0 and n // b >= 2:
            return b
    return 1


def pfm_forward(x_nchw, blob, layout, images_per_step=None):
    N, Cin, H, W = x_nchw.shape
    S = H * W
    B = images_per_step if images_per_step is not None else _pick_images_per_step(N)
    assert N % B == 0
    G = N // B
    BS = B * S
    cdt = jnp.bfloat16            # MXU operand dtype (accumulation stays f32)

    x3 = x_nchw.reshape(N, Cin, S).astype(jnp.float32)
    if B == 1:
        xg = x3                                               # (G, Cin, S)
    else:
        # lane layout: images side by side -> (G, Cin, B*S)
        xg = x3.reshape(G, B, Cin, S).transpose(0, 2, 1, 3).reshape(G, Cin, BS)

    # ---- host-side hoisted constants ----
    hh = np.arange(S) // W
    ww = np.arange(S) % W
    m9 = np.zeros((9, S), np.float32)
    for t in range(9):
        dy, dx = t // 3 - 1, t % 3 - 1
        m9[t] = ((hh + dy >= 0) & (hh + dy < H) &
                 (ww + dx >= 0) & (ww + dx < W)).astype(np.float32)
    m9b = np.tile(m9, (1, B))                                  # (9, BS)
    mask9 = jnp.asarray(m9b)                                   # 1 valid / 0 pad
    neg9 = jnp.asarray((m9b - 1.0) * 1e30)                     # 0 / -1e30
    if B > 1:
        segm = jnp.asarray(np.kron(np.eye(B, dtype=np.float32),
                                   np.full((S, 1), 1.0 / S, np.float32)))   # (BS, B)
        segb = jnp.asarray(np.kron(np.eye(B, dtype=np.float32),
                                   np.ones((1, S), np.float32)))            # (B, BS)

    def kernel(x_ref, blob_ref, mask_ref, neg_ref, *rest):
        if B > 1:
            segm_ref, segb_ref, o_ref = rest
        else:
            (o_ref,) = rest

        x_im = x_ref[0]                                        # (Cin, BS) f32

        # -- parameters: sliced from the packed blob AT EACH USE SITE --
        def Wf(name):                                          # f32 view
            r0, (r, c) = layout[name]
            return blob_ref[r0:r0 + r, 0:c]

        def Wm(name):                                          # MXU operand
            return Wf(name).astype(cdt)

        # -- per-image statistics (mean over each image's S positions) --
        if B > 1:
            seg_m = segm_ref[...]                              # (BS, B), 1/S
            seg_b = segb_ref[...]                              # (B, BS), 0/1

            def seg_mean(v):                                   # (C,BS)->(C,B)
                return jnp.dot(v, seg_m, preferred_element_type=jnp.float32,
                               precision=HIGH)

            def seg_bcast(m):                                  # (C,B)->(C,BS)
                return jnp.dot(m, seg_b, preferred_element_type=jnp.float32,
                               precision=HIGH)
        else:
            def seg_mean(v):
                return jnp.mean(v, axis=1, keepdims=True)      # (C,1)

            def seg_bcast(m):
                return m                                       # broadcast later

        # -- spatial ops --
        def shift(v, d):
            # out[:, s] = v[:, (s + d) mod BS]; wrap positions are masked.
            return v if d == 0 else pltpu.roll(v, (-d) % BS, axis=1)

        def make_taps(v):
            """(C, BS) -> (9*C, BS) stacked zero-padded 3x3 taps (bf16)."""
            parts = []
            for t in range(9):
                dy, dx = t // 3 - 1, t % 3 - 1
                vs = shift(v, dy * W + dx)
                if dy or dx:
                    vs = vs * mask_ref[t:t + 1, :]             # zero padding
                parts.append(vs)
            return jnp.concatenate(parts, axis=0).astype(cdt)

        def conv3x3(taps, wname):                              # one matmul
            return jnp.dot(Wm(wname), taps, preferred_element_type=jnp.float32)

        def conv1x1(v, wname):
            return jnp.dot(Wm(wname), v.astype(cdt),
                           preferred_element_type=jnp.float32)

        def maxpool3x3(v):
            out = v                                            # center tap
            for t in range(9):
                if t == 4:
                    continue
                dy, dx = t // 3 - 1, t % 3 - 1
                vs = shift(v, dy * W + dx) + neg_ref[t:t + 1, :]   # -inf pad
                out = jnp.maximum(out, vs)
            return out

        def prelu(v, aname):
            a = Wf(aname)                                      # (C, 1)
            return jnp.where(v >= 0, v, a * v)

        def group_norm(v, gname, gamma_n, beta_n, eps=1e-5):
            gavg = Wf(gname)                                   # (C, C)
            m = jnp.dot(gavg, seg_mean(v),
                        preferred_element_type=jnp.float32, precision=HIGH)
            vc = v - seg_bcast(m)                              # two-pass form
            var = jnp.dot(gavg, seg_mean(vc * vc),
                          preferred_element_type=jnp.float32, precision=HIGH)
            return (vc * seg_bcast(jax.lax.rsqrt(var + eps))
                    * Wf(gamma_n) + Wf(beta_n))

        def instance_norm(v, eps=1e-5):
            vc = v - seg_bcast(seg_mean(v))
            var = seg_bcast(seg_mean(vc * vc))
            return vc * jax.lax.rsqrt(var + eps)

        def sem(v, w1n, w2n):                                  # squeeze-excite
            m = seg_mean(v)
            h = jnp.maximum(jnp.dot(Wf(w1n), m,
                                    preferred_element_type=jnp.float32,
                                    precision=HIGH), 0.0)
            g = jax.nn.sigmoid(jnp.dot(Wf(w2n), h,
                                       preferred_element_type=jnp.float32,
                                       precision=HIGH))
            return v * seg_bcast(g)

        # ------------------- PFM forward -------------------
        # reducer
        x1 = group_norm(prelu(conv1x1(x_im, "red_w"), "red_a"),
                        "gavg8", "red_g", "red_b")
        x1_taps = make_taps(x1)                    # shared by c1 and gaussian
        # c1
        c1 = group_norm(jnp.maximum(conv3x3(x1_taps, "c1_w"), 0.0),
                        "gavg8", "c1_g", "c1_b")
        # c3
        c3 = group_norm(jnp.maximum(conv1x1(x1, "c3_wa"), 0.0),
                        "gavg8", "c3_g", "c3_b")
        c3 = jnp.maximum(conv1x1(maxpool3x3(c3), "c3_wb"), 0.0)
        # EEM(x1)
        dog = conv3x3(x1_taps, "gk")
        dog_taps = make_taps(dog)
        lbr = instance_norm(prelu(conv3x3(dog_taps, "lk_fold"), "eem_a2"))
        dbr = instance_norm(prelu(conv1x1(dog - x1, "eem_w1"), "eem_a1"))
        t3 = group_norm(prelu(conv3x3(make_taps(dbr + lbr), "eem_w3a"),
                              "eem_a3a"),
                        "gavg8", "eem_g3", "eem_b3")
        tot = prelu(conv1x1(maxpool3x3(t3), "eem_w3b"), "eem_a3b")
        tot1 = sem(tot, "eem_sem1_w1", "eem_sem1_w2")
        x1se = sem(x1, "eem_sem2_w1", "eem_sem2_w2")
        eem = prelu(x1 + x1se + tot + tot1, "eem_aout")
        # combine
        ssum = x1 + (c1 + c3 + eem)
        c2 = group_norm(prelu(conv3x3(make_taps(ssum), "c2_w"), "c2_a"),
                        "gavg24", "c2_g", "c2_b")
        y1 = jnp.concatenate([c2, ssum], axis=0)               # channel concat
        y2 = sem(y1, "sem1_w1", "sem1_w2")
        xse = sem(x_im, "sem2_w1", "sem2_w2")
        o_ref[0] = prelu(x_im + xse + y1 + y2, "out_a")

    in_arrays = [xg, blob, mask9, neg9]
    in_specs = [
        pl.BlockSpec((1, Cin, BS), lambda n: (n, 0, 0)),
        pl.BlockSpec(blob.shape, lambda n: (0, 0)),
        pl.BlockSpec((9, BS), lambda n: (0, 0)),
        pl.BlockSpec((9, BS), lambda n: (0, 0)),
    ]
    if B > 1:
        in_arrays += [segm, segb]
        in_specs += [pl.BlockSpec((BS, B), lambda n: (0, 0)),
                     pl.BlockSpec((B, BS), lambda n: (0, 0))]

    y = pl.pallas_call(
        kernel,
        out_shape=jax.ShapeDtypeStruct((G, Cin, BS), jnp.float32),
        grid=(G,),
        in_specs=in_specs,
        out_specs=pl.BlockSpec((1, Cin, BS), lambda n: (n, 0, 0)),
        compiler_params=pltpu.CompilerParams(
            dimension_semantics=("parallel",)),
    )(*in_arrays)

    if B == 1:
        return y.reshape(N, Cin, H, W)
    return (y.reshape(G, Cin, B, S).transpose(0, 2, 1, 3)
             .reshape(N, Cin, H, W))


# ------------------------------------------------------------------
# Deterministic parameter init (shapes follow the PyTorch __init__)
# PFM(ch_in=32, ch_out=8, reduction=(4, 8))
# Grouped weights are pre-expanded to the dense, kernel-ready layouts.
# ------------------------------------------------------------------
def init_params(key):
    keys = iter(jax.random.split(key, 40))

    def conv_w(shape):
        fan_in = shape[1] * shape[2] * shape[3]
        bound = 1.0 / np.sqrt(fan_in)
        return np.asarray(
            jax.random.uniform(next(keys), shape, jnp.float32, -bound, bound))

    def vec(c, v):
        return np.full((c, 1), v, np.float32)

    p = {}
    # reducer: Conv2d(32, 8, 1, groups=2) + PReLU(8, .02) + GroupNorm(4, 8)
    p["red_w"] = _dense_1x1(conv_w((8, 16, 1, 1)), 2)            # (8, 32)
    p["red_a"] = vec(8, 0.02)
    p["red_g"], p["red_b"] = vec(8, 1.0), vec(8, 0.0)
    # c1: Conv2d(8, 8, 3, groups=2) + ReLU + GroupNorm(4, 8)
    p["c1_w"] = _dense_3x3(conv_w((8, 4, 3, 3)), 2)              # (8, 72)
    p["c1_g"], p["c1_b"] = vec(8, 1.0), vec(8, 0.0)
    # c3: 1x1 g2 + ReLU + GN(4,8) + maxpool + 1x1 g2 + ReLU
    p["c3_wa"] = _dense_1x1(conv_w((8, 4, 1, 1)), 2)             # (8, 8)
    p["c3_g"], p["c3_b"] = vec(8, 1.0), vec(8, 0.0)
    p["c3_wb"] = _dense_1x1(conv_w((8, 4, 1, 1)), 2)             # (8, 8)
    # EEM(8, 8, kernel=3, reduction=4)
    gk = gaussiankernel_np(8, 8, 3, 1, 0.9)                      # (8,8,3,3)
    lk = laplaceiankernel_np(8, 8, 3, 0.9)                       # (8,8,3,3)
    p["gk"] = _dense_3x3(gk, 1)                                  # (8, 72)
    p["eem_w1"] = _dense_1x1(conv_w((4, 4, 1, 1)), 2)            # (4, 8)
    p["eem_a1"] = vec(4, 0.01)
    eem_w2 = _dense_1x1(conv_w((4, 4, 1, 1)), 2)                 # (4, 8)
    # fold the 1x1 (eem_w2) into the Laplacian taps: one 8->4 3x3 conv.
    lk_fold = np.einsum("oc,ciyx->oiyx", eem_w2, lk)             # (4,8,3,3)
    p["lk_fold"] = _dense_3x3(lk_fold, 1)                        # (4, 72)
    p["eem_a2"] = vec(4, 0.01)
    p["eem_w3a"] = _dense_3x3(conv_w((8, 1, 3, 3)), 4)           # (8, 36)
    p["eem_a3a"] = vec(8, 0.02)
    p["eem_g3"], p["eem_b3"] = vec(8, 1.0), vec(8, 0.0)
    p["eem_w3b"] = _dense_1x1(conv_w((8, 2, 1, 1)), 4)           # (8, 8)
    p["eem_a3b"] = vec(8, 0.02)
    p["eem_sem1_w1"] = conv_w((2, 8, 1, 1))[:, :, 0, 0]          # (2, 8)
    p["eem_sem1_w2"] = conv_w((8, 2, 1, 1))[:, :, 0, 0]          # (8, 2)
    p["eem_sem2_w1"] = conv_w((2, 8, 1, 1))[:, :, 0, 0]
    p["eem_sem2_w2"] = conv_w((8, 2, 1, 1))[:, :, 0, 0]
    p["eem_aout"] = vec(8, 0.01)
    # c2: Conv2d(8, 24, 3, groups=2) + PReLU(24, .02) + GroupNorm(2, 24)
    p["c2_w"] = _dense_3x3(conv_w((24, 4, 3, 3)), 2)             # (24, 72)
    p["c2_a"] = vec(24, 0.02)
    p["c2_g"], p["c2_b"] = vec(24, 1.0), vec(24, 0.0)
    # PFM SEMs (SEM(32, reduction=8)) and output PReLU(32, .01)
    p["sem1_w1"] = conv_w((4, 32, 1, 1))[:, :, 0, 0]             # (4, 32)
    p["sem1_w2"] = conv_w((32, 4, 1, 1))[:, :, 0, 0]             # (32, 4)
    p["sem2_w1"] = conv_w((4, 32, 1, 1))[:, :, 0, 0]
    p["sem2_w2"] = conv_w((32, 4, 1, 1))[:, :, 0, 0]
    p["out_a"] = vec(32, 0.01)
    # host-hoisted constants: GroupNorm group-average matrices
    p["gavg8"] = _group_avg(8, 4)                                # (8, 8)
    p["gavg24"] = _group_avg(24, 2)                              # (24, 24)
    return p


if __name__ == "__main__":
    key = jax.random.PRNGKey(0)
    pkey, xkey = jax.random.split(key)
    params = init_params(pkey)
    blob, layout = pack_params(params)
    # input in NCHW, like the PyTorch module: (batch=2, ch_in=32, 16, 16)
    x = jax.random.normal(xkey, (2, 32, 16, 16), jnp.float32)
    fwd = jax.jit(lambda xx, bb: pfm_forward(xx, bb, layout))
    y = fwd(x, blob)
    jax.block_until_ready(y)
    assert y.shape == (2, 32, 16, 16)
    assert bool(jnp.all(jnp.isfinite(y)))
    print("KERNEL_OK")
</pallas_src>

<mosaic_0001>
module attributes {stable_mosaic.version = 11 : i64} {
  func.func @kernel(%arg0: i32, %arg1: memref<1x32x256xf32, #tpu.memory_space<vmem>>, %arg2: memref<456x128xf32, #tpu.memory_space<vmem>>, %arg3: memref<9x256xf32, #tpu.memory_space<vmem>>, %arg4: memref<9x256xf32, #tpu.memory_space<vmem>>, %arg5: memref<1x32x256xf32, #tpu.memory_space<vmem>>) attributes {dimension_semantics = [#tpu.dimension_semantics<parallel>], iteration_bounds = array<i64: 2>, scalar_prefetch = 0 : i64, scratch_operands = 0 : i64, tpu.core_type = #tpu.core_type<tc>, window_params = [{transform_indices = @transform_0, window_bounds = array<i64: 1, 32, 256>}, {pipeline_mode = #tpu.pipeline_mode<synchronous>, transform_indices = @transform_1, window_bounds = array<i64: 456, 128>}, {pipeline_mode = #tpu.pipeline_mode<synchronous>, transform_indices = @transform_2, window_bounds = array<i64: 9, 256>}, {pipeline_mode = #tpu.pipeline_mode<synchronous>, transform_indices = @transform_3, window_bounds = array<i64: 9, 256>}, {transform_indices = @transform_4, window_bounds = array<i64: 1, 32, 256>}]} {
    %c0 = arith.constant 0 : index
    %c0_0 = arith.constant 0 : index
    %c0_1 = arith.constant 0 : index
    %0 = vector.load %arg1[%c0, %c0_0, %c0_1] : memref<1x32x256xf32, #tpu.memory_space<vmem>>, vector<1x32x256xf32>
    %1 = vector.shape_cast %0 : vector<1x32x256xf32> to vector<32x256xf32>
    %c0_2 = arith.constant 0 : index
    %c0_3 = arith.constant 0 : index
    %2 = vector.load %arg2[%c0_2, %c0_3] : memref<456x128xf32, #tpu.memory_space<vmem>>, vector<8x32xf32>
    %3 = arith.truncf %2 : vector<8x32xf32> to vector<8x32xbf16>
    %4 = arith.truncf %1 : vector<32x256xf32> to vector<32x256xbf16>
    %cst = arith.constant dense<0.000000e+00> : vector<8x256xf32>
    %5 = tpu.matmul %3, %4, %cst {dimension_numbers = #tpu.dot_dimension_numbers<[1], [0], [0], [1], [0, 0, 1, 1], [], []>} : vector<8x32xbf16>, vector<32x256xbf16>, vector<8x256xf32> -> vector<8x256xf32>
    %c8 = arith.constant 8 : index
    %c0_4 = arith.constant 0 : index
    %6 = vector.load %arg2[%c8, %c0_4] : memref<456x128xf32, #tpu.memory_space<vmem>>, vector<8x1xf32>
    %cst_5 = arith.constant 0.000000e+00 : f32
    %7 = vector.broadcast %cst_5 : f32 to vector<8x256xf32>
    %8 = arith.cmpf oge, %5, %7 : vector<8x256xf32>
    %9 = vector.broadcast %6 : vector<8x1xf32> to vector<8x256xf32>
    %10 = arith.mulf %9, %5 : vector<8x256xf32>
    %11 = arith.select %8, %5, %10 : vector<8x256xi1>, vector<8x256xf32>
    %c424 = arith.constant 424 : index
    %c0_6 = arith.constant 0 : index
    %12 = vector.load %arg2[%c424, %c0_6] : memref<456x128xf32, #tpu.memory_space<vmem>>, vector<8x8xf32>
    %cst_7 = arith.constant dense<0.000000e+00> : vector<8xf32>
    %13 = vector.multi_reduction <add>, %11, %cst_7 [1] : vector<8x256xf32> to vector<8xf32>
    %14 = vector.shape_cast %13 : vector<8xf32> to vector<8x1xf32>
    %cst_8 = arith.constant 2.560000e+02 : f32
    %15 = vector.broadcast %cst_8 : f32 to vector<8x1xf32>
    %16 = arith.divf %14, %15 : vector<8x1xf32>
    %cst_9 = arith.constant dense<0.000000e+00> : vector<8x1xf32>
    %17 = tpu.matmul %12, %16, %cst_9 {dimension_numbers = #tpu.dot_dimension_numbers<[1], [0], [0], [1], [0, 0, 1, 1], [], []>, precision = #tpu.contract_precision<fp32>} : vector<8x8xf32>, vector<8x1xf32>, vector<8x1xf32> -> vector<8x1xf32>
    %18 = vector.broadcast %17 : vector<8x1xf32> to vector<8x256xf32>
    %19 = arith.subf %11, %18 : vector<8x256xf32>
    %20 = arith.mulf %19, %19 : vector<8x256xf32>
    %cst_10 = arith.constant dense<0.000000e+00> : vector<8xf32>
    %21 = vector.multi_reduction <add>, %20, %cst_10 [1] : vector<8x256xf32> to vector<8xf32>
    %22 = vector.shape_cast %21 : vector<8xf32> to vector<8x1xf32>
    %cst_11 = arith.constant 2.560000e+02 : f32
    %23 = vector.broadcast %cst_11 : f32 to vector<8x1xf32>
    %24 = arith.divf %22, %23 : vector<8x1xf32>
    %cst_12 = arith.constant dense<0.000000e+00> : vector<8x1xf32>
    %25 = tpu.matmul %12, %24, %cst_12 {dimension_numbers = #tpu.dot_dimension_numbers<[1], [0], [0], [1], [0, 0, 1, 1], [], []>, precision = #tpu.contract_precision<fp32>} : vector<8x8xf32>, vector<8x1xf32>, vector<8x1xf32> -> vector<8x1xf32>
    %cst_13 = arith.constant 9.99999974E-6 : f32
    %26 = vector.broadcast %cst_13 : f32 to vector<8x1xf32>
    %27 = arith.addf %25, %26 : vector<8x1xf32>
    %28 = math.rsqrt %27 : vector<8x1xf32>
    %29 = vector.broadcast %28 : vector<8x1xf32> to vector<8x256xf32>
    %30 = arith.mulf %19, %29 : vector<8x256xf32>
    %c16 = arith.constant 16 : index
    %c0_14 = arith.constant 0 : index
    %31 = vector.load %arg2[%c16, %c0_14] : memref<456x128xf32, #tpu.memory_space<vmem>>, vector<8x1xf32>
    %32 = vector.broadcast %31 : vector<8x1xf32> to vector<8x256xf32>
    %33 = arith.mulf %30, %32 : vector<8x256xf32>
    %c24 = arith.constant 24 : index
    %c0_15 = arith.constant 0 : index
    %34 = vector.load %arg2[%c24, %c0_15] : memref<456x128xf32, #tpu.memory_space<vmem>>, vector<8x1xf32>
    %35 = vector.broadcast %34 : vector<8x1xf32> to vector<8x256xf32>
    %36 = arith.addf %33, %35 : vector<8x256xf32>
    %c17_i32 = arith.constant 17 : i32
    %37 = tpu.dynamic_rotate %36 by %c17_i32 dim 1 : vector<8x256xf32>, i32 -> vector<8x256xf32>
    %c0_16 = arith.constant 0 : index
    %c0_17 = arith.constant 0 : index
    %38 = vector.load %arg3[%c0_16, %c0_17] : memref<9x256xf32, #tpu.memory_space<vmem>>, vector<1x256xf32>
    %39 = vector.broadcast %38 : vector<1x256xf32> to vector<8x256xf32>
    %40 = arith.mulf %37, %39 : vector<8x256xf32>
    %c16_i32 = arith.constant 16 : i32
    %41 = tpu.dynamic_rotate %36 by %c16_i32 dim 1 : vector<8x256xf32>, i32 -> vector<8x256xf32>
    %c1 = arith.constant 1 : index
    %c0_18 = arith.constant 0 : index
    %42 = vector.load %arg3[%c1, %c0_18] : memref<9x256xf32, #tpu.memory_space<vmem>>, vector<1x256xf32>
    %43 = vector.broadcast %42 : vector<1x256xf32> to vector<8x256xf32>
    %44 = arith.mulf %41, %43 : vector<8x256xf32>
    %c15_i32 = arith.constant 15 : i32
    %45 = tpu.dynamic_rotate %36 by %c15_i32 dim 1 : vector<8x256xf32>, i32 -> vector<8x256xf32>
    %c2 = arith.constant 2 : index
    %c0_19 = arith.constant 0 : index
    %46 = vector.load %arg3[%c2, %c0_19] : memref<9x256xf32, #tpu.memory_space<vmem>>, vector<1x256xf32>
    %47 = vector.broadcast %46 : vector<1x256xf32> to vector<8x256xf32>
    %48 = arith.mulf %45, %47 : vector<8x256xf32>
    %c1_i32 = arith.constant 1 : i32
    %49 = tpu.dynamic_rotate %36 by %c1_i32 dim 1 : vector<8x256xf32>, i32 -> vector<8x256xf32>
    %c3 = arith.constant 3 : index
    %c0_20 = arith.constant 0 : index
    %50 = vector.load %arg3[%c3, %c0_20] : memref<9x256xf32, #tpu.memory_space<vmem>>, vector<1x256xf32>
    %51 = vector.broadcast %50 : vector<1x256xf32> to vector<8x256xf32>
    %52 = arith.mulf %49, %51 : vector<8x256xf32>
    %c255_i32 = arith.constant 255 : i32
    %53 = tpu.dynamic_rotate %36 by %c255_i32 dim 1 : vector<8x256xf32>, i32 -> vector<8x256xf32>
    %c5 = arith.constant 5 : index
    %c0_21 = arith.constant 0 : index
    %54 = vector.load %arg3[%c5, %c0_21] : memref<9x256xf32, #tpu.memory_space<vmem>>, vector<1x256xf32>
    %55 = vector.broadcast %54 : vector<1x256xf32> to vector<8x256xf32>
    %56 = arith.mulf %53, %55 : vector<8x256xf32>
    %c241_i32 = arith.constant 241 : i32
    %57 = tpu.dynamic_rotate %36 by %c241_i32 dim 1 : vector<8x256xf32>, i32 -> vector<8x256xf32>
    %c6 = arith.constant 6 : index
    %c0_22 = arith.constant 0 : index
    %58 = vector.load %arg3[%c6, %c0_22] : memref<9x256xf32, #tpu.memory_space<vmem>>, vector<1x256xf32>
    %59 = vector.broadcast %58 : vector<1x256xf32> to vector<8x256xf32>
    %60 = arith.mulf %57, %59 : vector<8x256xf32>
    %c240_i32 = arith.constant 240 : i32
    %61 = tpu.dynamic_rotate %36 by %c240_i32 dim 1 : vector<8x256xf32>, i32 -> vector<8x256xf32>
    %c7 = arith.constant 7 : index
    %c0_23 = arith.constant 0 : index
    %62 = vector.load %arg3[%c7, %c0_23] : memref<9x256xf32, #tpu.memory_space<vmem>>, vector<1x256xf32>
    %63 = vector.broadcast %62 : vector<1x256xf32> to vector<8x256xf32>
    %64 = arith.mulf %61, %63 : vector<8x256xf32>
    %c239_i32 = arith.constant 239 : i32
    %65 = tpu.dynamic_rotate %36 by %c239_i32 dim 1 : vector<8x256xf32>, i32 -> vector<8x256xf32>
    %c8_24 = arith.constant 8 : index
    %c0_25 = arith.constant 0 : index
    %66 = vector.load %arg3[%c8_24, %c0_25] : memref<9x256xf32, #tpu.memory_space<vmem>>, vector<1x256xf32>
    %67 = vector.broadcast %66 : vector<1x256xf32> to vector<8x256xf32>
    %68 = arith.mulf %65, %67 : vector<8x256xf32>
    %69 = tpu.concatenate %40, %44, %48, %52, %36, %56, %60, %64, %68 in 0 : vector<8x256xf32>, vector<8x256xf32>, vector<8x256xf32>, vector<8x256xf32>, vector<8x256xf32>, vector<8x256xf32>, vector<8x256xf32>, vector<8x256xf32>, vector<8x256xf32> -> vector<72x256xf32>
    %70 = arith.truncf %69 : vector<72x256xf32> to vector<72x256xbf16>
    %c32 = arith.constant 32 : index
    %c0_26 = arith.constant 0 : index
    %71 = vector.load %arg2[%c32, %c0_26] : memref<456x128xf32, #tpu.memory_space<vmem>>, vector<8x72xf32>
    %72 = arith.truncf %71 : vector<8x72xf32> to vector<8x72xbf16>
    %cst_27 = arith.constant dense<0.000000e+00> : vector<8x256xf32>
    %73 = tpu.matmul %72, %70, %cst_27 {dimension_numbers = #tpu.dot_dimension_numbers<[1], [0], [0], [1], [0, 0, 1, 1], [], []>} : vector<8x72xbf16>, vector<72x256xbf16>, vector<8x256xf32> -> vector<8x256xf32>
    %cst_28 = arith.constant 0.000000e+00 : f32
    %74 = vector.broadcast %cst_28 : f32 to vector<8x256xf32>
    %75 = arith.maximumf %73, %74 : vector<8x256xf32>
    %c424_29 = arith.constant 424 : index
    %c0_30 = arith.constant 0 : index
    %76 = vector.load %arg2[%c424_29, %c0_30] : memref<456x128xf32, #tpu.memory_space<vmem>>, vector<8x8xf32>
    %cst_31 = arith.constant dense<0.000000e+00> : vector<8xf32>
    %77 = vector.multi_reduction <add>, %75, %cst_31 [1] : vector<8x256xf32> to vector<8xf32>
    %78 = vector.shape_cast %77 : vector<8xf32> to vector<8x1xf32>
    %cst_32 = arith.constant 2.560000e+02 : f32
    %79 = vector.broadcast %cst_32 : f32 to vector<8x1xf32>
    %80 = arith.divf %78, %79 : vector<8x1xf32>
    %cst_33 = arith.constant dense<0.000000e+00> : vector<8x1xf32>
    %81 = tpu.matmul %76, %80, %cst_33 {dimension_numbers = #tpu.dot_dimension_numbers<[1], [0], [0], [1], [0, 0, 1, 1], [], []>, precision = #tpu.contract_precision<fp32>} : vector<8x8xf32>, vector<8x1xf32>, vector<8x1xf32> -> vector<8x1xf32>
    %82 = vector.broadcast %81 : vector<8x1xf32> to vector<8x256xf32>
    %83 = arith.subf %75, %82 : vector<8x256xf32>
    %84 = arith.mulf %83, %83 : vector<8x256xf32>
    %cst_34 = arith.constant dense<0.000000e+00> : vector<8xf32>
    %85 = vector.multi_reduction <add>, %84, %cst_34 [1] : vector<8x256xf32> to vector<8xf32>
    %86 = vector.shape_cast %85 : vector<8xf32> to vector<8x1xf32>
    %cst_35 = arith.constant 2.560000e+02 : f32
    %87 = vector.broadcast %cst_35 : f32 to vector<8x1xf32>
    %88 = arith.divf %86, %87 : vector<8x1xf32>
    %cst_36 = arith.constant dense<0.000000e+00> : vector<8x1xf32>
    %89 = tpu.matmul %76, %88, %cst_36 {dimension_numbers = #tpu.dot_dimension_numbers<[1], [0], [0], [1], [0, 0, 1, 1], [], []>, precision = #tpu.contract_precision<fp32>} : vector<8x8xf32>, vector<8x1xf32>, vector<8x1xf32> -> vector<8x1xf32>
    %cst_37 = arith.constant 9.99999974E-6 : f32
    %90 = vector.broadcast %cst_37 : f32 to vector<8x1xf32>
    %91 = arith.addf %89, %90 : vector<8x1xf32>
    %92 = math.rsqrt %91 : vector<8x1xf32>
    %93 = vector.broadcast %92 : vector<8x1xf32> to vector<8x256xf32>
    %94 = arith.mulf %83, %93 : vector<8x256xf32>
    %c40 = arith.constant 40 : index
    %c0_38 = arith.constant 0 : index
    %95 = vector.load %arg2[%c40, %c0_38] : memref<456x128xf32, #tpu.memory_space<vmem>>, vector<8x1xf32>
    %96 = vector.broadcast %95 : vector<8x1xf32> to vector<8x256xf32>
    %97 = arith.mulf %94, %96 : vector<8x256xf32>
    %c48 = arith.constant 48 : index
    %c0_39 = arith.constant 0 : index
    %98 = vector.load %arg2[%c48, %c0_39] : memref<456x128xf32, #tpu.memory_space<vmem>>, vector<8x1xf32>
    %99 = vector.broadcast %98 : vector<8x1xf32> to vector<8x256xf32>
    %100 = arith.addf %97, %99 : vector<8x256xf32>
    %c56 = arith.constant 56 : index
    %c0_40 = arith.constant 0 : index
    %101 = vector.load %arg2[%c56, %c0_40] : memref<456x128xf32, #tpu.memory_space<vmem>>, vector<8x8xf32>
    %102 = arith.truncf %101 : vector<8x8xf32> to vector<8x8xbf16>
    %103 = arith.truncf %36 : vector<8x256xf32> to vector<8x256xbf16>
    %cst_41 = arith.constant dense<0.000000e+00> : vector<8x256xf32>
    %104 = tpu.matmul %102, %103, %cst_41 {dimension_numbers = #tpu.dot_dimension_numbers<[1], [0], [0], [1], [0, 0, 1, 1], [], []>} : vector<8x8xbf16>, vector<8x256xbf16>, vector<8x256xf32> -> vector<8x256xf32>
    %cst_42 = arith.constant 0.000000e+00 : f32
    %105 = vector.broadcast %cst_42 : f32 to vector<8x256xf32>
    %106 = arith.maximumf %104, %105 : vector<8x256xf32>
    %c424_43 = arith.constant 424 : index
    %c0_44 = arith.constant 0 : index
    %107 = vector.load %arg2[%c424_43, %c0_44] : memref<456x128xf32, #tpu.memory_space<vmem>>, vector<8x8xf32>
    %cst_45 = arith.constant dense<0.000000e+00> : vector<8xf32>
    %108 = vector.multi_reduction <add>, %106, %cst_45 [1] : vector<8x256xf32> to vector<8xf32>
    %109 = vector.shape_cast %108 : vector<8xf32> to vector<8x1xf32>
    %cst_46 = arith.constant 2.560000e+02 : f32
    %110 = vector.broadcast %cst_46 : f32 to vector<8x1xf32>
    %111 = arith.divf %109, %110 : vector<8x1xf32>
    %cst_47 = arith.constant dense<0.000000e+00> : vector<8x1xf32>
    %112 = tpu.matmul %107, %111, %cst_47 {dimension_numbers = #tpu.dot_dimension_numbers<[1], [0], [0], [1], [0, 0, 1, 1], [], []>, precision = #tpu.contract_precision<fp32>} : vector<8x8xf32>, vector<8x1xf32>, vector<8x1xf32> -> vector<8x1xf32>
    %113 = vector.broadcast %112 : vector<8x1xf32> to vector<8x256xf32>
    %114 = arith.subf %106, %113 : vector<8x256xf32>
    %115 = arith.mulf %114, %114 : vector<8x256xf32>
    %cst_48 = arith.constant dense<0.000000e+00> : vector<8xf32>
    %116 = vector.multi_reduction <add>, %115, %cst_48 [1] : vector<8x256xf32> to vector<8xf32>
    %117 = vector.shape_cast %116 : vector<8xf32> to vector<8x1xf32>
    %cst_49 = arith.constant 2.560000e+02 : f32
    %118 = vector.broadcast %cst_49 : f32 to vector<8x1xf32>
    %119 = arith.divf %117, %118 : vector<8x1xf32>
    %cst_50 = arith.constant dense<0.000000e+00> : vector<8x1xf32>
    %120 = tpu.matmul %107, %119, %cst_50 {dimension_numbers = #tpu.dot_dimension_numbers<[1], [0], [0], [1], [0, 0, 1, 1], [], []>, precision = #tpu.contract_precision<fp32>} : vector<8x8xf32>, vector<8x1xf32>, vector<8x1xf32> -> vector<8x1xf32>
    %cst_51 = arith.constant 9.99999974E-6 : f32
    %121 = vector.broadcast %cst_51 : f32 to vector<8x1xf32>
    %122 = arith.addf %120, %121 : vector<8x1xf32>
    %123 = math.rsqrt %122 : vector<8x1xf32>
    %124 = vector.broadcast %123 : vector<8x1xf32> to vector<8x256xf32>
    %125 = arith.mulf %114, %124 : vector<8x256xf32>
    %c64 = arith.constant 64 : index
    %c0_52 = arith.constant 0 : index
    %126 = vector.load %arg2[%c64, %c0_52] : memref<456x128xf32, #tpu.memory_space<vmem>>, vector<8x1xf32>
    %127 = vector.broadcast %126 : vector<8x1xf32> to vector<8x256xf32>
    %128 = arith.mulf %125, %127 : vector<8x256xf32>
    %c72 = arith.constant 72 : index
    %c0_53 = arith.constant 0 : index
    %129 = vector.load %arg2[%c72, %c0_53] : memref<456x128xf32, #tpu.memory_space<vmem>>, vector<8x1xf32>
    %130 = vector.broadcast %129 : vector<8x1xf32> to vector<8x256xf32>
    %131 = arith.addf %128, %130 : vector<8x256xf32>
    %c17_i32_54 = arith.constant 17 : i32
    %132 = tpu.dynamic_rotate %131 by %c17_i32_54 dim 1 : vector<8x256xf32>, i32 -> vector<8x256xf32>
    %c0_55 = arith.constant 0 : index
    %c0_56 = arith.constant 0 : index
    %133 = vector.load %arg4[%c0_55, %c0_56] : memref<9x256xf32, #tpu.memory_space<vmem>>, vector<1x256xf32>
    %134 = vector.broadcast %133 : vector<1x256xf32> to vector<8x256xf32>
    %135 = arith.addf %132, %134 : vector<8x256xf32>
    %136 = arith.maximumf %131, %135 : vector<8x256xf32>
    %c16_i32_57 = arith.constant 16 : i32
    %137 = tpu.dynamic_rotate %131 by %c16_i32_57 dim 1 : vector<8x256xf32>, i32 -> vector<8x256xf32>
    %c1_58 = arith.constant 1 : index
    %c0_59 = arith.constant 0 : index
    %138 = vector.load %arg4[%c1_58, %c0_59] : memref<9x256xf32, #tpu.memory_space<vmem>>, vector<1x256xf32>
    %139 = vector.broadcast %138 : vector<1x256xf32> to vector<8x256xf32>
    %140 = arith.addf %137, %139 : vector<8x256xf32>
    %141 = arith.maximumf %136, %140 : vector<8x256xf32>
    %c15_i32_60 = arith.constant 15 : i32
    %142 = tpu.dynamic_rotate %131 by %c15_i32_60 dim 1 : vector<8x256xf32>, i32 -> vector<8x256xf32>
    %c2_61 = arith.constant 2 : index
    %c0_62 = arith.constant 0 : index
    %143 = vector.load %arg4[%c2_61, %c0_62] : memref<9x256xf32, #tpu.memory_space<vmem>>, vector<1x256xf32>
    %144 = vector.broadcast %143 : vector<1x256xf32> to vector<8x256xf32>
    %145 = arith.addf %142, %144 : vector<8x256xf32>
    %146 = arith.maximumf %141, %145 : vector<8x256xf32>
    %c1_i32_63 = arith.constant 1 : i32
    %147 = tpu.dynamic_rotate %131 by %c1_i32_63 dim 1 : vector<8x256xf32>, i32 -> vector<8x256xf32>
    %c3_64 = arith.constant 3 : index
    %c0_65 = arith.constant 0 : index
    %148 = vector.load %arg4[%c3_64, %c0_65] : memref<9x256xf32, #tpu.memory_space<vmem>>, vector<1x256xf32>
    %149 = vector.broadcast %148 : vector<1x256xf32> to vector<8x256xf32>
    %150 = arith.addf %147, %149 : vector<8x256xf32>
    %151 = arith.maximumf %146, %150 : vector<8x256xf32>
    %c255_i32_66 = arith.constant 255 : i32
    %152 = tpu.dynamic_rotate %131 by %c255_i32_66 dim 1 : vector<8x256xf32>, i32 -> vector<8x256xf32>
    %c5_67 = arith.constant 5 : index
    %c0_68 = arith.constant 0 : index
    %153 = vector.load %arg4[%c5_67, %c0_68] : memref<9x256xf32, #tpu.memory_space<vmem>>, vector<1x256xf32>
    %154 = vector.broadcast %153 : vector<1x256xf32> to vector<8x256xf32>
    %155 = arith.addf %152, %154 : vector<8x256xf32>
    %156 = arith.maximumf %151, %155 : vector<8x256xf32>
    %c241_i32_69 = arith.constant 241 : i32
    %157 = tpu.dynamic_rotate %131 by %c241_i32_69 dim 1 : vector<8x256xf32>, i32 -> vector<8x256xf32>
    %c6_70 = arith.constant 6 : index
    %c0_71 = arith.constant 0 : index
    %158 = vector.load %arg4[%c6_70, %c0_71] : memref<9x256xf32, #tpu.memory_space<vmem>>, vector<1x256xf32>
    %159 = vector.broadcast %158 : vector<1x256xf32> to vector<8x256xf32>
    %160 = arith.addf %157, %159 : vector<8x256xf32>
    %161 = arith.maximumf %156, %160 : vector<8x256xf32>
    %c240_i32_72 = arith.constant 240 : i32
    %162 = tpu.dynamic_rotate %131 by %c240_i32_72 dim 1 : vector<8x256xf32>, i32 -> vector<8x256xf32>
    %c7_73 = arith.constant 7 : index
    %c0_74 = arith.constant 0 : index
    %163 = vector.load %arg4[%c7_73, %c0_74] : memref<9x256xf32, #tpu.memory_space<vmem>>, vector<1x256xf32>
    %164 = vector.broadcast %163 : vector<1x256xf32> to vector<8x256xf32>
    %165 = arith.addf %162, %164 : vector<8x256xf32>
    %166 = arith.maximumf %161, %165 : vector<8x256xf32>
    %c239_i32_75 = arith.constant 239 : i32
    %167 = tpu.dynamic_rotate %131 by %c239_i32_75 dim 1 : vector<8x256xf32>, i32 -> vector<8x256xf32>
    %c8_76 = arith.constant 8 : index
    %c0_77 = arith.constant 0 : index
    %168 = vector.load %arg4[%c8_76, %c0_77] : memref<9x256xf32, #tpu.memory_space<vmem>>, vector<1x256xf32>
    %169 = vector.broadcast %168 : vector<1x256xf32> to vector<8x256xf32>
    %170 = arith.addf %167, %169 : vector<8x256xf32>
    %171 = arith.maximumf %166, %170 : vector<8x256xf32>
    %c80 = arith.constant 80 : index
    %c0_78 = arith.constant 0 : index
    %172 = vector.load %arg2[%c80, %c0_78] : memref<456x128xf32, #tpu.memory_space<vmem>>, vector<8x8xf32>
    %173 = arith.truncf %172 : vector<8x8xf32> to vector<8x8xbf16>
    %174 = arith.truncf %171 : vector<8x256xf32> to vector<8x256xbf16>
    %cst_79 = arith.constant dense<0.000000e+00> : vector<8x256xf32>
    %175 = tpu.matmul %173, %174, %cst_79 {dimension_numbers = #tpu.dot_dimension_numbers<[1], [0], [0], [1], [0, 0, 1, 1], [], []>} : vector<8x8xbf16>, vector<8x256xbf16>, vector<8x256xf32> -> vector<8x256xf32>
    %cst_80 = arith.constant 0.000000e+00 : f32
    %176 = vector.broadcast %cst_80 : f32 to vector<8x256xf32>
    %177 = arith.maximumf %175, %176 : vector<8x256xf32>
    %c88 = arith.constant 88 : index
    %c0_81 = arith.constant 0 : index
    %178 = vector.load %arg2[%c88, %c0_81] : memref<456x128xf32, #tpu.memory_space<vmem>>, vector<8x72xf32>
    %179 = arith.truncf %178 : vector<8x72xf32> to vector<8x72xbf16>
    %cst_82 = arith.constant dense<0.000000e+00> : vector<8x256xf32>
    %180 = tpu.matmul %179, %70, %cst_82 {dimension_numbers = #tpu.dot_dimension_numbers<[1], [0], [0], [1], [0, 0, 1, 1], [], []>} : vector<8x72xbf16>, vector<72x256xbf16>, vector<8x256xf32> -> vector<8x256xf32>
    %c17_i32_83 = arith.constant 17 : i32
    %181 = tpu.dynamic_rotate %180 by %c17_i32_83 dim 1 : vector<8x256xf32>, i32 -> vector<8x256xf32>
    %c0_84 = arith.constant 0 : index
    %c0_85 = arith.constant 0 : index
    %182 = vector.load %arg3[%c0_84, %c0_85] : memref<9x256xf32, #tpu.memory_space<vmem>>, vector<1x256xf32>
    %183 = vector.broadcast %182 : vector<1x256xf32> to vector<8x256xf32>
    %184 = arith.mulf %181, %183 : vector<8x256xf32>
    %c16_i32_86 = arith.constant 16 : i32
    %185 = tpu.dynamic_rotate %180 by %c16_i32_86 dim 1 : vector<8x256xf32>, i32 -> vector<8x256xf32>
    %c1_87 = arith.constant 1 : index
    %c0_88 = arith.constant 0 : index
    %186 = vector.load %arg3[%c1_87, %c0_88] : memref<9x256xf32, #tpu.memory_space<vmem>>, vector<1x256xf32>
    %187 = vector.broadcast %186 : vector<1x256xf32> to vector<8x256xf32>
    %188 = arith.mulf %185, %187 : vector<8x256xf32>
    %c15_i32_89 = arith.constant 15 : i32
    %189 = tpu.dynamic_rotate %180 by %c15_i32_89 dim 1 : vector<8x256xf32>, i32 -> vector<8x256xf32>
    %c2_90 = arith.constant 2 : index
    %c0_91 = arith.constant 0 : index
    %190 = vector.load %arg3[%c2_90, %c0_91] : memref<9x256xf32, #tpu.memory_space<vmem>>, vector<1x256xf32>
    %191 = vector.broadcast %190 : vector<1x256xf32> to vector<8x256xf32>
    %192 = arith.mulf %189, %191 : vector<8x256xf32>
    %c1_i32_92 = arith.constant 1 : i32
    %193 = tpu.dynamic_rotate %180 by %c1_i32_92 dim 1 : vector<8x256xf32>, i32 -> vector<8x256xf32>
    %c3_93 = arith.constant 3 : index
    %c0_94 = arith.constant 0 : index
    %194 = vector.load %arg3[%c3_93, %c0_94] : memref<9x256xf32, #tpu.memory_space<vmem>>, vector<1x256xf32>
    %195 = vector.broadcast %194 : vector<1x256xf32> to vector<8x256xf32>
    %196 = arith.mulf %193, %195 : vector<8x256xf32>
    %c255_i32_95 = arith.constant 255 : i32
    %197 = tpu.dynamic_rotate %180 by %c255_i32_95 dim 1 : vector<8x256xf32>, i32 -> vector<8x256xf32>
    %c5_96 = arith.constant 5 : index
    %c0_97 = arith.constant 0 : index
    %198 = vector.load %arg3[%c5_96, %c0_97] : memref<9x256xf32, #tpu.memory_space<vmem>>, vector<1x256xf32>
    %199 = vector.broadcast %198 : vector<1x256xf32> to vector<8x256xf32>
    %200 = arith.mulf %197, %199 : vector<8x256xf32>
    %c241_i32_98 = arith.constant 241 : i32
    %201 = tpu.dynamic_rotate %180 by %c241_i32_98 dim 1 : vector<8x256xf32>, i32 -> vector<8x256xf32>
    %c6_99 = arith.constant 6 : index
    %c0_100 = arith.constant 0 : index
    %202 = vector.load %arg3[%c6_99, %c0_100] : memref<9x256xf32, #tpu.memory_space<vmem>>, vector<1x256xf32>
    %203 = vector.broadcast %202 : vector<1x256xf32> to vector<8x256xf32>
    %204 = arith.mulf %201, %203 : vector<8x256xf32>
    %c240_i32_101 = arith.constant 240 : i32
    %205 = tpu.dynamic_rotate %180 by %c240_i32_101 dim 1 : vector<8x256xf32>, i32 -> vector<8x256xf32>
    %c7_102 = arith.constant 7 : index
    %c0_103 = arith.constant 0 : index
    %206 = vector.load %arg3[%c7_102, %c0_103] : memref<9x256xf32, #tpu.memory_space<vmem>>, vector<1x256xf32>
    %207 = vector.broadcast %206 : vector<1x256xf32> to vector<8x256xf32>
    %208 = arith.mulf %205, %207 : vector<8x256xf32>
    %c239_i32_104 = arith.constant 239 : i32
    %209 = tpu.dynamic_rotate %180 by %c239_i32_104 dim 1 : vector<8x256xf32>, i32 -> vector<8x256xf32>
    %c8_105 = arith.constant 8 : index
    %c0_106 = arith.constant 0 : index
    %210 = vector.load %arg3[%c8_105, %c0_106] : memref<9x256xf32, #tpu.memory_space<vmem>>, vector<1x256xf32>
    %211 = vector.broadcast %210 : vector<1x256xf32> to vector<8x256xf32>
    %212 = arith.mulf %209, %211 : vector<8x256xf32>
    %213 = tpu.concatenate %184, %188, %192, %196, %180, %200, %204, %208, %212 in 0 : vector<8x256xf32>, vector<8x256xf32>, vector<8x256xf32>, vector<8x256xf32>, vector<8x256xf32>, vector<8x256xf32>, vector<8x256xf32>, vector<8x256xf32>, vector<8x256xf32> -> vector<72x256xf32>
    %214 = arith.truncf %213 : vector<72x256xf32> to vector<72x256xbf16>
    %c112 = arith.constant 112 : index
    %c0_107 = arith.constant 0 : index
    %215 = vector.load %arg2[%c112, %c0_107] : memref<456x128xf32, #tpu.memory_space<vmem>>, vector<4x72xf32>
    %216 = arith.truncf %215 : vector<4x72xf32> to vector<4x72xbf16>
    %cst_108 = arith.constant dense<0.000000e+00> : vector<4x256xf32>
    %217 = tpu.matmul %216, %214, %cst_108 {dimension_numbers = #tpu.dot_dimension_numbers<[1], [0], [0], [1], [0, 0, 1, 1], [], []>} : vector<4x72xbf16>, vector<72x256xbf16>, vector<4x256xf32> -> vector<4x256xf32>
    %c120 = arith.constant 120 : index
    %c0_109 = arith.constant 0 : index
    %218 = vector.load %arg2[%c120, %c0_109] : memref<456x128xf32, #tpu.memory_space<vmem>>, vector<4x1xf32>
    %cst_110 = arith.constant 0.000000e+00 : f32
    %219 = vector.broadcast %cst_110 : f32 to vector<4x256xf32>
    %220 = arith.cmpf oge, %217, %219 : vector<4x256xf32>
    %221 = vector.broadcast %218 : vector<4x1xf32> to vector<4x256xf32>
    %222 = arith.mulf %221, %217 : vector<4x256xf32>
    %223 = arith.select %220, %217, %222 : vector<4x256xi1>, vector<4x256xf32>
    %cst_111 = arith.constant dense<0.000000e+00> : vector<4xf32>
    %224 = vector.multi_reduction <add>, %223, %cst_111 [1] : vector<4x256xf32> to vector<4xf32>
    %225 = vector.shape_cast %224 : vector<4xf32> to vector<4x1xf32>
    %cst_112 = arith.constant 2.560000e+02 : f32
    %226 = vector.broadcast %cst_112 : f32 to vector<4x1xf32>
    %227 = arith.divf %225, %226 : vector<4x1xf32>
    %228 = vector.broadcast %227 : vector<4x1xf32> to vector<4x256xf32>
    %229 = arith.subf %223, %228 : vector<4x256xf32>
    %230 = arith.mulf %229, %229 : vector<4x256xf32>
    %cst_113 = arith.constant dense<0.000000e+00> : vector<4xf32>
    %231 = vector.multi_reduction <add>, %230, %cst_113 [1] : vector<4x256xf32> to vector<4xf32>
    %232 = vector.shape_cast %231 : vector<4xf32> to vector<4x1xf32>
    %cst_114 = arith.constant 2.560000e+02 : f32
    %233 = vector.broadcast %cst_114 : f32 to vector<4x1xf32>
    %234 = arith.divf %232, %233 : vector<4x1xf32>
    %cst_115 = arith.constant 9.99999974E-6 : f32
    %235 = vector.broadcast %cst_115 : f32 to vector<4x1xf32>
    %236 = arith.addf %234, %235 : vector<4x1xf32>
    %237 = math.rsqrt %236 : vector<4x1xf32>
    %238 = vector.broadcast %237 : vector<4x1xf32> to vector<4x256xf32>
    %239 = arith.mulf %229, %238 : vector<4x256xf32>
    %240 = arith.subf %180, %36 : vector<8x256xf32>
    %c96 = arith.constant 96 : index
    %c0_116 = arith.constant 0 : index
    %241 = vector.load %arg2[%c96, %c0_116] : memref<456x128xf32, #tpu.memory_space<vmem>>, vector<4x8xf32>
    %242 = arith.truncf %241 : vector<4x8xf32> to vector<4x8xbf16>
    %243 = arith.truncf %240 : vector<8x256xf32> to vector<8x256xbf16>
    %cst_117 = arith.constant dense<0.000000e+00> : vector<4x256xf32>
    %244 = tpu.matmul %242, %243, %cst_117 {dimension_numbers = #tpu.dot_dimension_numbers<[1], [0], [0], [1], [0, 0, 1, 1], [], []>} : vector<4x8xbf16>, vector<8x256xbf16>, vector<4x256xf32> -> vector<4x256xf32>
    %c104 = arith.constant 104 : index
    %c0_118 = arith.constant 0 : index
    %245 = vector.load %arg2[%c104, %c0_118] : memref<456x128xf32, #tpu.memory_space<vmem>>, vector<4x1xf32>
    %cst_119 = arith.constant 0.000000e+00 : f32
    %246 = vector.broadcast %cst_119 : f32 to vector<4x256xf32>
    %247 = arith.cmpf oge, %244, %246 : vector<4x256xf32>
    %248 = vector.broadcast %245 : vector<4x1xf32> to vector<4x256xf32>
    %249 = arith.mulf %248, %244 : vector<4x256xf32>
    %250 = arith.select %247, %244, %249 : vector<4x256xi1>, vector<4x256xf32>
    %cst_120 = arith.constant dense<0.000000e+00> : vector<4xf32>
    %251 = vector.multi_reduction <add>, %250, %cst_120 [1] : vector<4x256xf32> to vector<4xf32>
    %252 = vector.shape_cast %251 : vector<4xf32> to vector<4x1xf32>
    %cst_121 = arith.constant 2.560000e+02 : f32
    %253 = vector.broadcast %cst_121 : f32 to vector<4x1xf32>
    %254 = arith.divf %252, %253 : vector<4x1xf32>
    %255 = vector.broadcast %254 : vector<4x1xf32> to vector<4x256xf32>
    %256 = arith.subf %250, %255 : vector<4x256xf32>
    %257 = arith.mulf %256, %256 : vector<4x256xf32>
    %cst_122 = arith.constant dense<0.000000e+00> : vector<4xf32>
    %258 = vector.multi_reduction <add>, %257, %cst_122 [1] : vector<4x256xf32> to vector<4xf32>
    %259 = vector.shape_cast %258 : vector<4xf32> to vector<4x1xf32>
    %cst_123 = arith.constant 2.560000e+02 : f32
    %260 = vector.broadcast %cst_123 : f32 to vector<4x1xf32>
    %261 = arith.divf %259, %260 : vector<4x1xf32>
    %cst_124 = arith.constant 9.99999974E-6 : f32
    %262 = vector.broadcast %cst_124 : f32 to vector<4x1xf32>
    %263 = arith.addf %261, %262 : vector<4x1xf32>
    %264 = math.rsqrt %263 : vector<4x1xf32>
    %265 = vector.broadcast %264 : vector<4x1xf32> to vector<4x256xf32>
    %266 = arith.mulf %256, %265 : vector<4x256xf32>
    %267 = arith.addf %266, %239 : vector<4x256xf32>
    %c17_i32_125 = arith.constant 17 : i32
    %268 = tpu.dynamic_rotate %267 by %c17_i32_125 dim 1 : vector<4x256xf32>, i32 -> vector<4x256xf32>
    %c0_126 = arith.constant 0 : index
    %c0_127 = arith.constant 0 : index
    %269 = vector.load %arg3[%c0_126, %c0_127] : memref<9x256xf32, #tpu.memory_space<vmem>>, vector<1x256xf32>
    %270 = vector.broadcast %269 : vector<1x256xf32> to vector<4x256xf32>
    %271 = arith.mulf %268, %270 : vector<4x256xf32>
    %c16_i32_128 = arith.constant 16 : i32
    %272 = tpu.dynamic_rotate %267 by %c16_i32_128 dim 1 : vector<4x256xf32>, i32 -> vector<4x256xf32>
    %c1_129 = arith.constant 1 : index
    %c0_130 = arith.constant 0 : index
    %273 = vector.load %arg3[%c1_129, %c0_130] : memref<9x256xf32, #tpu.memory_space<vmem>>, vector<1x256xf32>
    %274 = vector.broadcast %273 : vector<1x256xf32> to vector<4x256xf32>
    %275 = arith.mulf %272, %274 : vector<4x256xf32>
    %c15_i32_131 = arith.constant 15 : i32
    %276 = tpu.dynamic_rotate %267 by %c15_i32_131 dim 1 : vector<4x256xf32>, i32 -> vector<4x256xf32>
    %c2_132 = arith.constant 2 : index
    %c0_133 = arith.constant 0 : index
    %277 = vector.load %arg3[%c2_132, %c0_133] : memref<9x256xf32, #tpu.memory_space<vmem>>, vector<1x256xf32>
    %278 = vector.broadcast %277 : vector<1x256xf32> to vector<4x256xf32>
    %279 = arith.mulf %276, %278 : vector<4x256xf32>
    %c1_i32_134 = arith.constant 1 : i32
    %280 = tpu.dynamic_rotate %267 by %c1_i32_134 dim 1 : vector<4x256xf32>, i32 -> vector<4x256xf32>
    %c3_135 = arith.constant 3 : index
    %c0_136 = arith.constant 0 : index
    %281 = vector.load %arg3[%c3_135, %c0_136] : memref<9x256xf32, #tpu.memory_space<vmem>>, vector<1x256xf32>
    %282 = vector.broadcast %281 : vector<1x256xf32> to vector<4x256xf32>
    %283 = arith.mulf %280, %282 : vector<4x256xf32>
    %c255_i32_137 = arith.constant 255 : i32
    %284 = tpu.dynamic_rotate %267 by %c255_i32_137 dim 1 : vector<4x256xf32>, i32 -> vector<4x256xf32>
    %c5_138 = arith.constant 5 : index
    %c0_139 = arith.constant 0 : index
    %285 = vector.load %arg3[%c5_138, %c0_139] : memref<9x256xf32, #tpu.memory_space<vmem>>, vector<1x256xf32>
    %286 = vector.broadcast %285 : vector<1x256xf32> to vector<4x256xf32>
    %287 = arith.mulf %284, %286 : vector<4x256xf32>
    %c241_i32_140 = arith.constant 241 : i32
    %288 = tpu.dynamic_rotate %267 by %c241_i32_140 dim 1 : vector<4x256xf32>, i32 -> vector<4x256xf32>
    %c6_141 = arith.constant 6 : index
    %c0_142 = arith.constant 0 : index
    %289 = vector.load %arg3[%c6_141, %c0_142] : memref<9x256xf32, #tpu.memory_space<vmem>>, vector<1x256xf32>
    %290 = vector.broadcast %289 : vector<1x256xf32> to vector<4x256xf32>
    %291 = arith.mulf %288, %290 : vector<4x256xf32>
    %c240_i32_143 = arith.constant 240 : i32
    %292 = tpu.dynamic_rotate %267 by %c240_i32_143 dim 1 : vector<4x256xf32>, i32 -> vector<4x256xf32>
    %c7_144 = arith.constant 7 : index
    %c0_145 = arith.constant 0 : index
    %293 = vector.load %arg3[%c7_144, %c0_145] : memref<9x256xf32, #tpu.memory_space<vmem>>, vector<1x256xf32>
    %294 = vector.broadcast %293 : vector<1x256xf32> to vector<4x256xf32>
    %295 = arith.mulf %292, %294 : vector<4x256xf32>
    %c239_i32_146 = arith.constant 239 : i32
    %296 = tpu.dynamic_rotate %267 by %c239_i32_146 dim 1 : vector<4x256xf32>, i32 -> vector<4x256xf32>
    %c8_147 = arith.constant 8 : index
    %c0_148 = arith.constant 0 : index
    %297 = vector.load %arg3[%c8_147, %c0_148] : memref<9x256xf32, #tpu.memory_space<vmem>>, vector<1x256xf32>
    %298 = vector.broadcast %297 : vector<1x256xf32> to vector<4x256xf32>
    %299 = arith.mulf %296, %298 : vector<4x256xf32>
    %300 = tpu.concatenate %271, %275, %279, %283, %267, %287, %291, %295, %299 in 0 : vector<4x256xf32>, vector<4x256xf32>, vector<4x256xf32>, vector<4x256xf32>, vector<4x256xf32>, vector<4x256xf32>, vector<4x256xf32>, vector<4x256xf32>, vector<4x256xf32> -> vector<36x256xf32>
    %301 = arith.truncf %300 : vector<36x256xf32> to vector<36x256xbf16>
    %c128 = arith.constant 128 : index
    %c0_149 = arith.constant 0 : index
    %302 = vector.load %arg2[%c128, %c0_149] : memref<456x128xf32, #tpu.memory_space<vmem>>, vector<8x36xf32>
    %303 = arith.truncf %302 : vector<8x36xf32> to vector<8x36xbf16>
    %cst_150 = arith.constant dense<0.000000e+00> : vector<8x256xf32>
    %304 = tpu.matmul %303, %301, %cst_150 {dimension_numbers = #tpu.dot_dimension_numbers<[1], [0], [0], [1], [0, 0, 1, 1], [], []>} : vector<8x36xbf16>, vector<36x256xbf16>, vector<8x256xf32> -> vector<8x256xf32>
    %c136 = arith.constant 136 : index
    %c0_151 = arith.constant 0 : index
    %305 = vector.load %arg2[%c136, %c0_151] : memref<456x128xf32, #tpu.memory_space<vmem>>, vector<8x1xf32>
    %cst_152 = arith.constant 0.000000e+00 : f32
    %306 = vector.broadcast %cst_152 : f32 to vector<8x256xf32>
    %307 = arith.cmpf oge, %304, %306 : vector<8x256xf32>
    %308 = vector.broadcast %305 : vector<8x1xf32> to vector<8x256xf32>
    %309 = arith.mulf %308, %304 : vector<8x256xf32>
    %310 = arith.select %307, %304, %309 : vector<8x256xi1>, vector<8x256xf32>
    %c424_153 = arith.constant 424 : index
    %c0_154 = arith.constant 0 : index
    %311 = vector.load %arg2[%c424_153, %c0_154] : memref<456x128xf32, #tpu.memory_space<vmem>>, vector<8x8xf32>
    %cst_155 = arith.constant dense<0.000000e+00> : vector<8xf32>
    %312 = vector.multi_reduction <add>, %310, %cst_155 [1] : vector<8x256xf32> to vector<8xf32>
    %313 = vector.shape_cast %312 : vector<8xf32> to vector<8x1xf32>
    %cst_156 = arith.constant 2.560000e+02 : f32
    %314 = vector.broadcast %cst_156 : f32 to vector<8x1xf32>
    %315 = arith.divf %313, %314 : vector<8x1xf32>
    %cst_157 = arith.constant dense<0.000000e+00> : vector<8x1xf32>
    %316 = tpu.matmul %311, %315, %cst_157 {dimension_numbers = #tpu.dot_dimension_numbers<[1], [0], [0], [1], [0, 0, 1, 1], [], []>, precision = #tpu.contract_precision<fp32>} : vector<8x8xf32>, vector<8x1xf32>, vector<8x1xf32> -> vector<8x1xf32>
    %317 = vector.broadcast %316 : vector<8x1xf32> to vector<8x256xf32>
    %318 = arith.subf %310, %317 : vector<8x256xf32>
    %319 = arith.mulf %318, %318 : vector<8x256xf32>
    %cst_158 = arith.constant dense<0.000000e+00> : vector<8xf32>
    %320 = vector.multi_reduction <add>, %319, %cst_158 [1] : vector<8x256xf32> to vector<8xf32>
    %321 = vector.shape_cast %320 : vector<8xf32> to vector<8x1xf32>
    %cst_159 = arith.constant 2.560000e+02 : f32
    %322 = vector.broadcast %cst_159 : f32 to vector<8x1xf32>
    %323 = arith.divf %321, %322 : vector<8x1xf32>
    %cst_160 = arith.constant dense<0.000000e+00> : vector<8x1xf32>
    %324 = tpu.matmul %311, %323, %cst_160 {dimension_numbers = #tpu.dot_dimension_numbers<[1], [0], [0], [1], [0, 0, 1, 1], [], []>, precision = #tpu.contract_precision<fp32>} : vector<8x8xf32>, vector<8x1xf32>, vector<8x1xf32> -> vector<8x1xf32>
    %cst_161 = arith.constant 9.99999974E-6 : f32
    %325 = vector.broadcast %cst_161 : f32 to vector<8x1xf32>
    %326 = arith.addf %324, %325 : vector<8x1xf32>
    %327 = math.rsqrt %326 : vector<8x1xf32>
    %328 = vector.broadcast %327 : vector<8x1xf32> to vector<8x256xf32>
    %329 = arith.mulf %318, %328 : vector<8x256xf32>
    %c144 = arith.constant 144 : index
    %c0_162 = arith.constant 0 : index
    %330 = vector.load %arg2[%c144, %c0_162] : memref<456x128xf32, #tpu.memory_space<vmem>>, vector<8x1xf32>
    %331 = vector.broadcast %330 : vector<8x1xf32> to vector<8x256xf32>
    %332 = arith.mulf %329, %331 : vector<8x256xf32>
    %c152 = arith.constant 152 : index
    %c0_163 = arith.constant 0 : index
    %333 = vector.load %arg2[%c152, %c0_163] : memref<456x128xf32, #tpu.memory_space<vmem>>, vector<8x1xf32>
    %334 = vector.broadcast %333 : vector<8x1xf32> to vector<8x256xf32>
    %335 = arith.addf %332, %334 : vector<8x256xf32>
    %c17_i32_164 = arith.constant 17 : i32
    %336 = tpu.dynamic_rotate %335 by %c17_i32_164 dim 1 : vector<8x256xf32>, i32 -> vector<8x256xf32>
    %c0_165 = arith.constant 0 : index
    %c0_166 = arith.constant 0 : index
    %337 = vector.load %arg4[%c0_165, %c0_166] : memref<9x256xf32, #tpu.memory_space<vmem>>, vector<1x256xf32>
    %338 = vector.broadcast %337 : vector<1x256xf32> to vector<8x256xf32>
    %339 = arith.addf %336, %338 : vector<8x256xf32>
    %340 = arith.maximumf %335, %339 : vector<8x256xf32>
    %c16_i32_167 = arith.constant 16 : i32
    %341 = tpu.dynamic_rotate %335 by %c16_i32_167 dim 1 : vector<8x256xf32>, i32 -> vector<8x256xf32>
    %c1_168 = arith.constant 1 : index
    %c0_169 = arith.constant 0 : index
    %342 = vector.load %arg4[%c1_168, %c0_169] : memref<9x256xf32, #tpu.memory_space<vmem>>, vector<1x256xf32>
    %343 = vector.broadcast %342 : vector<1x256xf32> to vector<8x256xf32>
    %344 = arith.addf %341, %343 : vector<8x256xf32>
    %345 = arith.maximumf %340, %344 : vector<8x256xf32>
    %c15_i32_170 = arith.constant 15 : i32
    %346 = tpu.dynamic_rotate %335 by %c15_i32_170 dim 1 : vector<8x256xf32>, i32 -> vector<8x256xf32>
    %c2_171 = arith.constant 2 : index
    %c0_172 = arith.constant 0 : index
    %347 = vector.load %arg4[%c2_171, %c0_172] : memref<9x256xf32, #tpu.memory_space<vmem>>, vector<1x256xf32>
    %348 = vector.broadcast %347 : vector<1x256xf32> to vector<8x256xf32>
    %349 = arith.addf %346, %348 : vector<8x256xf32>
    %350 = arith.maximumf %345, %349 : vector<8x256xf32>
    %c1_i32_173 = arith.constant 1 : i32
    %351 = tpu.dynamic_rotate %335 by %c1_i32_173 dim 1 : vector<8x256xf32>, i32 -> vector<8x256xf32>
    %c3_174 = arith.constant 3 : index
    %c0_175 = arith.constant 0 : index
    %352 = vector.load %arg4[%c3_174, %c0_175] : memref<9x256xf32, #tpu.memory_space<vmem>>, vector<1x256xf32>
    %353 = vector.broadcast %352 : vector<1x256xf32> to vector<8x256xf32>
    %354 = arith.addf %351, %353 : vector<8x256xf32>
    %355 = arith.maximumf %350, %354 : vector<8x256xf32>
    %c255_i32_176 = arith.constant 255 : i32
    %356 = tpu.dynamic_rotate %335 by %c255_i32_176 dim 1 : vector<8x256xf32>, i32 -> vector<8x256xf32>
    %c5_177 = arith.constant 5 : index
    %c0_178 = arith.constant 0 : index
    %357 = vector.load %arg4[%c5_177, %c0_178] : memref<9x256xf32, #tpu.memory_space<vmem>>, vector<1x256xf32>
    %358 = vector.broadcast %357 : vector<1x256xf32> to vector<8x256xf32>
    %359 = arith.addf %356, %358 : vector<8x256xf32>
    %360 = arith.maximumf %355, %359 : vector<8x256xf32>
    %c241_i32_179 = arith.constant 241 : i32
    %361 = tpu.dynamic_rotate %335 by %c241_i32_179 dim 1 : vector<8x256xf32>, i32 -> vector<8x256xf32>
    %c6_180 = arith.constant 6 : index
    %c0_181 = arith.constant 0 : index
    %362 = vector.load %arg4[%c6_180, %c0_181] : memref<9x256xf32, #tpu.memory_space<vmem>>, vector<1x256xf32>
    %363 = vector.broadcast %362 : vector<1x256xf32> to vector<8x256xf32>
    %364 = arith.addf %361, %363 : vector<8x256xf32>
    %365 = arith.maximumf %360, %364 : vector<8x256xf32>
    %c240_i32_182 = arith.constant 240 : i32
    %366 = tpu.dynamic_rotate %335 by %c240_i32_182 dim 1 : vector<8x256xf32>, i32 -> vector<8x256xf32>
    %c7_183 = arith.constant 7 : index
    %c0_184 = arith.constant 0 : index
    %367 = vector.load %arg4[%c7_183, %c0_184] : memref<9x256xf32, #tpu.memory_space<vmem>>, vector<1x256xf32>
    %368 = vector.broadcast %367 : vector<1x256xf32> to vector<8x256xf32>
    %369 = arith.addf %366, %368 : vector<8x256xf32>
    %370 = arith.maximumf %365, %369 : vector<8x256xf32>
    %c239_i32_185 = arith.constant 239 : i32
    %371 = tpu.dynamic_rotate %335 by %c239_i32_185 dim 1 : vector<8x256xf32>, i32 -> vector<8x256xf32>
    %c8_186 = arith.constant 8 : index
    %c0_187 = arith.constant 0 : index
    %372 = vector.load %arg4[%c8_186, %c0_187] : memref<9x256xf32, #tpu.memory_space<vmem>>, vector<1x256xf32>
    %373 = vector.broadcast %372 : vector<1x256xf32> to vector<8x256xf32>
    %374 = arith.addf %371, %373 : vector<8x256xf32>
    %375 = arith.maximumf %370, %374 : vector<8x256xf32>
    %c160 = arith.constant 160 : index
    %c0_188 = arith.constant 0 : index
    %376 = vector.load %arg2[%c160, %c0_188] : memref<456x128xf32, #tpu.memory_space<vmem>>, vector<8x8xf32>
    %377 = arith.truncf %376 : vector<8x8xf32> to vector<8x8xbf16>
    %378 = arith.truncf %375 : vector<8x256xf32> to vector<8x256xbf16>
    %cst_189 = arith.constant dense<0.000000e+00> : vector<8x256xf32>
    %379 = tpu.matmul %377, %378, %cst_189 {dimension_numbers = #tpu.dot_dimension_numbers<[1], [0], [0], [1], [0, 0, 1, 1], [], []>} : vector<8x8xbf16>, vector<8x256xbf16>, vector<8x256xf32> -> vector<8x256xf32>
    %c168 = arith.constant 168 : index
    %c0_190 = arith.constant 0 : index
    %380 = vector.load %arg2[%c168, %c0_190] : memref<456x128xf32, #tpu.memory_space<vmem>>, vector<8x1xf32>
    %cst_191 = arith.constant 0.000000e+00 : f32
    %381 = vector.broadcast %cst_191 : f32 to vector<8x256xf32>
    %382 = arith.cmpf oge, %379, %381 : vector<8x256xf32>
    %383 = vector.broadcast %380 : vector<8x1xf32> to vector<8x256xf32>
    %384 = arith.mulf %383, %379 : vector<8x256xf32>
    %385 = arith.select %382, %379, %384 : vector<8x256xi1>, vector<8x256xf32>
    %cst_192 = arith.constant dense<0.000000e+00> : vector<8xf32>
    %386 = vector.multi_reduction <add>, %385, %cst_192 [1] : vector<8x256xf32> to vector<8xf32>
    %387 = vector.shape_cast %386 : vector<8xf32> to vector<8x1xf32>
    %cst_193 = arith.constant 2.560000e+02 : f32
    %388 = vector.broadcast %cst_193 : f32 to vector<8x1xf32>
    %389 = arith.divf %387, %388 : vector<8x1xf32>
    %c176 = arith.constant 176 : index
    %c0_194 = arith.constant 0 : index
    %390 = vector.load %arg2[%c176, %c0_194] : memref<456x128xf32, #tpu.memory_space<vmem>>, vector<2x8xf32>
    %cst_195 = arith.constant dense<0.000000e+00> : vector<2x1xf32>
    %391 = tpu.matmul %390, %389, %cst_195 {dimension_numbers = #tpu.dot_dimension_numbers<[1], [0], [0], [1], [0, 0, 1, 1], [], []>, precision = #tpu.contract_precision<fp32>} : vector<2x8xf32>, vector<8x1xf32>, vector<2x1xf32> -> vector<2x1xf32>
    %cst_196 = arith.constant 0.000000e+00 : f32
    %392 = vector.broadcast %cst_196 : f32 to vector<2x1xf32>
    %393 = arith.maximumf %391, %392 : vector<2x1xf32>
    %c184 = arith.constant 184 : index
    %c0_197 = arith.constant 0 : index
    %394 = vector.load %arg2[%c184, %c0_197] : memref<456x128xf32, #tpu.memory_space<vmem>>, vector<8x2xf32>
    %cst_198 = arith.constant dense<0.000000e+00> : vector<8x1xf32>
    %395 = tpu.matmul %394, %393, %cst_198 {dimension_numbers = #tpu.dot_dimension_numbers<[1], [0], [0], [1], [0, 0, 1, 1], [], []>, precision = #tpu.contract_precision<fp32>} : vector<8x2xf32>, vector<2x1xf32>, vector<8x1xf32> -> vector<8x1xf32>
    %396 = arith.negf %395 : vector<8x1xf32>
    %397 = math.exp %396 : vector<8x1xf32>
    %cst_199 = arith.constant 1.000000e+00 : f32
    %398 = vector.broadcast %cst_199 : f32 to vector<8x1xf32>
    %399 = arith.addf %398, %397 : vector<8x1xf32>
    %400 = arith.divf %398, %399 : vector<8x1xf32>
    %401 = vector.broadcast %400 : vector<8x1xf32> to vector<8x256xf32>
    %402 = arith.mulf %385, %401 : vector<8x256xf32>
    %cst_200 = arith.constant dense<0.000000e+00> : vector<8xf32>
    %403 = vector.multi_reduction <add>, %36, %cst_200 [1] : vector<8x256xf32> to vector<8xf32>
    %404 = vector.shape_cast %403 : vector<8xf32> to vector<8x1xf32>
    %cst_201 = arith.constant 2.560000e+02 : f32
    %405 = vector.broadcast %cst_201 : f32 to vector<8x1xf32>
    %406 = arith.divf %404, %405 : vector<8x1xf32>
    %c192 = arith.constant 192 : index
    %c0_202 = arith.constant 0 : index
    %407 = vector.load %arg2[%c192, %c0_202] : memref<456x128xf32, #tpu.memory_space<vmem>>, vector<2x8xf32>
    %cst_203 = arith.constant dense<0.000000e+00> : vector<2x1xf32>
    %408 = tpu.matmul %407, %406, %cst_203 {dimension_numbers = #tpu.dot_dimension_numbers<[1], [0], [0], [1], [0, 0, 1, 1], [], []>, precision = #tpu.contract_precision<fp32>} : vector<2x8xf32>, vector<8x1xf32>, vector<2x1xf32> -> vector<2x1xf32>
    %cst_204 = arith.constant 0.000000e+00 : f32
    %409 = vector.broadcast %cst_204 : f32 to vector<2x1xf32>
    %410 = arith.maximumf %408, %409 : vector<2x1xf32>
    %c200 = arith.constant 200 : index
    %c0_205 = arith.constant 0 : index
    %411 = vector.load %arg2[%c200, %c0_205] : memref<456x128xf32, #tpu.memory_space<vmem>>, vector<8x2xf32>
    %cst_206 = arith.constant dense<0.000000e+00> : vector<8x1xf32>
    %412 = tpu.matmul %411, %410, %cst_206 {dimension_numbers = #tpu.dot_dimension_numbers<[1], [0], [0], [1], [0, 0, 1, 1], [], []>, precision = #tpu.contract_precision<fp32>} : vector<8x2xf32>, vector<2x1xf32>, vector<8x1xf32> -> vector<8x1xf32>
    %413 = arith.negf %412 : vector<8x1xf32>
    %414 = math.exp %413 : vector<8x1xf32>
    %cst_207 = arith.constant 1.000000e+00 : f32
    %415 = vector.broadcast %cst_207 : f32 to vector<8x1xf32>
    %416 = arith.addf %415, %414 : vector<8x1xf32>
    %417 = arith.divf %415, %416 : vector<8x1xf32>
    %418 = vector.broadcast %417 : vector<8x1xf32> to vector<8x256xf32>
    %419 = arith.mulf %36, %418 : vector<8x256xf32>
    %420 = arith.addf %36, %419 : vector<8x256xf32>
    %421 = arith.addf %420, %385 : vector<8x256xf32>
    %422 = arith.addf %421, %402 : vector<8x256xf32>
    %c208 = arith.constant 208 : index
    %c0_208 = arith.constant 0 : index
    %423 = vector.load %arg2[%c208, %c0_208] : memref<456x128xf32, #tpu.memory_space<vmem>>, vector<8x1xf32>
    %cst_209 = arith.constant 0.000000e+00 : f32
    %424 = vector.broadcast %cst_209 : f32 to vector<8x256xf32>
    %425 = arith.cmpf oge, %422, %424 : vector<8x256xf32>
    %426 = vector.broadcast %423 : vector<8x1xf32> to vector<8x256xf32>
    %427 = arith.mulf %426, %422 : vector<8x256xf32>
    %428 = arith.select %425, %422, %427 : vector<8x256xi1>, vector<8x256xf32>
    %429 = arith.addf %100, %177 : vector<8x256xf32>
    %430 = arith.addf %429, %428 : vector<8x256xf32>
    %431 = arith.addf %36, %430 : vector<8x256xf32>
    %c17_i32_210 = arith.constant 17 : i32
    %432 = tpu.dynamic_rotate %431 by %c17_i32_210 dim 1 : vector<8x256xf32>, i32 -> vector<8x256xf32>
    %c0_211 = arith.constant 0 : index
    %c0_212 = arith.constant 0 : index
    %433 = vector.load %arg3[%c0_211, %c0_212] : memref<9x256xf32, #tpu.memory_space<vmem>>, vector<1x256xf32>
    %434 = vector.broadcast %433 : vector<1x256xf32> to vector<8x256xf32>
    %435 = arith.mulf %432, %434 : vector<8x256xf32>
    %c16_i32_213 = arith.constant 16 : i32
    %436 = tpu.dynamic_rotate %431 by %c16_i32_213 dim 1 : vector<8x256xf32>, i32 -> vector<8x256xf32>
    %c1_214 = arith.constant 1 : index
    %c0_215 = arith.constant 0 : index
    %437 = vector.load %arg3[%c1_214, %c0_215] : memref<9x256xf32, #tpu.memory_space<vmem>>, vector<1x256xf32>
    %438 = vector.broadcast %437 : vector<1x256xf32> to vector<8x256xf32>
    %439 = arith.mulf %436, %438 : vector<8x256xf32>
    %c15_i32_216 = arith.constant 15 : i32
    %440 = tpu.dynamic_rotate %431 by %c15_i32_216 dim 1 : vector<8x256xf32>, i32 -> vector<8x256xf32>
    %c2_217 = arith.constant 2 : index
    %c0_218 = arith.constant 0 : index
    %441 = vector.load %arg3[%c2_217, %c0_218] : memref<9x256xf32, #tpu.memory_space<vmem>>, vector<1x256xf32>
    %442 = vector.broadcast %441 : vector<1x256xf32> to vector<8x256xf32>
    %443 = arith.mulf %440, %442 : vector<8x256xf32>
    %c1_i32_219 = arith.constant 1 : i32
    %444 = tpu.dynamic_rotate %431 by %c1_i32_219 dim 1 : vector<8x256xf32>, i32 -> vector<8x256xf32>
    %c3_220 = arith.constant 3 : index
    %c0_221 = arith.constant 0 : index
    %445 = vector.load %arg3[%c3_220, %c0_221] : memref<9x256xf32, #tpu.memory_space<vmem>>, vector<1x256xf32>
    %446 = vector.broadcast %445 : vector<1x256xf32> to vector<8x256xf32>
    %447 = arith.mulf %444, %446 : vector<8x256xf32>
    %c255_i32_222 = arith.constant 255 : i32
    %448 = tpu.dynamic_rotate %431 by %c255_i32_222 dim 1 : vector<8x256xf32>, i32 -> vector<8x256xf32>
    %c5_223 = arith.constant 5 : index
    %c0_224 = arith.constant 0 : index
    %449 = vector.load %arg3[%c5_223, %c0_224] : memref<9x256xf32, #tpu.memory_space<vmem>>, vector<1x256xf32>
    %450 = vector.broadcast %449 : vector<1x256xf32> to vector<8x256xf32>
    %451 = arith.mulf %448, %450 : vector<8x256xf32>
    %c241_i32_225 = arith.constant 241 : i32
    %452 = tpu.dynamic_rotate %431 by %c241_i32_225 dim 1 : vector<8x256xf32>, i32 -> vector<8x256xf32>
    %c6_226 = arith.constant 6 : index
    %c0_227 = arith.constant 0 : index
    %453 = vector.load %arg3[%c6_226, %c0_227] : memref<9x256xf32, #tpu.memory_space<vmem>>, vector<1x256xf32>
    %454 = vector.broadcast %453 : vector<1x256xf32> to vector<8x256xf32>
    %455 = arith.mulf %452, %454 : vector<8x256xf32>
    %c240_i32_228 = arith.constant 240 : i32
    %456 = tpu.dynamic_rotate %431 by %c240_i32_228 dim 1 : vector<8x256xf32>, i32 -> vector<8x256xf32>
    %c7_229 = arith.constant 7 : index
    %c0_230 = arith.constant 0 : index
    %457 = vector.load %arg3[%c7_229, %c0_230] : memref<9x256xf32, #tpu.memory_space<vmem>>, vector<1x256xf32>
    %458 = vector.broadcast %457 : vector<1x256xf32> to vector<8x256xf32>
    %459 = arith.mulf %456, %458 : vector<8x256xf32>
    %c239_i32_231 = arith.constant 239 : i32
    %460 = tpu.dynamic_rotate %431 by %c239_i32_231 dim 1 : vector<8x256xf32>, i32 -> vector<8x256xf32>
    %c8_232 = arith.constant 8 : index
    %c0_233 = arith.constant 0 : index
    %461 = vector.load %arg3[%c8_232, %c0_233] : memref<9x256xf32, #tpu.memory_space<vmem>>, vector<1x256xf32>
    %462 = vector.broadcast %461 : vector<1x256xf32> to vector<8x256xf32>
    %463 = arith.mulf %460, %462 : vector<8x256xf32>
    %464 = tpu.concatenate %435, %439, %443, %447, %431, %451, %455, %459, %463 in 0 : vector<8x256xf32>, vector<8x256xf32>, vector<8x256xf32>, vector<8x256xf32>, vector<8x256xf32>, vector<8x256xf32>, vector<8x256xf32>, vector<8x256xf32>, vector<8x256xf32> -> vector<72x256xf32>
    %465 = arith.truncf %464 : vector<72x256xf32> to vector<72x256xbf16>
    %c216 = arith.constant 216 : index
    %c0_234 = arith.constant 0 : index
    %466 = vector.load %arg2[%c216, %c0_234] : memref<456x128xf32, #tpu.memory_space<vmem>>, vector<24x72xf32>
    %467 = arith.truncf %466 : vector<24x72xf32> to vector<24x72xbf16>
    %cst_235 = arith.constant dense<0.000000e+00> : vector<24x256xf32>
    %468 = tpu.matmul %467, %465, %cst_235 {dimension_numbers = #tpu.dot_dimension_numbers<[1], [0], [0], [1], [0, 0, 1, 1], [], []>} : vector<24x72xbf16>, vector<72x256xbf16>, vector<24x256xf32> -> vector<24x256xf32>
    %c240 = arith.constant 240 : index
    %c0_236 = arith.constant 0 : index
    %469 = vector.load %arg2[%c240, %c0_236] : memref<456x128xf32, #tpu.memory_space<vmem>>, vector<24x1xf32>
    %cst_237 = arith.constant 0.000000e+00 : f32
    %470 = vector.broadcast %cst_237 : f32 to vector<24x256xf32>
    %471 = arith.cmpf oge, %468, %470 : vector<24x256xf32>
    %472 = vector.broadcast %469 : vector<24x1xf32> to vector<24x256xf32>
    %473 = arith.mulf %472, %468 : vector<24x256xf32>
    %474 = arith.select %471, %468, %473 : vector<24x256xi1>, vector<24x256xf32>
    %c432 = arith.constant 432 : index
    %c0_238 = arith.constant 0 : index
    %475 = vector.load %arg2[%c432, %c0_238] : memref<456x128xf32, #tpu.memory_space<vmem>>, vector<24x24xf32>
    %cst_239 = arith.constant dense<0.000000e+00> : vector<24xf32>
    %476 = vector.multi_reduction <add>, %474, %cst_239 [1] : vector<24x256xf32> to vector<24xf32>
    %477 = vector.shape_cast %476 : vector<24xf32> to vector<24x1xf32>
    %cst_240 = arith.constant 2.560000e+02 : f32
    %478 = vector.broadcast %cst_240 : f32 to vector<24x1xf32>
    %479 = arith.divf %477, %478 : vector<24x1xf32>
    %cst_241 = arith.constant dense<0.000000e+00> : vector<24x1xf32>
    %480 = tpu.matmul %475, %479, %cst_241 {dimension_numbers = #tpu.dot_dimension_numbers<[1], [0], [0], [1], [0, 0, 1, 1], [], []>, precision = #tpu.contract_precision<fp32>} : vector<24x24xf32>, vector<24x1xf32>, vector<24x1xf32> -> vector<24x1xf32>
    %481 = vector.broadcast %480 : vector<24x1xf32> to vector<24x256xf32>
    %482 = arith.subf %474, %481 : vector<24x256xf32>
    %483 = arith.mulf %482, %482 : vector<24x256xf32>
    %cst_242 = arith.constant dense<0.000000e+00> : vector<24xf32>
    %484 = vector.multi_reduction <add>, %483, %cst_242 [1] : vector<24x256xf32> to vector<24xf32>
    %485 = vector.shape_cast %484 : vector<24xf32> to vector<24x1xf32>
    %cst_243 = arith.constant 2.560000e+02 : f32
    %486 = vector.broadcast %cst_243 : f32 to vector<24x1xf32>
    %487 = arith.divf %485, %486 : vector<24x1xf32>
    %cst_244 = arith.constant dense<0.000000e+00> : vector<24x1xf32>
    %488 = tpu.matmul %475, %487, %cst_244 {dimension_numbers = #tpu.dot_dimension_numbers<[1], [0], [0], [1], [0, 0, 1, 1], [], []>, precision = #tpu.contract_precision<fp32>} : vector<24x24xf32>, vector<24x1xf32>, vector<24x1xf32> -> vector<24x1xf32>
    %cst_245 = arith.constant 9.99999974E-6 : f32
    %489 = vector.broadcast %cst_245 : f32 to vector<24x1xf32>
    %490 = arith.addf %488, %489 : vector<24x1xf32>
    %491 = math.rsqrt %490 : vector<24x1xf32>
    %492 = vector.broadcast %491 : vector<24x1xf32> to vector<24x256xf32>
    %493 = arith.mulf %482, %492 : vector<24x256xf32>
    %c264 = arith.constant 264 : index
    %c0_246 = arith.constant 0 : index
    %494 = vector.load %arg2[%c264, %c0_246] : memref<456x128xf32, #tpu.memory_space<vmem>>, vector<24x1xf32>
    %495 = vector.broadcast %494 : vector<24x1xf32> to vector<24x256xf32>
    %496 = arith.mulf %493, %495 : vector<24x256xf32>
    %c288 = arith.constant 288 : index
    %c0_247 = arith.constant 0 : index
    %497 = vector.load %arg2[%c288, %c0_247] : memref<456x128xf32, #tpu.memory_space<vmem>>, vector<24x1xf32>
    %498 = vector.broadcast %497 : vector<24x1xf32> to vector<24x256xf32>
    %499 = arith.addf %496, %498 : vector<24x256xf32>
    %500 = tpu.concatenate %499, %431 in 0 : vector<24x256xf32>, vector<8x256xf32> -> vector<32x256xf32>
    %cst_248 = arith.constant dense<0.000000e+00> : vector<32xf32>
    %501 = vector.multi_reduction <add>, %500, %cst_248 [1] : vector<32x256xf32> to vector<32xf32>
    %502 = vector.shape_cast %501 : vector<32xf32> to vector<32x1xf32>
    %cst_249 = arith.constant 2.560000e+02 : f32
    %503 = vector.broadcast %cst_249 : f32 to vector<32x1xf32>
    %504 = arith.divf %502, %503 : vector<32x1xf32>
    %c312 = arith.constant 312 : index
    %c0_250 = arith.constant 0 : index
    %505 = vector.load %arg2[%c312, %c0_250] : memref<456x128xf32, #tpu.memory_space<vmem>>, vector<4x32xf32>
    %cst_251 = arith.constant dense<0.000000e+00> : vector<4x1xf32>
    %506 = tpu.matmul %505, %504, %cst_251 {dimension_numbers = #tpu.dot_dimension_numbers<[1], [0], [0], [1], [0, 0, 1, 1], [], []>, precision = #tpu.contract_precision<fp32>} : vector<4x32xf32>, vector<32x1xf32>, vector<4x1xf32> -> vector<4x1xf32>
    %cst_252 = arith.constant 0.000000e+00 : f32
    %507 = vector.broadcast %cst_252 : f32 to vector<4x1xf32>
    %508 = arith.maximumf %506, %507 : vector<4x1xf32>
    %c320 = arith.constant 320 : index
    %c0_253 = arith.constant 0 : index
    %509 = vector.load %arg2[%c320, %c0_253] : memref<456x128xf32, #tpu.memory_space<vmem>>, vector<32x4xf32>
    %cst_254 = arith.constant dense<0.000000e+00> : vector<32x1xf32>
    %510 = tpu.matmul %509, %508, %cst_254 {dimension_numbers = #tpu.dot_dimension_numbers<[1], [0], [0], [1], [0, 0, 1, 1], [], []>, precision = #tpu.contract_precision<fp32>} : vector<32x4xf32>, vector<4x1xf32>, vector<32x1xf32> -> vector<32x1xf32>
    %511 = arith.negf %510 : vector<32x1xf32>
    %512 = math.exp %511 : vector<32x1xf32>
    %cst_255 = arith.constant 1.000000e+00 : f32
    %513 = vector.broadcast %cst_255 : f32 to vector<32x1xf32>
    %514 = arith.addf %513, %512 : vector<32x1xf32>
    %515 = arith.divf %513, %514 : vector<32x1xf32>
    %516 = vector.broadcast %515 : vector<32x1xf32> to vector<32x256xf32>
    %517 = arith.mulf %500, %516 : vector<32x256xf32>
    %cst_256 = arith.constant dense<0.000000e+00> : vector<32xf32>
    %518 = vector.multi_reduction <add>, %1, %cst_256 [1] : vector<32x256xf32> to vector<32xf32>
    %519 = vector.shape_cast %518 : vector<32xf32> to vector<32x1xf32>
    %cst_257 = arith.constant 2.560000e+02 : f32
    %520 = vector.broadcast %cst_257 : f32 to vector<32x1xf32>
    %521 = arith.divf %519, %520 : vector<32x1xf32>
    %c352 = arith.constant 352 : index
    %c0_258 = arith.constant 0 : index
    %522 = vector.load %arg2[%c352, %c0_258] : memref<456x128xf32, #tpu.memory_space<vmem>>, vector<4x32xf32>
    %cst_259 = arith.constant dense<0.000000e+00> : vector<4x1xf32>
    %523 = tpu.matmul %522, %521, %cst_259 {dimension_numbers = #tpu.dot_dimension_numbers<[1], [0], [0], [1], [0, 0, 1, 1], [], []>, precision = #tpu.contract_precision<fp32>} : vector<4x32xf32>, vector<32x1xf32>, vector<4x1xf32> -> vector<4x1xf32>
    %cst_260 = arith.constant 0.000000e+00 : f32
    %524 = vector.broadcast %cst_260 : f32 to vector<4x1xf32>
    %525 = arith.maximumf %523, %524 : vector<4x1xf32>
    %c360 = arith.constant 360 : index
    %c0_261 = arith.constant 0 : index
    %526 = vector.load %arg2[%c360, %c0_261] : memref<456x128xf32, #tpu.memory_space<vmem>>, vector<32x4xf32>
    %cst_262 = arith.constant dense<0.000000e+00> : vector<32x1xf32>
    %527 = tpu.matmul %526, %525, %cst_262 {dimension_numbers = #tpu.dot_dimension_numbers<[1], [0], [0], [1], [0, 0, 1, 1], [], []>, precision = #tpu.contract_precision<fp32>} : vector<32x4xf32>, vector<4x1xf32>, vector<32x1xf32> -> vector<32x1xf32>
    %528 = arith.negf %527 : vector<32x1xf32>
    %529 = math.exp %528 : vector<32x1xf32>
    %cst_263 = arith.constant 1.000000e+00 : f32
    %530 = vector.broadcast %cst_263 : f32 to vector<32x1xf32>
    %531 = arith.addf %530, %529 : vector<32x1xf32>
    %532 = arith.divf %530, %531 : vector<32x1xf32>
    %533 = vector.broadcast %532 : vector<32x1xf32> to vector<32x256xf32>
    %534 = arith.mulf %1, %533 : vector<32x256xf32>
    %535 = arith.addf %1, %534 : vector<32x256xf32>
    %536 = arith.addf %535, %500 : vector<32x256xf32>
    %537 = arith.addf %536, %517 : vector<32x256xf32>
    %c392 = arith.constant 392 : index
    %c0_264 = arith.constant 0 : index
    %538 = vector.load %arg2[%c392, %c0_264] : memref<456x128xf32, #tpu.memory_space<vmem>>, vector<32x1xf32>
    %cst_265 = arith.constant 0.000000e+00 : f32
    %539 = vector.broadcast %cst_265 : f32 to vector<32x256xf32>
    %540 = arith.cmpf oge, %537, %539 : vector<32x256xf32>
    %541 = vector.broadcast %538 : vector<32x1xf32> to vector<32x256xf32>
    %542 = arith.mulf %541, %537 : vector<32x256xf32>
    %543 = arith.select %540, %537, %542 : vector<32x256xi1>, vector<32x256xf32>
    %c0_266 = arith.constant 0 : index
    %c0_267 = arith.constant 0 : index
    %c0_268 = arith.constant 0 : index
    %544 = vector.load %arg5[%c0_266, %c0_267, %c0_268] : memref<1x32x256xf32, #tpu.memory_space<vmem>>, vector<1x32x256xf32>
    %545 = vector.shape_cast %544 : vector<1x32x256xf32> to vector<32x256xf32>
    %546 = vector.shape_cast %543 : vector<32x256xf32> to vector<1x32x256xf32>
    tpu.vector_store %arg5[%c0_266, %c0_267, %c0_268], %546 {strides = array<i32>} : memref<1x32x256xf32, #tpu.memory_space<vmem>>, vector<1x32x256xf32>,
    return
  }
  func.func @transform_0(%arg0: i32) -> (i32, i32, i32) {
    %c0_i32 = arith.constant 0 : i32
    %c0_i32_0 = arith.constant 0 : i32
    %c0_i32_1 = arith.constant 0 : i32
    return %arg0, %c0_i32, %c0_i32_0 : i32, i32, i32
  }
  func.func @transform_1(%arg0: i32) -> (i32, i32) {
    %c0_i32 = arith.constant 0 : i32
    %c0_i32_0 = arith.constant 0 : i32
    %c0_i32_1 = arith.constant 0 : i32
    return %c0_i32, %c0_i32_0 : i32, i32
  }
  func.func @transform_2(%arg0: i32) -> (i32, i32) {
    %c0_i32 = arith.constant 0 : i32
    %c0_i32_0 = arith.constant 0 : i32
    %c0_i32_1 = arith.constant 0 : i32
    return %c0_i32, %c0_i32_0 : i32, i32
  }
  func.func @transform_3(%arg0: i32) -> (i32, i32) {
    %c0_i32 = arith.constant 0 : i32
    %c0_i32_0 = arith.constant 0 : i32
    %c0_i32_1 = arith.constant 0 : i32
    return %c0_i32, %c0_i32_0 : i32, i32
  }
  func.func @transform_4(%arg0: i32) -> (i32, i32, i32) {
    %c0_i32 = arith.constant 0 : i32
    %c0_i32_0 = arith.constant 0 : i32
    %c0_i32_1 = arith.constant 0 : i32
    return %arg0, %c0_i32, %c0_i32_0 : i32, i32, i32
  }
}

</mosaic_0001>

<llo_original>
// kernel: _lambda_.1
$region0: #{_lambda_.1}
  #allocation0 [shape = 'u32[]', space=smem, size = 0x4, offset = 0x4, fixed_abs, tag = 'smem constant byte address 0x4 - core index']
  #allocation1 [shape = 'u32[72,128]{1,0:T(1,128)}', space=vmem, size = 0x9000, scoped, tag = 'internal scratch']
  %s0 = inlined_call_operand.vmem [shape: f32[2,32,256], index: 0, kind: input, shape index: {}]
  %s1 = inlined_call_operand.vmem [shape: f32[456,128], index: 1, kind: input, shape index: {}]
  %s2 = inlined_call_operand.vmem [shape: f32[9,256], index: 2, kind: input, shape index: {}]
  %s3 = inlined_call_operand.vmem [shape: f32[9,256], index: 3, kind: input, shape index: {}]
  %s4 = inlined_call_operand.vmem [shape: f32[2,32,256], index: 4, kind: output, shape index: {}]
  %s5 = sld [smem:[#allocation0]]
  $region49: #{_lambda_.1} parent=0
    _
  %s7 = ssub.s32 1, %s5
  %s8 = scalar_select 0, %s7, %s5
  loop: start=0, step=1, limit=4
  $region2: #{_lambda_.1} parent=0 // loop_pre_header
    _
  $region3: #{_lambda_.1} parent=0 // loop_header
    %s10 = sphi 0, %s14
    %p11 = scmp.ge.s32.totalorder %s10, 4
    %s20 = sphi 0, %s22
    %s23 = sphi 0, %s20
    %s24 = sphi 0, %s23
    %s40 = sphi 0, %s24
    %s44 = sphi 0, %s44
    %s46 = sphi 0, %s44
    %s47 = sphi 0, %s46
    %s61 = sphi 0, %s47
    %s65 = sphi 0, %s65
    %s67 = sphi 0, %s65
    %s68 = sphi 0, %s67
    %s82 = sphi 0, %s68
    %s86 = sphi 0, %s86
    %s88 = sphi 0, %s86
    %s89 = sphi 0, %s88
    %s103 = sphi 0, %s89
    %s109 = sphi 0, %s111
    %s112 = sphi 0, %s109
    %s113 = sphi 0, %s112
    %s129 = sphi 0, %s113
  $region4: #{_lambda_.1} parent=0 // loop_header_branch
    %13 = sbr.rel (%p11) target = $region8
  $region5: #{_lambda_.1} parent=0 // loop_body
    %s15 = ssub.s32 %s10, 1
    %s16 = ssub.s32 %s10, 2
    %s17 = sadd.s32 %s10, 1
    %s18 = ssub.s32 %s10, %s17
    %p19 = scmp.eq.s32.totalorder %s18, 0
    %s21 = sadd.s32 %s20, 1
    %s22 = scalar_select %p19, %s20, %s21
    %p25 = pneg %p19
    %p26 = scmp.eq.s32.totalorder %s10, 1
    %p27 = por %p25, %p26
    %p28 = scmp.ne.s32.totalorder %s20, %s23
    %p29 = scmp.eq.s32.totalorder %s10, 0
    %p30 = por %p28, %p29
    %p31 = scmp.ne.s32.totalorder %s20, %s23
    %p32 = scmp.eq.s32.totalorder %s15, 1
    %p33 = por %p31, %p32
    %p34 = scmp.ne.s32.totalorder %s23, %s24
    %p35 = scmp.eq.s32.totalorder %s15, 0
    %p36 = por %p34, %p35
    %p37 = scmp.ne.s32.totalorder %s23, %s24
    %p38 = scmp.eq.s32.totalorder %s16, 1
    %p39 = por %p37, %p38
    %p41 = scmp.ne.s32.totalorder %s24, %s40
    %p42 = scmp.eq.s32.totalorder %s16, 0
    %p43 = por %p41, %p42
    %s45 = sadd.s32 %s44, 1
    %p48 = scmp.eq.s32.totalorder %s10, 1
    %p49 = scmp.ne.s32.totalorder %s44, %s46
    %p50 = scmp.eq.s32.totalorder %s10, 0
    %p51 = por %p49, %p50
    %p52 = scmp.ne.s32.totalorder %s44, %s46
    %p53 = scmp.eq.s32.totalorder %s15, 1
    %p54 = por %p52, %p53
    %p55 = scmp.ne.s32.totalorder %s46, %s47
    %p56 = scmp.eq.s32.totalorder %s15, 0
    %p57 = por %p55, %p56
    %p58 = scmp.ne.s32.totalorder %s46, %s47
    %p59 = scmp.eq.s32.totalorder %s16, 1
    %p60 = por %p58, %p59
    %p62 = scmp.ne.s32.totalorder %s47, %s61
    %p63 = scmp.eq.s32.totalorder %s16, 0
    %p64 = por %p62, %p63
    %s66 = sadd.s32 %s65, 1
    %p69 = scmp.eq.s32.totalorder %s10, 1
    %p70 = scmp.ne.s32.totalorder %s65, %s67
    %p71 = scmp.eq.s32.totalorder %s10, 0
    %p72 = por %p70, %p71
    %p73 = scmp.ne.s32.totalorder %s65, %s67
    %p74 = scmp.eq.s32.totalorder %s15, 1
    %p75 = por %p73, %p74
    %p76 = scmp.ne.s32.totalorder %s67, %s68
    %p77 = scmp.eq.s32.totalorder %s15, 0
    %p78 = por %p76, %p77
    %p79 = scmp.ne.s32.totalorder %s67, %s68
    %p80 = scmp.eq.s32.totalorder %s16, 1
    %p81 = por %p79, %p80
    %p83 = scmp.ne.s32.totalorder %s68, %s82
    %p84 = scmp.eq.s32.totalorder %s16, 0
    %p85 = por %p83, %p84
    %s87 = sadd.s32 %s86, 1
    %p90 = scmp.eq.s32.totalorder %s10, 1
    %p91 = scmp.ne.s32.totalorder %s86, %s88
    %p92 = scmp.eq.s32.totalorder %s10, 0
    %p93 = por %p91, %p92
    %p94 = scmp.ne.s32.totalorder %s86, %s88
    %p95 = scmp.eq.s32.totalorder %s15, 1
    %p96 = por %p94, %p95
    %p97 = scmp.ne.s32.totalorder %s88, %s89
    %p98 = scmp.eq.s32.totalorder %s15, 0
    %p99 = por %p97, %p98
    %p100 = scmp.ne.s32.totalorder %s88, %s89
    %p101 = scmp.eq.s32.totalorder %s16, 1
    %p102 = por %p100, %p101
    %p104 = scmp.ne.s32.totalorder %s89, %s103
    %p105 = scmp.eq.s32.totalorder %s16, 0
    %p106 = por %p104, %p105
    %s107 = ssub.s32 %s10, %s17
    %p108 = scmp.eq.s32.totalorder %s107, 0
    %s110 = sadd.s32 %s109, 1
    %s111 = scalar_select %p108, %s109, %s110
    %p114 = pneg %p108
    %p115 = scmp.eq.s32.totalorder %s10, 1
    %p116 = por %p114, %p115
    %p117 = scmp.ne.s32.totalorder %s109, %s112
    %p118 = scmp.eq.s32.totalorder %s10, 0
    %p119 = por %p117, %p118
    %p120 = scmp.ne.s32.totalorder %s109, %s112
    %p121 = scmp.eq.s32.totalorder %s15, 1
    %p122 = por %p120, %p121
    %p123 = scmp.ne.s32.totalorder %s112, %s113
    %p124 = scmp.eq.s32.totalorder %s15, 0
    %p125 = por %p123, %p124
    %p126 = scmp.ne.s32.totalorder %s112, %s113
    %p127 = scmp.eq.s32.totalorder %s16, 1
    %p128 = por %p126, %p127
    %p130 = scmp.ne.s32.totalorder %s113, %s129
    %p131 = scmp.eq.s32.totalorder %s16, 0
    %p132 = por %p130, %p131
    %p133 = scmp.le.s32.totalorder 1, %s10
    %p134 = scmp.lt.s32.totalorder %s10, 3
    %p135 = pnand %p133, %p134
    %p136 = pneg %p135
    // Predicated region
    $region9: #{_lambda_.1} parent=5 // pred_check
      _
    $region10: #{_lambda_.1} parent=5 // pred_check_branch
      %138 = sbr.rel (%p135) target = $region12
    $region11: #{_lambda_.1} parent=5 // pred_region
      %s139 = ssub.s32 %s10, 1
      // Predicated region
      $region13: #{_lambda_.1} parent=11 // pred_check
        %p140 = pneg %p57
      $region14: #{_lambda_.1} parent=11 // pred_check_branch
        %142 = sbr.rel (%p140) target = $region16
      $region15: #{_lambda_.1} parent=11 // pred_region
        _
      $region16: #{_lambda_.1} parent=11 // pred_fallthru
        _
      // Predicated region
      $region17: #{_lambda_.1} parent=11 // pred_check
        %p143 = pneg %p78
      $region18: #{_lambda_.1} parent=11 // pred_check_branch
        %145 = sbr.rel (%p143) target = $region20
      $region19: #{_lambda_.1} parent=11 // pred_region
        _
      $region20: #{_lambda_.1} parent=11 // pred_fallthru
        _
      // Predicated region
      $region21: #{_lambda_.1} parent=11 // pred_check
        %p146 = pneg %p99
      $region22: #{_lambda_.1} parent=11 // pred_check_branch
        %148 = sbr.rel (%p146) target = $region24
      $region23: #{_lambda_.1} parent=11 // pred_region
        _
      $region24: #{_lambda_.1} parent=11 // pred_fallthru
        _
    $region12: #{_lambda_.1} parent=5 // pred_fallthru
      _
    %p149 = scmp.lt.s32.totalorder %s10, 2
    // Predicated region
    $region25: #{_lambda_.1} parent=5 // pred_check
      %p150 = pneg %p149
    $region26: #{_lambda_.1} parent=5 // pred_check_branch
      %152 = sbr.rel (%p150) target = $region28
    $region27: #{_lambda_.1} parent=5 // pred_region
      // Predicated region
      $region29: #{_lambda_.1} parent=27 // pred_check
        %p153 = pneg %p30
      $region30: #{_lambda_.1} parent=27 // pred_check_branch
        %155 = sbr.rel (%p153) target = $region32
      $region31: #{_lambda_.1} parent=27 // pred_region
        %p156 = scmp.lt.s32.totalorder %s10, 1
        %s157 = scalar_select %p156, %s10, 1
        %s158 = smul.addr %s157, 8
        %s159 = smul.addr %s158, 8
        %s160 = scalar_lea.vmem %s0, %s159
      $region32: #{_lambda_.1} parent=27 // pred_fallthru
        _
    $region28: #{_lambda_.1} parent=5 // pred_fallthru
      _
    %p161 = scmp.le.s32.totalorder 1, %s10
    %p162 = scmp.lt.s32.totalorder %s10, 3
    %p163 = pnand %p161, %p162
    %p164 = pneg %p163
    // Predicated region
    $region33: #{_lambda_.1} parent=5 // pred_check
      _
    $region34: #{_lambda_.1} parent=5 // pred_check_branch
      %166 = sbr.rel (%p163) target = $region36
    $region35: #{_lambda_.1} parent=5 // pred_region
      %s167 = ssub.s32 %s10, 1
      %p168 = scmp.lt.s32.totalorder %s15, 1
      %s169 = scalar_select %p168, %s15, 1
      %s170 = smul.addr %s169, 8
      %s171 = smul.addr %s170, 8
      %s172 = scalar_lea.vmem %s0, %s171
      %p173 = pneg %p36
      %p174 = pneg %p33
      %p175 = pneg %p57
      %p176 = pneg %p54
      %p177 = pneg %p78
      %p178 = pneg %p75
      %p179 = pneg %p99
      %p180 = pneg %p96
      %p181 = pneg %p125
      %p182 = pneg %p122
      %p183 = scmp.lt.s32.totalorder %s15, 1
      %s184 = scalar_select %p183, %s15, 1
      %s185 = smul.addr %s184, 8
      %s186 = smul.addr %s185, 8
      %s187 = scalar_lea.vmem %s4, %s186
      %p188 = scmp.lt.s32.totalorder %s15, 1
      %s189 = scalar_select %p188, %s15, 1
      %s190 = smul.addr %s189, 8
      %s191 = smul.addr %s190, 8
      %s192 = scalar_lea.vmem %s0, %s191
      %p193 = scmp.lt.s32.totalorder %s15, 1
      %s194 = scalar_select %p193, %s15, 1
      %s195 = smul.addr %s194, 8
      %s196 = smul.addr %s195, 8
      %s197 = scalar_lea.vmem %s4, %s196
      %v199 = vld [vmem:[%s192] sm:$0xff]
      %v200 = vld [vmem:[%s192 + $0x8] sm:$0xff]
      %v201 = vld [vmem:[%s192 + $0x10] sm:$0xff]
      %v202 = vld [vmem:[%s192 + $0x18] sm:$0xff]
      %v203 = vld [vmem:[%s192 + $0x20] sm:$0xff]
      %v204 = vld [vmem:[%s192 + $0x28] sm:$0xff]
      %v205 = vld [vmem:[%s192 + $0x30] sm:$0xff]
      %v206 = vld [vmem:[%s192 + $0x38] sm:$0xff]
      %v207 = vld [vmem:[%s1] sm:$0xff]
      %v208 = vpack.c.bf16 %v207, %v207
      %v209 = vpack.c.bf16 %v201, %v199
      %v210 = vpack.c.bf16 %v202, %v200
      %v211 = vpack.c.bf16 %v205, %v203
      %v212 = vpack.c.bf16 %v206, %v204
      %vm213 = vcmask 261120
      %v215 = vsel %vm213, %v208, 0
      %217 = vmatpush.bf16.msra.mxu0 0
      %218 = vmatpush.bf16.msra.mxu0 0
      %219 = vmatpush.bf16.msra.mxu0 0
      %220 = vmatpush.bf16.msra.mxu0 0
      %221 = vmatpush.bf16.msra.mxu0 0
      %222 = vmatpush.bf16.msra.mxu0 0
      %223 = vmatpush.bf16.msra.mxu0 %v211
      %224 = vmatpush.bf16.msra.mxu0 %v209
      %225 = vmatmul.bf16.gmra.mxu0 %v215
      %v226 = vpop.f32.mrf.mxu0
      %v227 = vadd.f32 0.0, %v226
      %v228 = vpop.f32.mrf.mxu0
      %229 = vdwg.mxu0
      %230 = vmatpush.bf16.msra.mxu0 0
      %231 = vmatpush.bf16.msra.mxu0 0
      %232 = vmatpush.bf16.msra.mxu0 0
      %233 = vmatpush.bf16.msra.mxu0 0
      %234 = vmatpush.bf16.msra.mxu0 0
      %235 = vmatpush.bf16.msra.mxu0 0
      %236 = vmatpush.bf16.msra.mxu0 %v212
      %237 = vmatpush.bf16.msra.mxu0 %v210
      %238 = vmatmul.bf16.gmra.mxu0 %v215
      %v239 = vpop.f32.mrf.mxu0
      %v240 = vadd.f32 0.0, %v239
      %v241 = vpop.f32.mrf.mxu0
      %242 = vdwg.mxu0
      %v243 = vld [vmem:[%s1 + $0x8] sm:$0xff]
      %vm244 = vcmp.ge.f32.partialorder %v227, 0.0
      %vm245 = vcmp.ge.f32.partialorder %v240, 0.0
      %247 = vset.pattern.permute.xlu0 0
      %248 = vperm.xlu0 %247, %v243
      %v249 = vpop.permute.xlu0 %248
      %v251 = vmul.f32 %v249, %v227
      %v252 = vmul.f32 %v249, %v240
      %v253 = vsel %vm244, %v227, %v251
      %v254 = vsel %vm245, %v240, %v252
      %v255 = vld [vmem:[%s1 + $0x1a8] sm:$0xff]
      %v256 = vadd.f32 %v253, %v254
      %257 = vadd.xlane.f32.xlu0 %v256
      %v258 = vpop.xlane.xlu0 %257
      %v259 = vrcp.pop 256.0
      %v260 = vmul.f32 256.0, %v259
      %v261 = vsub.f32 1.0, %v260
      %v262 = vmul.f32 %v259, %v261
      %v263 = vadd.f32 %v259, %v262
      %vm264 = vweird.f32 %v259
      %v265 = vsel %vm264, %v259, %v263
      %v266 = vmul.f32 %v258, %v265
      %vm267 = vcmask 64512
      %v269 = vsel %vm267, %v255, 0
      %271 = vmatpush.msra.mxu0 0.0
      %272 = vmatpush.msra.mxu0 0.0
      %273 = vmatpush.msra.mxu0 0.0
      %274 = vmatpush.msra.mxu0 0.0
      %275 = vmatpush.msra.mxu0 0.0
      %276 = vmatpush.msra.mxu0 0.0
      %277 = vmatpush.msra.mxu0 0.0
      %278 = vmatpush.msra.mxu0 0.0
      %279 = vmatpush.msra.mxu0 0.0
      %280 = vmatpush.msra.mxu0 0.0
      %281 = vmatpush.msra.mxu0 0.0
      %282 = vmatpush.msra.mxu0 0.0
      %283 = vmatpush.msra.mxu0 0.0
      %284 = vmatpush.msra.mxu0 0.0
      %285 = vmatpush.msra.mxu0 0.0
      %v286 = vand.u32 %v266, 4294901760
      %287 = vmatpush.msra.mxu0 %v286
      %v288 = vand.u32 %v269, 4294901760
      %v289 = vsub.f32 %v269, %v288
      %v290 = vand.u32 %v289, 4294901760
      %v291 = vsub.f32 %v289, %v290
      %v292 = vand.u32 %v291, 4294901760
      %293 = vmatmul.f32.gmra.mxu0 %v292
      %v294 = vpop.f32.mrf.mxu0
      %v295 = vadd.f32 0.0, %v294
      %296 = vdwg.mxu0
      %297 = vmatpush.msra.mxu0 0.0
      %298 = vmatpush.msra.mxu0 0.0
      %299 = vmatpush.msra.mxu0 0.0
      %300 = vmatpush.msra.mxu0 0.0
      %301 = vmatpush.msra.mxu0 0.0
      %302 = vmatpush.msra.mxu0 0.0
      %303 = vmatpush.msra.mxu0 0.0
      %304 = vmatpush.msra.mxu0 0.0
      %305 = vmatpush.msra.mxu0 0.0
      %306 = vmatpush.msra.mxu0 0.0
      %307 = vmatpush.msra.mxu0 0.0
      %308 = vmatpush.msra.mxu0 0.0
      %309 = vmatpush.msra.mxu0 0.0
      %310 = vmatpush.msra.mxu0 0.0
      %311 = vmatpush.msra.mxu0 0.0
      %v312 = vand.u32 %v266, 4294901760
      %v313 = vsub.f32 %v266, %v312
      %v314 = vand.u32 %v313, 4294901760
      %v315 = vsub.f32 %v313, %v314
      %v316 = vand.u32 %v315, 4294901760
      %317 = vmatpush.msra.mxu0 %v316
      %v318 = vand.u32 %v269, 4294901760
      %319 = vmatmul.f32.gmra.mxu0 %v318
      %v320 = vpop.f32.mrf.mxu0
      %v321 = vadd.f32 %v295, %v320
      %322 = vdwg.mxu0
      %323 = vmatpush.msra.mxu0 0.0
      %324 = vmatpush.msra.mxu0 0.0
      %325 = vmatpush.msra.mxu0 0.0
      %326 = vmatpush.msra.mxu0 0.0
      %327 = vmatpush.msra.mxu0 0.0
      %328 = vmatpush.msra.mxu0 0.0
      %329 = vmatpush.msra.mxu0 0.0
      %330 = vmatpush.msra.mxu0 0.0
      %331 = vmatpush.msra.mxu0 0.0
      %332 = vmatpush.msra.mxu0 0.0
      %333 = vmatpush.msra.mxu0 0.0
      %334 = vmatpush.msra.mxu0 0.0
      %335 = vmatpush.msra.mxu0 0.0
      %336 = vmatpush.msra.mxu0 0.0
      %337 = vmatpush.msra.mxu0 0.0
      %v338 = vand.u32 %v266, 4294901760
      %v339 = vsub.f32 %v266, %v338
      %340 = vmatpush.msra.mxu0 %v339
      %v341 = vand.u32 %v269, 4294901760
      %v342 = vsub.f32 %v269, %v341
      %343 = vmatmul.f32.gmra.mxu0 %v342
      %v344 = vpop.f32.mrf.mxu0
      %v345 = vadd.f32 %v321, %v344
      %346 = vdwg.mxu0
      %347 = vmatpush.msra.mxu0 0.0
      %348 = vmatpush.msra.mxu0 0.0
      %349 = vmatpush.msra.mxu0 0.0
      %350 = vmatpush.msra.mxu0 0.0
      %351 = vmatpush.msra.mxu0 0.0
      %352 = vmatpush.msra.mxu0 0.0
      %353 = vmatpush.msra.mxu0 0.0
      %354 = vmatpush.msra.mxu0 0.0
      %355 = vmatpush.msra.mxu0 0.0
      %356 = vmatpush.msra.mxu0 0.0
      %357 = vmatpush.msra.mxu0 0.0
      %358 = vmatpush.msra.mxu0 0.0
      %359 = vmatpush.msra.mxu0 0.0
      %360 = vmatpush.msra.mxu0 0.0
      %361 = vmatpush.msra.mxu0 0.0
      %v362 = vand.u32 %v266, 4294901760
      %363 = vmatpush.msra.mxu0 %v362
      %v364 = vand.u32 %v269, 4294901760
      %v365 = vsub.f32 %v269, %v364
      %v366 = vand.u32 %v365, 4294901760
      %367 = vmatmul.f32.gmra.mxu0 %v366
      %v368 = vpop.f32.mrf.mxu0
      %v369 = vadd.f32 %v345, %v368
      %370 = vdwg.mxu0
      %371 = vmatpush.msra.mxu0 0.0
      %372 = vmatpush.msra.mxu0 0.0
      %373 = vmatpush.msra.mxu0 0.0
      %374 = vmatpush.msra.mxu0 0.0
      %375 = vmatpush.msra.mxu0 0.0
      %376 = vmatpush.msra.mxu0 0.0
      %377 = vmatpush.msra.mxu0 0.0
      %378 = vmatpush.msra.mxu0 0.0
      %379 = vmatpush.msra.mxu0 0.0
      %380 = vmatpush.msra.mxu0 0.0
      %381 = vmatpush.msra.mxu0 0.0
      %382 = vmatpush.msra.mxu0 0.0
      %383 = vmatpush.msra.mxu0 0.0
      %384 = vmatpush.msra.mxu0 0.0
      %385 = vmatpush.msra.mxu0 0.0
      %v386 = vand.u32 %v266, 4294901760
      %v387 = vsub.f32 %v266, %v386
      %v388 = vand.u32 %v387, 4294901760
      %389 = vmatpush.msra.mxu0 %v388
      %v390 = vand.u32 %v269, 4294901760
      %391 = vmatmul.f32.gmra.mxu0 %v390
      %v392 = vpop.f32.mrf.mxu0
      %v393 = vadd.f32 %v369, %v392
      %394 = vdwg.mxu0
      %395 = vmatpush.msra.mxu0 0.0
      %396 = vmatpush.msra.mxu0 0.0
      %397 = vmatpush.msra.mxu0 0.0
      %398 = vmatpush.msra.mxu0 0.0
      %399 = vmatpush.msra.mxu0 0.0
      %400 = vmatpush.msra.mxu0 0.0
      %401 = vmatpush.msra.mxu0 0.0
      %402 = vmatpush.msra.mxu0 0.0
      %403 = vmatpush.msra.mxu0 0.0
      %404 = vmatpush.msra.mxu0 0.0
      %405 = vmatpush.msra.mxu0 0.0
      %406 = vmatpush.msra.mxu0 0.0
      %407 = vmatpush.msra.mxu0 0.0
      %408 = vmatpush.msra.mxu0 0.0
      %409 = vmatpush.msra.mxu0 0.0
      %v410 = vand.u32 %v266, 4294901760
      %411 = vmatpush.msra.mxu0 %v410
      %v412 = vand.u32 %v269, 4294901760
      %413 = vmatmul.f32.gmra.mxu0 %v412
      %v414 = vpop.f32.mrf.mxu0
      %v415 = vadd.f32 %v393, %v414
      %416 = vdwg.mxu0
      %418 = vset.pattern.permute.xlu0 0
      %419 = vperm.xlu0 %418, %v415
      %v420 = vpop.permute.xlu0 %419
      %v422 = vsub.f32 %v253, %v420
      %v423 = vsub.f32 %v254, %v420
      %v424 = vmul.f32 %v422, %v422
      %v425 = vmul.f32 %v423, %v423
      %v426 = vadd.f32 %v424, %v425
      %427 = vadd.xlane.f32.xlu0 %v426
      %v428 = vpop.xlane.xlu0 %427
      %v429 = vmul.f32 %v428, %v265
      %430 = vmatpush.msra.mxu0 0.0
      %431 = vmatpush.msra.mxu0 0.0
      %432 = vmatpush.msra.mxu0 0.0
      %433 = vmatpush.msra.mxu0 0.0
      %434 = vmatpush.msra.mxu0 0.0
      %435 = vmatpush.msra.mxu0 0.0
      %436 = vmatpush.msra.mxu0 0.0
      %437 = vmatpush.msra.mxu0 0.0
      %438 = vmatpush.msra.mxu0 0.0
      %439 = vmatpush.msra.mxu0 0.0
      %440 = vmatpush.msra.mxu0 0.0
      %441 = vmatpush.msra.mxu0 0.0
      %442 = vmatpush.msra.mxu0 0.0
      %443 = vmatpush.msra.mxu0 0.0
      %444 = vmatpush.msra.mxu0 0.0
      %v445 = vand.u32 %v429, 4294901760
      %446 = vmatpush.msra.mxu0 %v445
      %v447 = vand.u32 %v269, 4294901760
      %v448 = vsub.f32 %v269, %v447
      %v449 = vand.u32 %v448, 4294901760
      %v450 = vsub.f32 %v448, %v449
      %v451 = vand.u32 %v450, 4294901760
      %452 = vmatmul.f32.gmra.mxu0 %v451
      %v453 = vpop.f32.mrf.mxu0
      %v454 = vadd.f32 1e-05, %v453
      %455 = vdwg.mxu0
      %456 = vmatpush.msra.mxu0 0.0
      %457 = vmatpush.msra.mxu0 0.0
      %458 = vmatpush.msra.mxu0 0.0
      %459 = vmatpush.msra.mxu0 0.0
      %460 = vmatpush.msra.mxu0 0.0
      %461 = vmatpush.msra.mxu0 0.0
      %462 = vmatpush.msra.mxu0 0.0
      %463 = vmatpush.msra.mxu0 0.0
      %464 = vmatpush.msra.mxu0 0.0
      %465 = vmatpush.msra.mxu0 0.0
      %466 = vmatpush.msra.mxu0 0.0
      %467 = vmatpush.msra.mxu0 0.0
      %468 = vmatpush.msra.mxu0 0.0
      %469 = vmatpush.msra.mxu0 0.0
      %470 = vmatpush.msra.mxu0 0.0
      %v471 = vand.u32 %v429, 4294901760
      %v472 = vsub.f32 %v429, %v471
      %v473 = vand.u32 %v472, 4294901760
      %v474 = vsub.f32 %v472, %v473
      %v475 = vand.u32 %v474, 4294901760
      %476 = vmatpush.msra.mxu0 %v475
      %v477 = vand.u32 %v269, 4294901760
      %478 = vmatmul.f32.gmra.mxu0 %v477
      %v479 = vpop.f32.mrf.mxu0
      %v480 = vadd.f32 %v454, %v479
      %481 = vdwg.mxu0
      %482 = vmatpush.msra.mxu0 0.0
      %483 = vmatpush.msra.mxu0 0.0
      %484 = vmatpush.msra.mxu0 0.0
      %485 = vmatpush.msra.mxu0 0.0
      %486 = vmatpush.msra.mxu0 0.0
      %487 = vmatpush.msra.mxu0 0.0
      %488 = vmatpush.msra.mxu0 0.0
      %489 = vmatpush.msra.mxu0 0.0
      %490 = vmatpush.msra.mxu0 0.0
      %491 = vmatpush.msra.mxu0 0.0
      %492 = vmatpush.msra.mxu0 0.0
      %493 = vmatpush.msra.mxu0 0.0
      %494 = vmatpush.msra.mxu0 0.0
      %495 = vmatpush.msra.mxu0 0.0
      %496 = vmatpush.msra.mxu0 0.0
      %v497 = vand.u32 %v429, 4294901760
      %v498 = vsub.f32 %v429, %v497
      %499 = vmatpush.msra.mxu0 %v498
      %v500 = vand.u32 %v269, 4294901760
      %v501 = vsub.f32 %v269, %v500
      %502 = vmatmul.f32.gmra.mxu0 %v501
      %v503 = vpop.f32.mrf.mxu0
      %v504 = vadd.f32 %v480, %v503
      %505 = vdwg.mxu0
      %506 = vmatpush.msra.mxu0 0.0
      %507 = vmatpush.msra.mxu0 0.0
      %508 = vmatpush.msra.mxu0 0.0
      %509 = vmatpush.msra.mxu0 0.0
      %510 = vmatpush.msra.mxu0 0.0
      %511 = vmatpush.msra.mxu0 0.0
      %512 = vmatpush.msra.mxu0 0.0
      %513 = vmatpush.msra.mxu0 0.0
      %514 = vmatpush.msra.mxu0 0.0
      %515 = vmatpush.msra.mxu0 0.0
      %516 = vmatpush.msra.mxu0 0.0
      %517 = vmatpush.msra.mxu0 0.0
      %518 = vmatpush.msra.mxu0 0.0
      %519 = vmatpush.msra.mxu0 0.0
      %520 = vmatpush.msra.mxu0 0.0
      %v521 = vand.u32 %v429, 4294901760
      %522 = vmatpush.msra.mxu0 %v521
      %v523 = vand.u32 %v269, 4294901760
      %v524 = vsub.f32 %v269, %v523
      %v525 = vand.u32 %v524, 4294901760
      %526 = vmatmul.f32.gmra.mxu0 %v525
      %v527 = vpop.f32.mrf.mxu0
      %v528 = vadd.f32 %v504, %v527
      %529 = vdwg.mxu0
      %530 = vmatpush.msra.mxu0 0.0
      %531 = vmatpush.msra.mxu0 0.0
      %532 = vmatpush.msra.mxu0 0.0
      %533 = vmatpush.msra.mxu0 0.0
      %534 = vmatpush.msra.mxu0 0.0
      %535 = vmatpush.msra.mxu0 0.0
      %536 = vmatpush.msra.mxu0 0.0
      %537 = vmatpush.msra.mxu0 0.0
      %538 = vmatpush.msra.mxu0 0.0
      %539 = vmatpush.msra.mxu0 0.0
      %540 = vmatpush.msra.mxu0 0.0
      %541 = vmatpush.msra.mxu0 0.0
      %542 = vmatpush.msra.mxu0 0.0
      %543 = vmatpush.msra.mxu0 0.0
      %544 = vmatpush.msra.mxu0 0.0
      %v545 = vand.u32 %v429, 4294901760
      %v546 = vsub.f32 %v429, %v545
      %v547 = vand.u32 %v546, 4294901760
      %548 = vmatpush.msra.mxu0 %v547
      %v549 = vand.u32 %v269, 4294901760
      %550 = vmatmul.f32.gmra.mxu0 %v549
      %v551 = vpop.f32.mrf.mxu0
      %v552 = vadd.f32 %v528, %v551
      %553 = vdwg.mxu0
      %554 = vmatpush.msra.mxu0 0.0
      %555 = vmatpush.msra.mxu0 0.0
      %556 = vmatpush.msra.mxu0 0.0
      %557 = vmatpush.msra.mxu0 0.0
      %558 = vmatpush.msra.mxu0 0.0
      %559 = vmatpush.msra.mxu0 0.0
      %560 = vmatpush.msra.mxu0 0.0
      %561 = vmatpush.msra.mxu0 0.0
      %562 = vmatpush.msra.mxu0 0.0
      %563 = vmatpush.msra.mxu0 0.0
      %564 = vmatpush.msra.mxu0 0.0
      %565 = vmatpush.msra.mxu0 0.0
      %566 = vmatpush.msra.mxu0 0.0
      %567 = vmatpush.msra.mxu0 0.0
      %568 = vmatpush.msra.mxu0 0.0
      %v569 = vand.u32 %v429, 4294901760
      %570 = vmatpush.msra.mxu0 %v569
      %v571 = vand.u32 %v269, 4294901760
      %572 = vmatmul.f32.gmra.mxu0 %v571
      %v573 = vpop.f32.mrf.mxu0
      %v574 = vadd.f32 %v552, %v573
      %575 = vdwg.mxu0
      %v576 = vrsqrt.pop %v574
      %v577 = vmul.f32 %v576, %v574
      %v578 = vmul.f32 %v577, %v576
      %v579 = vmul.f32 0.5, %v578
      %v580 = vsub.f32 1.5, %v579
      %v581 = vmul.f32 %v576, %v580
      %vm582 = vweird.f32 %v574
      %vm583 = vweird.f32 %v576
      %vm584 = vmor %vm582, %vm583
      %v585 = vsel %vm584, %v576, %v581
      %587 = vset.pattern.permute.xlu0 0
      %588 = vperm.xlu0 %587, %v585
      %v589 = vpop.permute.xlu0 %588
      %v591 = vmul.f32 %v422, %v589
      %v592 = vmul.f32 %v423, %v589
      %v593 = vld [vmem:[%s1 + $0x10] sm:$0xff]
      %595 = vset.pattern.permute.xlu0 0
      %596 = vperm.xlu0 %595, %v593
      %v597 = vpop.permute.xlu0 %596
      %v599 = vmul.f32 %v591, %v597
      %v600 = vmul.f32 %v592, %v597
      %v601 = vld [vmem:[%s1 + $0x18] sm:$0xff]
      %603 = vset.pattern.permute.xlu0 0
      %604 = vperm.xlu0 %603, %v601
      %v605 = vpop.permute.xlu0 %604
      %v607 = vadd.f32 %v599, %v605
      %v608 = vadd.f32 %v600, %v605
      %609 = vrot.lane.b32.xlu0 %v607, 17
      %v610 = vpop.permute.xlu0 %609
      %611 = vrot.lane.b32.xlu0 %v608, 17
      %v612 = vpop.permute.xlu0 %611
      %v613 = vlaneseq
      %v614 = vand.u32 %v613, 127
      %vm615 = vcmp.lt.s32.totalorder %v614, 17
      %v616 = vsel %vm615, %v610, %v612
      %v617 = vsel %vm615, %v612, %v610
      %v618 = vld [vmem:[%s2] ss:$8 sm:$0x3]
      %v620 = vperm.slane %v618, 0
      %v621 = vperm.slane %v618, 1
      %v624 = vmul.f32 %v617, %v620
      %v625 = vmul.f32 %v616, %v621
      %626 = vrot.lane.b32.xlu0 %v607, 16
      %v627 = vpop.permute.xlu0 %626
      %628 = vrot.lane.b32.xlu0 %v608, 16
      %v629 = vpop.permute.xlu0 %628
      %vm630 = vcmp.lt.s32.totalorder %v614, 16
      %v631 = vsel %vm630, %v627, %v629
      %v632 = vsel %vm630, %v629, %v627
      %s633 = scalar_lea.vmem %s2, 1
      %v634 = vld [vmem:[%s633] ss:$8 sm:$0x3]
      %v636 = vperm.slane %v634, 0
      %v637 = vperm.slane %v634, 1
      %v640 = vmul.f32 %v632, %v636
      %v641 = vmul.f32 %v631, %v637
      %642 = vrot.lane.b32.xlu0 %v607, 15
      %v643 = vpop.permute.xlu0 %642
      %644 = vrot.lane.b32.xlu0 %v608, 15
      %v645 = vpop.permute.xlu0 %644
      %vm646 = vcmp.lt.s32.totalorder %v614, 15
      %v647 = vsel %vm646, %v643, %v645
      %v648 = vsel %vm646, %v645, %v643
      %s649 = scalar_lea.vmem %s2, 2
      %v650 = vld [vmem:[%s649] ss:$8 sm:$0x3]
      %v652 = vperm.slane %v650, 0
      %v653 = vperm.slane %v650, 1
      %v656 = vmul.f32 %v648, %v652
      %v657 = vmul.f32 %v647, %v653
      %658 = vrot.lane.b32.xlu0 %v607, 1
      %v659 = vpop.permute.xlu0 %658
      %660 = vrot.lane.b32.xlu0 %v608, 1
      %v661 = vpop.permute.xlu0 %660
      %vm662 = vcmp.lt.s32.totalorder %v614, 1
      %v663 = vsel %vm662, %v659, %v661
      %v664 = vsel %vm662, %v661, %v659
      %s665 = scalar_lea.vmem %s2, 3
      %v666 = vld [vmem:[%s665] ss:$8 sm:$0x3]
      %v668 = vperm.slane %v666, 0
      %v669 = vperm.slane %v666, 1
      %v672 = vmul.f32 %v664, %v668
      %v673 = vmul.f32 %v663, %v669
      %674 = vrot.lane.b32.xlu0 %v607, 127
      %v675 = vpop.permute.xlu0 %674
      %676 = vrot.lane.b32.xlu0 %v608, 127
      %v677 = vpop.permute.xlu0 %676
      %vm678 = vcmp.lt.s32.totalorder %v614, 127
      %v679 = vsel %vm678, %v675, %v677
      %v680 = vsel %vm678, %v677, %v675
      %s681 = scalar_lea.vmem %s2, 5
      %v682 = vld [vmem:[%s681] ss:$8 sm:$0x3]
      %v684 = vperm.slane %v682, 0
      %v685 = vperm.slane %v682, 1
      %v688 = vmul.f32 %v679, %v684
      %v689 = vmul.f32 %v680, %v685
      %690 = vrot.lane.b32.xlu0 %v607, 113
      %v691 = vpop.permute.xlu0 %690
      %692 = vrot.lane.b32.xlu0 %v608, 113
      %v693 = vpop.permute.xlu0 %692
      %vm694 = vcmp.lt.s32.totalorder %v614, 113
      %v695 = vsel %vm694, %v691, %v693
      %v696 = vsel %vm694, %v693, %v691
      %s697 = scalar_lea.vmem %s2, 6
      %v698 = vld [vmem:[%s697] ss:$8 sm:$0x3]
      %v700 = vperm.slane %v698, 0
      %v701 = vperm.slane %v698, 1
      %v704 = vmul.f32 %v695, %v700
      %v705 = vmul.f32 %v696, %v701
      %706 = vrot.lane.b32.xlu0 %v607, 112
      %v707 = vpop.permute.xlu0 %706
      %708 = vrot.lane.b32.xlu0 %v608, 112
      %v709 = vpop.permute.xlu0 %708
      %vm710 = vcmp.lt.s32.totalorder %v614, 112
      %v711 = vsel %vm710, %v707, %v709
      %v712 = vsel %vm710, %v709, %v707
      %s713 = scalar_lea.vmem %s2, 7
      %v714 = vld [vmem:[%s713] ss:$8 sm:$0x3]
      %v716 = vperm.slane %v714, 0
      %v717 = vperm.slane %v714, 1
      %v720 = vmul.f32 %v711, %v716
      %v721 = vmul.f32 %v712, %v717
      %722 = vrot.lane.b32.xlu0 %v607, 111
      %v723 = vpop.permute.xlu0 %722
      %724 = vrot.lane.b32.xlu0 %v608, 111
      %v725 = vpop.permute.xlu0 %724
      %vm726 = vcmp.lt.s32.totalorder %v614, 111
      %v727 = vsel %vm726, %v723, %v725
      %v728 = vsel %vm726, %v725, %v723
      %s729 = scalar_lea.vmem %s2, 16
      %v730 = vld [vmem:[%s729] ss:$8 sm:$0x3]
      %v732 = vperm.slane %v730, 0
      %v733 = vperm.slane %v730, 1
      %v736 = vmul.f32 %v727, %v732
      %v737 = vmul.f32 %v728, %v733
      %v738 = vpack.c.bf16 %v640, %v624
      %v739 = vpack.c.bf16 %v641, %v625
      %v740 = vpack.c.bf16 %v672, %v656
      %v741 = vpack.c.bf16 %v673, %v657
      %v742 = vpack.c.bf16 %v688, %v607
      %v743 = vpack.c.bf16 %v689, %v608
      %v744 = vpack.c.bf16 %v720, %v704
      %v745 = vpack.c.bf16 %v721, %v705
      %v746 = vpack.c.bf16 %v736, %v736
      %v747 = vpack.c.bf16 %v737, %v737
      %v748 = vld [vmem:[%s1 + $0x20] sm:$0xff]
      %v749 = vpack.c.bf16 %v748, %v748
      %vm750 = vcmask 588800
      %v752 = vsel %vm750, %v749, 0
      %vm754 = vcmask 1043456
      %v756 = vsel %vm754, %v746, 0
      %v759 = vsel %vm754, %v747, 0
      %761 = vmatpush.bf16.msra.mxu0 0
      %762 = vmatpush.bf16.msra.mxu0 0
      %763 = vmatpush.bf16.msra.mxu0 0
      %764 = vmatpush.bf16.msra.mxu0 %v756
      %765 = vmatpush.bf16.msra.mxu0 %v744
      %766 = vmatpush.bf16.msra.mxu0 %v742
      %767 = vmatpush.bf16.msra.mxu0 %v740
      %768 = vmatpush.bf16.msra.mxu0 %v738
      %769 = vmatmul.bf16.gmra.mxu0 %v752
      %v770 = vpop.f32.mrf.mxu0
      %v771 = vadd.f32 0.0, %v770
      %v772 = vpop.f32.mrf.mxu0
      %773 = vdwg.mxu0
      %774 = vmatpush.bf16.msra.mxu0 0
      %775 = vmatpush.bf16.msra.mxu0 0
      %776 = vmatpush.bf16.msra.mxu0 0
      %777 = vmatpush.bf16.msra.mxu0 %v759
      %778 = vmatpush.bf16.msra.mxu0 %v745
      %779 = vmatpush.bf16.msra.mxu0 %v743
      %780 = vmatpush.bf16.msra.mxu0 %v741
      %781 = vmatpush.bf16.msra.mxu0 %v739
      %782 = vmatmul.bf16.gmra.mxu0 %v752
      %v783 = vpop.f32.mrf.mxu0
      %v784 = vadd.f32 0.0, %v783
      %v785 = vpop.f32.mrf.mxu0
      %786 = vdwg.mxu0
      %v787 = vmax.f32 %v771, 0.0
      %v788 = vmax.f32 %v784, 0.0
      %v789 = vadd.f32 %v787, %v788
      %790 = vadd.xlane.f32.xlu0 %v789
      %v791 = vpop.xlane.xlu0 %790
      %v792 = vmul.f32 %v791, %v265
      %793 = vmatpush.msra.mxu0 0.0
      %794 = vmatpush.msra.mxu0 0.0
      %795 = vmatpush.msra.mxu0 0.0
      %796 = vmatpush.msra.mxu0 0.0
      %797 = vmatpush.msra.mxu0 0.0
      %798 = vmatpush.msra.mxu0 0.0
      %799 = vmatpush.msra.mxu0 0.0
      %800 = vmatpush.msra.mxu0 0.0
      %801 = vmatpush.msra.mxu0 0.0
      %802 = vmatpush.msra.mxu0 0.0
      %803 = vmatpush.msra.mxu0 0.0
      %804 = vmatpush.msra.mxu0 0.0
      %805 = vmatpush.msra.mxu0 0.0
      %806 = vmatpush.msra.mxu0 0.0
      %807 = vmatpush.msra.mxu0 0.0
      %v808 = vand.u32 %v792, 4294901760
      %809 = vmatpush.msra.mxu0 %v808
      %v810 = vand.u32 %v269, 4294901760
      %v811 = vsub.f32 %v269, %v810
      %v812 = vand.u32 %v811, 4294901760
      %v813 = vsub.f32 %v811, %v812
      %v814 = vand.u32 %v813, 4294901760
      %815 = vmatmul.f32.gmra.mxu0 %v814
      %v816 = vpop.f32.mrf.mxu0
      %v817 = vadd.f32 0.0, %v816
      %818 = vdwg.mxu0
      %819 = vmatpush.msra.mxu0 0.0
      %820 = vmatpush.msra.mxu0 0.0
      %821 = vmatpush.msra.mxu0 0.0
      %822 = vmatpush.msra.mxu0 0.0
      %823 = vmatpush.msra.mxu0 0.0
      %824 = vmatpush.msra.mxu0 0.0
      %825 = vmatpush.msra.mxu0 0.0
      %826 = vmatpush.msra.mxu0 0.0
      %827 = vmatpush.msra.mxu0 0.0
      %828 = vmatpush.msra.mxu0 0.0
      %829 = vmatpush.msra.mxu0 0.0
      %830 = vmatpush.msra.mxu0 0.0
      %831 = vmatpush.msra.mxu0 0.0
      %832 = vmatpush.msra.mxu0 0.0
      %833 = vmatpush.msra.mxu0 0.0
      %v834 = vand.u32 %v792, 4294901760
      %v835 = vsub.f32 %v792, %v834
      %v836 = vand.u32 %v835, 4294901760
      %v837 = vsub.f32 %v835, %v836
      %v838 = vand.u32 %v837, 4294901760
      %839 = vmatpush.msra.mxu0 %v838
      %v840 = vand.u32 %v269, 4294901760
      %841 = vmatmul.f32.gmra.mxu0 %v840
      %v842 = vpop.f32.mrf.mxu0
      %v843 = vadd.f32 %v817, %v842
      %844 = vdwg.mxu0
      %845 = vmatpush.msra.mxu0 0.0
      %846 = vmatpush.msra.mxu0 0.0
      %847 = vmatpush.msra.mxu0 0.0
      %848 = vmatpush.msra.mxu0 0.0
      %849 = vmatpush.msra.mxu0 0.0
      %850 = vmatpush.msra.mxu0 0.0
      %851 = vmatpush.msra.mxu0 0.0
      %852 = vmatpush.msra.mxu0 0.0
      %853 = vmatpush.msra.mxu0 0.0
      %854 = vmatpush.msra.mxu0 0.0
      %855 = vmatpush.msra.mxu0 0.0
      %856 = vmatpush.msra.mxu0 0.0
      %857 = vmatpush.msra.mxu0 0.0
      %858 = vmatpush.msra.mxu0 0.0
      %859 = vmatpush.msra.mxu0 0.0
      %v860 = vand.u32 %v792, 4294901760
      %v861 = vsub.f32 %v792, %v860
      %862 = vmatpush.msra.mxu0 %v861
      %v863 = vand.u32 %v269, 4294901760
      %v864 = vsub.f32 %v269, %v863
      %865 = vmatmul.f32.gmra.mxu0 %v864
      %v866 = vpop.f32.mrf.mxu0
      %v867 = vadd.f32 %v843, %v866
      %868 = vdwg.mxu0
      %869 = vmatpush.msra.mxu0 0.0
      %870 = vmatpush.msra.mxu0 0.0
      %871 = vmatpush.msra.mxu0 0.0
      %872 = vmatpush.msra.mxu0 0.0
      %873 = vmatpush.msra.mxu0 0.0
      %874 = vmatpush.msra.mxu0 0.0
      %875 = vmatpush.msra.mxu0 0.0
      %876 = vmatpush.msra.mxu0 0.0
      %877 = vmatpush.msra.mxu0 0.0
      %878 = vmatpush.msra.mxu0 0.0
      %879 = vmatpush.msra.mxu0 0.0
      %880 = vmatpush.msra.mxu0 0.0
      %881 = vmatpush.msra.mxu0 0.0
      %882 = vmatpush.msra.mxu0 0.0
      %883 = vmatpush.msra.mxu0 0.0
      %v884 = vand.u32 %v792, 4294901760
      %885 = vmatpush.msra.mxu0 %v884
      %v886 = vand.u32 %v269, 4294901760
      %v887 = vsub.f32 %v269, %v886
      %v888 = vand.u32 %v887, 4294901760
      %889 = vmatmul.f32.gmra.mxu0 %v888
      %v890 = vpop.f32.mrf.mxu0
      %v891 = vadd.f32 %v867, %v890
      %892 = vdwg.mxu0
      %893 = vmatpush.msra.mxu0 0.0
      %894 = vmatpush.msra.mxu0 0.0
      %895 = vmatpush.msra.mxu0 0.0
      %896 = vmatpush.msra.mxu0 0.0
      %897 = vmatpush.msra.mxu0 0.0
      %898 = vmatpush.msra.mxu0 0.0
      %899 = vmatpush.msra.mxu0 0.0
      %900 = vmatpush.msra.mxu0 0.0
      %901 = vmatpush.msra.mxu0 0.0
      %902 = vmatpush.msra.mxu0 0.0
      %903 = vmatpush.msra.mxu0 0.0
      %904 = vmatpush.msra.mxu0 0.0
      %905 = vmatpush.msra.mxu0 0.0
      %906 = vmatpush.msra.mxu0 0.0
      %907 = vmatpush.msra.mxu0 0.0
      %v908 = vand.u32 %v792, 4294901760
      %v909 = vsub.f32 %v792, %v908
      %v910 = vand.u32 %v909, 4294901760
      %911 = vmatpush.msra.mxu0 %v910
      %v912 = vand.u32 %v269, 4294901760
      %913 = vmatmul.f32.gmra.mxu0 %v912
      %v914 = vpop.f32.mrf.mxu0
      %v915 = vadd.f32 %v891, %v914
      %916 = vdwg.mxu0
      %917 = vmatpush.msra.mxu0 0.0
      %918 = vmatpush.msra.mxu0 0.0
      %919 = vmatpush.msra.mxu0 0.0
      %920 = vmatpush.msra.mxu0 0.0
      %921 = vmatpush.msra.mxu0 0.0
      %922 = vmatpush.msra.mxu0 0.0
      %923 = vmatpush.msra.mxu0 0.0
      %924 = vmatpush.msra.mxu0 0.0
      %925 = vmatpush.msra.mxu0 0.0
      %926 = vmatpush.msra.mxu0 0.0
      %927 = vmatpush.msra.mxu0 0.0
      %928 = vmatpush.msra.mxu0 0.0
      %929 = vmatpush.msra.mxu0 0.0
      %930 = vmatpush.msra.mxu0 0.0
      %931 = vmatpush.msra.mxu0 0.0
      %v932 = vand.u32 %v792, 4294901760
      %933 = vmatpush.msra.mxu0 %v932
      %v934 = vand.u32 %v269, 4294901760
      %935 = vmatmul.f32.gmra.mxu0 %v934
      %v936 = vpop.f32.mrf.mxu0
      %v937 = vadd.f32 %v915, %v936
      %938 = vdwg.mxu0
      %940 = vset.pattern.permute.xlu0 0
      %941 = vperm.xlu0 %940, %v937
      %v942 = vpop.permute.xlu0 %941
      %v944 = vsub.f32 %v787, %v942
      %v945 = vsub.f32 %v788, %v942
      %v946 = vmul.f32 %v944, %v944
      %v947 = vmul.f32 %v945, %v945
      %v948 = vadd.f32 %v946, %v947
      %949 = vadd.xlane.f32.xlu0 %v948
      %v950 = vpop.xlane.xlu0 %949
      %v951 = vmul.f32 %v950, %v265
      %952 = vmatpush.msra.mxu0 0.0
      %953 = vmatpush.msra.mxu0 0.0
      %954 = vmatpush.msra.mxu0 0.0
      %955 = vmatpush.msra.mxu0 0.0
      %956 = vmatpush.msra.mxu0 0.0
      %957 = vmatpush.msra.mxu0 0.0
      %958 = vmatpush.msra.mxu0 0.0
      %959 = vmatpush.msra.mxu0 0.0
      %960 = vmatpush.msra.mxu0 0.0
      %961 = vmatpush.msra.mxu0 0.0
      %962 = vmatpush.msra.mxu0 0.0
      %963 = vmatpush.msra.mxu0 0.0
      %964 = vmatpush.msra.mxu0 0.0
      %965 = vmatpush.msra.mxu0 0.0
      %966 = vmatpush.msra.mxu0 0.0
      %v967 = vand.u32 %v951, 4294901760
      %968 = vmatpush.msra.mxu0 %v967
      %v969 = vand.u32 %v269, 4294901760
      %v970 = vsub.f32 %v269, %v969
      %v971 = vand.u32 %v970, 4294901760
      %v972 = vsub.f32 %v970, %v971
      %v973 = vand.u32 %v972, 4294901760
      %974 = vmatmul.f32.gmra.mxu0 %v973
      %v975 = vpop.f32.mrf.mxu0
      %v976 = vadd.f32 1e-05, %v975
      %977 = vdwg.mxu0
      %978 = vmatpush.msra.mxu0 0.0
      %979 = vmatpush.msra.mxu0 0.0
      %980 = vmatpush.msra.mxu0 0.0
      %981 = vmatpush.msra.mxu0 0.0
      %982 = vmatpush.msra.mxu0 0.0
      %983 = vmatpush.msra.mxu0 0.0
      %984 = vmatpush.msra.mxu0 0.0
      %985 = vmatpush.msra.mxu0 0.0
      %986 = vmatpush.msra.mxu0 0.0
      %987 = vmatpush.msra.mxu0 0.0
      %988 = vmatpush.msra.mxu0 0.0
      %989 = vmatpush.msra.mxu0 0.0
      %990 = vmatpush.msra.mxu0 0.0
      %991 = vmatpush.msra.mxu0 0.0
      %992 = vmatpush.msra.mxu0 0.0
      %v993 = vand.u32 %v951, 4294901760
      %v994 = vsub.f32 %v951, %v993
      %v995 = vand.u32 %v994, 4294901760
      %v996 = vsub.f32 %v994, %v995
      %v997 = vand.u32 %v996, 4294901760
      %998 = vmatpush.msra.mxu0 %v997
      %v999 = vand.u32 %v269, 4294901760
      %1000 = vmatmul.f32.gmra.mxu0 %v999
      %v1001 = vpop.f32.mrf.mxu0
      %v1002 = vadd.f32 %v976, %v1001
      %1003 = vdwg.mxu0
      %1004 = vmatpush.msra.mxu0 0.0
      %1005 = vmatpush.msra.mxu0 0.0
      %1006 = vmatpush.msra.mxu0 0.0
      %1007 = vmatpush.msra.mxu0 0.0
      %1008 = vmatpush.msra.mxu0 0.0
      %1009 = vmatpush.msra.mxu0 0.0
      %1010 = vmatpush.msra.mxu0 0.0
      %1011 = vmatpush.msra.mxu0 0.0
      %1012 = vmatpush.msra.mxu0 0.0
      %1013 = vmatpush.msra.mxu0 0.0
      %1014 = vmatpush.msra.mxu0 0.0
      %1015 = vmatpush.msra.mxu0 0.0
      %1016 = vmatpush.msra.mxu0 0.0
      %1017 = vmatpush.msra.mxu0 0.0
      %1018 = vmatpush.msra.mxu0 0.0
      %v1019 = vand.u32 %v951, 4294901760
      %v1020 = vsub.f32 %v951, %v1019
      %1021 = vmatpush.msra.mxu0 %v1020
      %v1022 = vand.u32 %v269, 4294901760
      %v1023 = vsub.f32 %v269, %v1022
      %1024 = vmatmul.f32.gmra.mxu0 %v1023
      %v1025 = vpop.f32.mrf.mxu0
      %v1026 = vadd.f32 %v1002, %v1025
      %1027 = vdwg.mxu0
      %1028 = vmatpush.msra.mxu0 0.0
      %1029 = vmatpush.msra.mxu0 0.0
      %1030 = vmatpush.msra.mxu0 0.0
      %1031 = vmatpush.msra.mxu0 0.0
      %1032 = vmatpush.msra.mxu0 0.0
      %1033 = vmatpush.msra.mxu0 0.0
      %1034 = vmatpush.msra.mxu0 0.0
      %1035 = vmatpush.msra.mxu0 0.0
      %1036 = vmatpush.msra.mxu0 0.0
      %1037 = vmatpush.msra.mxu0 0.0
      %1038 = vmatpush.msra.mxu0 0.0
      %1039 = vmatpush.msra.mxu0 0.0
      %1040 = vmatpush.msra.mxu0 0.0
      %1041 = vmatpush.msra.mxu0 0.0
      %1042 = vmatpush.msra.mxu0 0.0
      %v1043 = vand.u32 %v951, 4294901760
      %1044 = vmatpush.msra.mxu0 %v1043
      %v1045 = vand.u32 %v269, 4294901760
      %v1046 = vsub.f32 %v269, %v1045
      %v1047 = vand.u32 %v1046, 4294901760
      %1048 = vmatmul.f32.gmra.mxu0 %v1047
      %v1049 = vpop.f32.mrf.mxu0
      %v1050 = vadd.f32 %v1026, %v1049
      %1051 = vdwg.mxu0
      %1052 = vmatpush.msra.mxu0 0.0
      %1053 = vmatpush.msra.mxu0 0.0
      %1054 = vmatpush.msra.mxu0 0.0
      %1055 = vmatpush.msra.mxu0 0.0
      %1056 = vmatpush.msra.mxu0 0.0
      %1057 = vmatpush.msra.mxu0 0.0
      %1058 = vmatpush.msra.mxu0 0.0
      %1059 = vmatpush.msra.mxu0 0.0
      %1060 = vmatpush.msra.mxu0 0.0
      %1061 = vmatpush.msra.mxu0 0.0
      %1062 = vmatpush.msra.mxu0 0.0
      %1063 = vmatpush.msra.mxu0 0.0
      %1064 = vmatpush.msra.mxu0 0.0
      %1065 = vmatpush.msra.mxu0 0.0
      %1066 = vmatpush.msra.mxu0 0.0
      %v1067 = vand.u32 %v951, 4294901760
      %v1068 = vsub.f32 %v951, %v1067
      %v1069 = vand.u32 %v1068, 4294901760
      %1070 = vmatpush.msra.mxu0 %v1069
      %v1071 = vand.u32 %v269, 4294901760
      %1072 = vmatmul.f32.gmra.mxu0 %v1071
      %v1073 = vpop.f32.mrf.mxu0
      %v1074 = vadd.f32 %v1050, %v1073
      %1075 = vdwg.mxu0
      %1076 = vmatpush.msra.mxu0 0.0
      %1077 = vmatpush.msra.mxu0 0.0
      %1078 = vmatpush.msra.mxu0 0.0
      %1079 = vmatpush.msra.mxu0 0.0
      %1080 = vmatpush.msra.mxu0 0.0
      %1081 = vmatpush.msra.mxu0 0.0
      %1082 = vmatpush.msra.mxu0 0.0
      %1083 = vmatpush.msra.mxu0 0.0
      %1084 = vmatpush.msra.mxu0 0.0
      %1085 = vmatpush.msra.mxu0 0.0
      %1086 = vmatpush.msra.mxu0 0.0
      %1087 = vmatpush.msra.mxu0 0.0
      %1088 = vmatpush.msra.mxu0 0.0
      %1089 = vmatpush.msra.mxu0 0.0
      %1090 = vmatpush.msra.mxu0 0.0
      %v1091 = vand.u32 %v951, 4294901760
      %1092 = vmatpush.msra.mxu0 %v1091
      %v1093 = vand.u32 %v269, 4294901760
      %1094 = vmatmul.f32.gmra.mxu0 %v1093
      %v1095 = vpop.f32.mrf.mxu0
      %v1096 = vadd.f32 %v1074, %v1095
      %1097 = vdwg.mxu0
      %v1098 = vrsqrt.pop %v1096
      %v1099 = vmul.f32 %v1098, %v1096
      %v1100 = vmul.f32 %v1099, %v1098
      %v1101 = vmul.f32 0.5, %v1100
      %v1102 = vsub.f32 1.5, %v1101
      %v1103 = vmul.f32 %v1098, %v1102
      %vm1104 = vweird.f32 %v1096
      %vm1105 = vweird.f32 %v1098
      %vm1106 = vmor %vm1104, %vm1105
      %v1107 = vsel %vm1106, %v1098, %v1103
      %1109 = vset.pattern.permute.xlu0 0
      %1110 = vperm.xlu0 %1109, %v1107
      %v1111 = vpop.permute.xlu0 %1110
      %v1113 = vmul.f32 %v944, %v1111
      %v1114 = vmul.f32 %v945, %v1111
      %v1115 = vld [vmem:[%s1 + $0x28] sm:$0xff]
      %1117 = vset.pattern.permute.xlu0 0
      %1118 = vperm.xlu0 %1117, %v1115
      %v1119 = vpop.permute.xlu0 %1118
      %v1121 = vmul.f32 %v1113, %v1119
      %v1122 = vmul.f32 %v1114, %v1119
      %v1123 = vld [vmem:[%s1 + $0x30] sm:$0xff]
      %1125 = vset.pattern.permute.xlu0 0
      %1126 = vperm.xlu0 %1125, %v1123
      %v1127 = vpop.permute.xlu0 %1126
      %v1129 = vadd.f32 %v1121, %v1127
      %v1130 = vadd.f32 %v1122, %v1127
      %v1131 = vld [vmem:[%s1 + $0x38] sm:$0xff]
      %v1132 = vpack.c.bf16 %v1131, %v1131
      %v1133 = vpack.c.bf16 %v607, %v607
      %v1134 = vpack.c.bf16 %v608, %v608
      %v1136 = vsel %vm267, %v1132, 0
      %v1139 = vsel %vm754, %v1133, 0
      %v1142 = vsel %vm754, %v1134, 0
      %1144 = vmatpush.bf16.msra.mxu0 0
      %1145 = vmatpush.bf16.msra.mxu0 0
      %1146 = vmatpush.bf16.msra.mxu0 0
      %1147 = vmatpush.bf16.msra.mxu0 0
      %1148 = vmatpush.bf16.msra.mxu0 0
      %1149 = vmatpush.bf16.msra.mxu0 0
      %1150 = vmatpush.bf16.msra.mxu0 0
      %1151 = vmatpush.bf16.msra.mxu0 %v1139
      %1152 = vmatmul.bf16.gmra.mxu0 %v1136
      %v1153 = vpop.f32.mrf.mxu0
      %v1154 = vadd.f32 0.0, %v1153
      %v1155 = vpop.f32.mrf.mxu0
      %1156 = vdwg.mxu0
      %1157 = vmatpush.bf16.msra.mxu0 0
      %1158 = vmatpush.bf16.msra.mxu0 0
      %1159 = vmatpush.bf16.msra.mxu0 0
      %1160 = vmatpush.bf16.msra.mxu0 0
      %1161 = vmatpush.bf16.msra.mxu0 0
      %1162 = vmatpush.bf16.msra.mxu0 0
      %1163 = vmatpush.bf16.msra.mxu0 0
      %1164 = vmatpush.bf16.msra.mxu0 %v1142
      %1165 = vmatmul.bf16.gmra.mxu0 %v1136
      %v1166 = vpop.f32.mrf.mxu0
      %v1167 = vadd.f32 0.0, %v1166
      %v1168 = vpop.f32.mrf.mxu0
      %1169 = vdwg.mxu0
      %v1170 = vmax.f32 %v1154, 0.0
      %v1171 = vmax.f32 %v1167, 0.0
      %v1172 = vadd.f32 %v1170, %v1171
      %1173 = vadd.xlane.f32.xlu0 %v1172
      %v1174 = vpop.xlane.xlu0 %1173
      %v1175 = vmul.f32 %v1174, %v265
      %1176 = vmatpush.msra.mxu0 0.0
      %1177 = vmatpush.msra.mxu0 0.0
      %1178 = vmatpush.msra.mxu0 0.0
      %1179 = vmatpush.msra.mxu0 0.0
      %1180 = vmatpush.msra.mxu0 0.0
      %1181 = vmatpush.msra.mxu0 0.0
      %1182 = vmatpush.msra.mxu0 0.0
      %1183 = vmatpush.msra.mxu0 0.0
      %1184 = vmatpush.msra.mxu0 0.0
      %1185 = vmatpush.msra.mxu0 0.0
      %1186 = vmatpush.msra.mxu0 0.0
      %1187 = vmatpush.msra.mxu0 0.0
      %1188 = vmatpush.msra.mxu0 0.0
      %1189 = vmatpush.msra.mxu0 0.0
      %1190 = vmatpush.msra.mxu0 0.0
      %v1191 = vand.u32 %v1175, 4294901760
      %1192 = vmatpush.msra.mxu0 %v1191
      %v1193 = vand.u32 %v269, 4294901760
      %v1194 = vsub.f32 %v269, %v1193
      %v1195 = vand.u32 %v1194, 4294901760
      %v1196 = vsub.f32 %v1194, %v1195
      %v1197 = vand.u32 %v1196, 4294901760
      %1198 = vmatmul.f32.gmra.mxu0 %v1197
      %v1199 = vpop.f32.mrf.mxu0
      %v1200 = vadd.f32 0.0, %v1199
      %1201 = vdwg.mxu0
      %1202 = vmatpush.msra.mxu0 0.0
      %1203 = vmatpush.msra.mxu0 0.0
      %1204 = vmatpush.msra.mxu0 0.0
      %1205 = vmatpush.msra.mxu0 0.0
      %1206 = vmatpush.msra.mxu0 0.0
      %1207 = vmatpush.msra.mxu0 0.0
      %1208 = vmatpush.msra.mxu0 0.0
      %1209 = vmatpush.msra.mxu0 0.0
      %1210 = vmatpush.msra.mxu0 0.0
      %1211 = vmatpush.msra.mxu0 0.0
      %1212 = vmatpush.msra.mxu0 0.0
      %1213 = vmatpush.msra.mxu0 0.0
      %1214 = vmatpush.msra.mxu0 0.0
      %1215 = vmatpush.msra.mxu0 0.0
      %1216 = vmatpush.msra.mxu0 0.0
      %v1217 = vand.u32 %v1175, 4294901760
      %v1218 = vsub.f32 %v1175, %v1217
      %v1219 = vand.u32 %v1218, 4294901760
      %v1220 = vsub.f32 %v1218, %v1219
      %v1221 = vand.u32 %v1220, 4294901760
      %1222 = vmatpush.msra.mxu0 %v1221
      %v1223 = vand.u32 %v269, 4294901760
      %1224 = vmatmul.f32.gmra.mxu0 %v1223
      %v1225 = vpop.f32.mrf.mxu0
      %v1226 = vadd.f32 %v1200, %v1225
      %1227 = vdwg.mxu0
      %1228 = vmatpush.msra.mxu0 0.0
      %1229 = vmatpush.msra.mxu0 0.0
      %1230 = vmatpush.msra.mxu0 0.0
      %1231 = vmatpush.msra.mxu0 0.0
      %1232 = vmatpush.msra.mxu0 0.0
      %1233 = vmatpush.msra.mxu0 0.0
      %1234 = vmatpush.msra.mxu0 0.0
      %1235 = vmatpush.msra.mxu0 0.0
      %1236 = vmatpush.msra.mxu0 0.0
      %1237 = vmatpush.msra.mxu0 0.0
      %1238 = vmatpush.msra.mxu0 0.0
      %1239 = vmatpush.msra.mxu0 0.0
      %1240 = vmatpush.msra.mxu0 0.0
      %1241 = vmatpush.msra.mxu0 0.0
      %1242 = vmatpush.msra.mxu0 0.0
      %v1243 = vand.u32 %v1175, 4294901760
      %v1244 = vsub.f32 %v1175, %v1243
      %1245 = vmatpush.msra.mxu0 %v1244
      %v1246 = vand.u32 %v269, 4294901760
      %v1247 = vsub.f32 %v269, %v1246
      %1248 = vmatmul.f32.gmra.mxu0 %v1247
      %v1249 = vpop.f32.mrf.mxu0
      %v1250 = vadd.f32 %v1226, %v1249
      %1251 = vdwg.mxu0
      %1252 = vmatpush.msra.mxu0 0.0
      %1253 = vmatpush.msra.mxu0 0.0
      %1254 = vmatpush.msra.mxu0 0.0
      %1255 = vmatpush.msra.mxu0 0.0
      %1256 = vmatpush.msra.mxu0 0.0
      %1257 = vmatpush.msra.mxu0 0.0
      %1258 = vmatpush.msra.mxu0 0.0
      %1259 = vmatpush.msra.mxu0 0.0
      %1260 = vmatpush.msra.mxu0 0.0
      %1261 = vmatpush.msra.mxu0 0.0
      %1262 = vmatpush.msra.mxu0 0.0
      %1263 = vmatpush.msra.mxu0 0.0
      %1264 = vmatpush.msra.mxu0 0.0
      %1265 = vmatpush.msra.mxu0 0.0
      %1266 = vmatpush.msra.mxu0 0.0
      %v1267 = vand.u32 %v1175, 4294901760
      %1268 = vmatpush.msra.mxu0 %v1267
      %v1269 = vand.u32 %v269, 4294901760
      %v1270 = vsub.f32 %v269, %v1269
      %v1271 = vand.u32 %v1270, 4294901760
      %1272 = vmatmul.f32.gmra.mxu0 %v1271
      %v1273 = vpop.f32.mrf.mxu0
      %v1274 = vadd.f32 %v1250, %v1273
      %1275 = vdwg.mxu0
      %1276 = vmatpush.msra.mxu0 0.0
      %1277 = vmatpush.msra.mxu0 0.0
      %1278 = vmatpush.msra.mxu0 0.0
      %1279 = vmatpush.msra.mxu0 0.0
      %1280 = vmatpush.msra.mxu0 0.0
      %1281 = vmatpush.msra.mxu0 0.0
      %1282 = vmatpush.msra.mxu0 0.0
      %1283 = vmatpush.msra.mxu0 0.0
      %1284 = vmatpush.msra.mxu0 0.0
      %1285 = vmatpush.msra.mxu0 0.0
      %1286 = vmatpush.msra.mxu0 0.0
      %1287 = vmatpush.msra.mxu0 0.0
      %1288 = vmatpush.msra.mxu0 0.0
      %1289 = vmatpush.msra.mxu0 0.0
      %1290 = vmatpush.msra.mxu0 0.0
      %v1291 = vand.u32 %v1175, 4294901760
      %v1292 = vsub.f32 %v1175, %v1291
      %v1293 = vand.u32 %v1292, 4294901760
      %1294 = vmatpush.msra.mxu0 %v1293
      %v1295 = vand.u32 %v269, 4294901760
      %1296 = vmatmul.f32.gmra.mxu0 %v1295
      %v1297 = vpop.f32.mrf.mxu0
      %v1298 = vadd.f32 %v1274, %v1297
      %1299 = vdwg.mxu0
      %1300 = vmatpush.msra.mxu0 0.0
      %1301 = vmatpush.msra.mxu0 0.0
      %1302 = vmatpush.msra.mxu0 0.0
      %1303 = vmatpush.msra.mxu0 0.0
      %1304 = vmatpush.msra.mxu0 0.0
      %1305 = vmatpush.msra.mxu0 0.0
      %1306 = vmatpush.msra.mxu0 0.0
      %1307 = vmatpush.msra.mxu0 0.0
      %1308 = vmatpush.msra.mxu0 0.0
      %1309 = vmatpush.msra.mxu0 0.0
      %1310 = vmatpush.msra.mxu0 0.0
      %1311 = vmatpush.msra.mxu0 0.0
      %1312 = vmatpush.msra.mxu0 0.0
      %1313 = vmatpush.msra.mxu0 0.0
      %1314 = vmatpush.msra.mxu0 0.0
      %v1315 = vand.u32 %v1175, 4294901760
      %1316 = vmatpush.msra.mxu0 %v1315
      %v1317 = vand.u32 %v269, 4294901760
      %1318 = vmatmul.f32.gmra.mxu0 %v1317
      %v1319 = vpop.f32.mrf.mxu0
      %v1320 = vadd.f32 %v1298, %v1319
      %1321 = vdwg.mxu0
      %1323 = vset.pattern.permute.xlu0 0
      %1324 = vperm.xlu0 %1323, %v1320
      %v1325 = vpop.permute.xlu0 %1324
      %v1327 = vsub.f32 %v1170, %v1325
      %v1328 = vsub.f32 %v1171, %v1325
      %v1329 = vmul.f32 %v1327, %v1327
      %v1330 = vmul.f32 %v1328, %v1328
      %v1331 = vadd.f32 %v1329, %v1330
      %1332 = vadd.xlane.f32.xlu0 %v1331
      %v1333 = vpop.xlane.xlu0 %1332
      %v1334 = vmul.f32 %v1333, %v265
      %1335 = vmatpush.msra.mxu0 0.0
      %1336 = vmatpush.msra.mxu0 0.0
      %1337 = vmatpush.msra.mxu0 0.0
      %1338 = vmatpush.msra.mxu0 0.0
      %1339 = vmatpush.msra.mxu0 0.0
      %1340 = vmatpush.msra.mxu0 0.0
      %1341 = vmatpush.msra.mxu0 0.0
      %1342 = vmatpush.msra.mxu0 0.0
      %1343 = vmatpush.msra.mxu0 0.0
      %1344 = vmatpush.msra.mxu0 0.0
      %1345 = vmatpush.msra.mxu0 0.0
      %1346 = vmatpush.msra.mxu0 0.0
      %1347 = vmatpush.msra.mxu0 0.0
      %1348 = vmatpush.msra.mxu0 0.0
      %1349 = vmatpush.msra.mxu0 0.0
      %v1350 = vand.u32 %v1334, 4294901760
      %1351 = vmatpush.msra.mxu0 %v1350
      %v1352 = vand.u32 %v269, 4294901760
      %v1353 = vsub.f32 %v269, %v1352
      %v1354 = vand.u32 %v1353, 4294901760
      %v1355 = vsub.f32 %v1353, %v1354
      %v1356 = vand.u32 %v1355, 4294901760
      %1357 = vmatmul.f32.gmra.mxu0 %v1356
      %v1358 = vpop.f32.mrf.mxu0
      %v1359 = vadd.f32 1e-05, %v1358
      %1360 = vdwg.mxu0
      %1361 = vmatpush.msra.mxu0 0.0
      %1362 = vmatpush.msra.mxu0 0.0
      %1363 = vmatpush.msra.mxu0 0.0
      %1364 = vmatpush.msra.mxu0 0.0
      %1365 = vmatpush.msra.mxu0 0.0
      %1366 = vmatpush.msra.mxu0 0.0
      %1367 = vmatpush.msra.mxu0 0.0
      %1368 = vmatpush.msra.mxu0 0.0
      %1369 = vmatpush.msra.mxu0 0.0
      %1370 = vmatpush.msra.mxu0 0.0
      %1371 = vmatpush.msra.mxu0 0.0
      %1372 = vmatpush.msra.mxu0 0.0
      %1373 = vmatpush.msra.mxu0 0.0
      %1374 = vmatpush.msra.mxu0 0.0
      %1375 = vmatpush.msra.mxu0 0.0
      %v1376 = vand.u32 %v1334, 4294901760
      %v1377 = vsub.f32 %v1334, %v1376
      %v1378 = vand.u32 %v1377, 4294901760
      %v1379 = vsub.f32 %v1377, %v1378
      %v1380 = vand.u32 %v1379, 4294901760
      %1381 = vmatpush.msra.mxu0 %v1380
      %v1382 = vand.u32 %v269, 4294901760
      %1383 = vmatmul.f32.gmra.mxu0 %v1382
      %v1384 = vpop.f32.mrf.mxu0
      %v1385 = vadd.f32 %v1359, %v1384
      %1386 = vdwg.mxu0
      %1387 = vmatpush.msra.mxu0 0.0
      %1388 = vmatpush.msra.mxu0 0.0
      %1389 = vmatpush.msra.mxu0 0.0
      %1390 = vmatpush.msra.mxu0 0.0
      %1391 = vmatpush.msra.mxu0 0.0
      %1392 = vmatpush.msra.mxu0 0.0
      %1393 = vmatpush.msra.mxu0 0.0
      %1394 = vmatpush.msra.mxu0 0.0
      %1395 = vmatpush.msra.mxu0 0.0
      %1396 = vmatpush.msra.mxu0 0.0
      %1397 = vmatpush.msra.mxu0 0.0
      %1398 = vmatpush.msra.mxu0 0.0
      %1399 = vmatpush.msra.mxu0 0.0
      %1400 = vmatpush.msra.mxu0 0.0
      %1401 = vmatpush.msra.mxu0 0.0
      %v1402 = vand.u32 %v1334, 4294901760
      %v1403 = vsub.f32 %v1334, %v1402
      %1404 = vmatpush.msra.mxu0 %v1403
      %v1405 = vand.u32 %v269, 4294901760
      %v1406 = vsub.f32 %v269, %v1405
      %1407 = vmatmul.f32.gmra.mxu0 %v1406
      %v1408 = vpop.f32.mrf.mxu0
      %v1409 = vadd.f32 %v1385, %v1408
      %1410 = vdwg.mxu0
      %1411 = vmatpush.msra.mxu0 0.0
      %1412 = vmatpush.msra.mxu0 0.0
      %1413 = vmatpush.msra.mxu0 0.0
      %1414 = vmatpush.msra.mxu0 0.0
      %1415 = vmatpush.msra.mxu0 0.0
      %1416 = vmatpush.msra.mxu0 0.0
      %1417 = vmatpush.msra.mxu0 0.0
      %1418 = vmatpush.msra.mxu0 0.0
      %1419 = vmatpush.msra.mxu0 0.0
      %1420 = vmatpush.msra.mxu0 0.0
      %1421 = vmatpush.msra.mxu0 0.0
      %1422 = vmatpush.msra.mxu0 0.0
      %1423 = vmatpush.msra.mxu0 0.0
      %1424 = vmatpush.msra.mxu0 0.0
      %1425 = vmatpush.msra.mxu0 0.0
      %v1426 = vand.u32 %v1334, 4294901760
      %1427 = vmatpush.msra.mxu0 %v1426
      %v1428 = vand.u32 %v269, 4294901760
      %v1429 = vsub.f32 %v269, %v1428
      %v1430 = vand.u32 %v1429, 4294901760
      %1431 = vmatmul.f32.gmra.mxu0 %v1430
      %v1432 = vpop.f32.mrf.mxu0
      %v1433 = vadd.f32 %v1409, %v1432
      %1434 = vdwg.mxu0
      %1435 = vmatpush.msra.mxu0 0.0
      %1436 = vmatpush.msra.mxu0 0.0
      %1437 = vmatpush.msra.mxu0 0.0
      %1438 = vmatpush.msra.mxu0 0.0
      %1439 = vmatpush.msra.mxu0 0.0
      %1440 = vmatpush.msra.mxu0 0.0
      %1441 = vmatpush.msra.mxu0 0.0
      %1442 = vmatpush.msra.mxu0 0.0
      %1443 = vmatpush.msra.mxu0 0.0
      %1444 = vmatpush.msra.mxu0 0.0
      %1445 = vmatpush.msra.mxu0 0.0
      %1446 = vmatpush.msra.mxu0 0.0
      %1447 = vmatpush.msra.mxu0 0.0
      %1448 = vmatpush.msra.mxu0 0.0
      %1449 = vmatpush.msra.mxu0 0.0
      %v1450 = vand.u32 %v1334, 4294901760
      %v1451 = vsub.f32 %v1334, %v1450
      %v1452 = vand.u32 %v1451, 4294901760
      %1453 = vmatpush.msra.mxu0 %v1452
      %v1454 = vand.u32 %v269, 4294901760
      %1455 = vmatmul.f32.gmra.mxu0 %v1454
      %v1456 = vpop.f32.mrf.mxu0
      %v1457 = vadd.f32 %v1433, %v1456
      %1458 = vdwg.mxu0
      %1459 = vmatpush.msra.mxu0 0.0
      %1460 = vmatpush.msra.mxu0 0.0
      %1461 = vmatpush.msra.mxu0 0.0
      %1462 = vmatpush.msra.mxu0 0.0
      %1463 = vmatpush.msra.mxu0 0.0
      %1464 = vmatpush.msra.mxu0 0.0
      %1465 = vmatpush.msra.mxu0 0.0
      %1466 = vmatpush.msra.mxu0 0.0
      %1467 = vmatpush.msra.mxu0 0.0
      %1468 = vmatpush.msra.mxu0 0.0
      %1469 = vmatpush.msra.mxu0 0.0
      %1470 = vmatpush.msra.mxu0 0.0
      %1471 = vmatpush.msra.mxu0 0.0
      %1472 = vmatpush.msra.mxu0 0.0
      %1473 = vmatpush.msra.mxu0 0.0
      %v1474 = vand.u32 %v1334, 4294901760
      %1475 = vmatpush.msra.mxu0 %v1474
      %v1476 = vand.u32 %v269, 4294901760
      %1477 = vmatmul.f32.gmra.mxu0 %v1476
      %v1478 = vpop.f32.mrf.mxu0
      %v1479 = vadd.f32 %v1457, %v1478
      %1480 = vdwg.mxu0
      %v1481 = vrsqrt.pop %v1479
      %v1482 = vmul.f32 %v1481, %v1479
      %v1483 = vmul.f32 %v1482, %v1481
      %v1484 = vmul.f32 0.5, %v1483
      %v1485 = vsub.f32 1.5, %v1484
      %v1486 = vmul.f32 %v1481, %v1485
      %vm1487 = vweird.f32 %v1479
      %vm1488 = vweird.f32 %v1481
      %vm1489 = vmor %vm1487, %vm1488
      %v1490 = vsel %vm1489, %v1481, %v1486
      %1492 = vset.pattern.permute.xlu0 0
      %1493 = vperm.xlu0 %1492, %v1490
      %v1494 = vpop.permute.xlu0 %1493
      %v1496 = vmul.f32 %v1327, %v1494
      %v1497 = vmul.f32 %v1328, %v1494
      %v1498 = vld [vmem:[%s1 + $0x40] sm:$0xff]
      %1500 = vset.pattern.permute.xlu0 0
      %1501 = vperm.xlu0 %1500, %v1498
      %v1502 = vpop.permute.xlu0 %1501
      %v1504 = vmul.f32 %v1496, %v1502
      %v1505 = vmul.f32 %v1497, %v1502
      %v1506 = vld [vmem:[%s1 + $0x48] sm:$0xff]
      %1508 = vset.pattern.permute.xlu0 0
      %1509 = vperm.xlu0 %1508, %v1506
      %v1510 = vpop.permute.xlu0 %1509
      %v1512 = vadd.f32 %v1504, %v1510
      %v1513 = vadd.f32 %v1505, %v1510
      %1514 = vrot.lane.b32.xlu0 %v1512, 17
      %v1515 = vpop.permute.xlu0 %1514
      %1516 = vrot.lane.b32.xlu0 %v1513, 17
      %v1517 = vpop.permute.xlu0 %1516
      %v1518 = vsel %vm615, %v1515, %v1517
      %v1519 = vsel %vm615, %v1517, %v1515
      %v1520 = vld [vmem:[%s3] ss:$8 sm:$0x3]
      %v1522 = vperm.slane %v1520, 0
      %v1523 = vperm.slane %v1520, 1
      %v1526 = vadd.f32 %v1519, %v1522
      %v1527 = vadd.f32 %v1518, %v1523
      %v1528 = vmax.f32 %v1512, %v1526
      %v1529 = vmax.f32 %v1513, %v1527
      %1530 = vrot.lane.b32.xlu0 %v1512, 16
      %v1531 = vpop.permute.xlu0 %1530
      %1532 = vrot.lane.b32.xlu0 %v1513, 16
      %v1533 = vpop.permute.xlu0 %1532
      %v1534 = vsel %vm630, %v1531, %v1533
      %v1535 = vsel %vm630, %v1533, %v1531
      %s1536 = scalar_lea.vmem %s3, 1
      %v1537 = vld [vmem:[%s1536] ss:$8 sm:$0x3]
      %v1539 = vperm.slane %v1537, 0
      %v1540 = vperm.slane %v1537, 1
      %v1543 = vadd.f32 %v1535, %v1539
      %v1544 = vadd.f32 %v1534, %v1540
      %v1545 = vmax.f32 %v1528, %v1543
      %v1546 = vmax.f32 %v1529, %v1544
      %1547 = vrot.lane.b32.xlu0 %v1512, 15
      %v1548 = vpop.permute.xlu0 %1547
      %1549 = vrot.lane.b32.xlu0 %v1513, 15
      %v1550 = vpop.permute.xlu0 %1549
      %v1551 = vsel %vm646, %v1548, %v1550
      %v1552 = vsel %vm646, %v1550, %v1548
      %s1553 = scalar_lea.vmem %s3, 2
      %v1554 = vld [vmem:[%s1553] ss:$8 sm:$0x3]
      %v1556 = vperm.slane %v1554, 0
      %v1557 = vperm.slane %v1554, 1
      %v1560 = vadd.f32 %v1552, %v1556
      %v1561 = vadd.f32 %v1551, %v1557
      %v1562 = vmax.f32 %v1545, %v1560
      %v1563 = vmax.f32 %v1546, %v1561
      %1564 = vrot.lane.b32.xlu0 %v1512, 1
      %v1565 = vpop.permute.xlu0 %1564
      %1566 = vrot.lane.b32.xlu0 %v1513, 1
      %v1567 = vpop.permute.xlu0 %1566
      %v1568 = vsel %vm662, %v1565, %v1567
      %v1569 = vsel %vm662, %v1567, %v1565
      %s1570 = scalar_lea.vmem %s3, 3
      %v1571 = vld [vmem:[%s1570] ss:$8 sm:$0x3]
      %v1573 = vperm.slane %v1571, 0
      %v1574 = vperm.slane %v1571, 1
      %v1577 = vadd.f32 %v1569, %v1573
      %v1578 = vadd.f32 %v1568, %v1574
      %v1579 = vmax.f32 %v1562, %v1577
      %v1580 = vmax.f32 %v1563, %v1578
      %1581 = vrot.lane.b32.xlu0 %v1512, 127
      %v1582 = vpop.permute.xlu0 %1581
      %1583 = vrot.lane.b32.xlu0 %v1513, 127
      %v1584 = vpop.permute.xlu0 %1583
      %v1585 = vsel %vm678, %v1582, %v1584
      %v1586 = vsel %vm678, %v1584, %v1582
      %s1587 = scalar_lea.vmem %s3, 5
      %v1588 = vld [vmem:[%s1587] ss:$8 sm:$0x3]
      %v1590 = vperm.slane %v1588, 0
      %v1591 = vperm.slane %v1588, 1
      %v1594 = vadd.f32 %v1585, %v1590
      %v1595 = vadd.f32 %v1586, %v1591
      %v1596 = vmax.f32 %v1579, %v1594
      %v1597 = vmax.f32 %v1580, %v1595
      %1598 = vrot.lane.b32.xlu0 %v1512, 113
      %v1599 = vpop.permute.xlu0 %1598
      %1600 = vrot.lane.b32.xlu0 %v1513, 113
      %v1601 = vpop.permute.xlu0 %1600
      %v1602 = vsel %vm694, %v1599, %v1601
      %v1603 = vsel %vm694, %v1601, %v1599
      %s1604 = scalar_lea.vmem %s3, 6
      %v1605 = vld [vmem:[%s1604] ss:$8 sm:$0x3]
      %v1607 = vperm.slane %v1605, 0
      %v1608 = vperm.slane %v1605, 1
      %v1611 = vadd.f32 %v1602, %v1607
      %v1612 = vadd.f32 %v1603, %v1608
      %v1613 = vmax.f32 %v1596, %v1611
      %v1614 = vmax.f32 %v1597, %v1612
      %1615 = vrot.lane.b32.xlu0 %v1512, 112
      %v1616 = vpop.permute.xlu0 %1615
      %1617 = vrot.lane.b32.xlu0 %v1513, 112
      %v1618 = vpop.permute.xlu0 %1617
      %v1619 = vsel %vm710, %v1616, %v1618
      %v1620 = vsel %vm710, %v1618, %v1616
      %s1621 = scalar_lea.vmem %s3, 7
      %v1622 = vld [vmem:[%s1621] ss:$8 sm:$0x3]
      %v1624 = vperm.slane %v1622, 0
      %v1625 = vperm.slane %v1622, 1
      %v1628 = vadd.f32 %v1619, %v1624
      %v1629 = vadd.f32 %v1620, %v1625
      %v1630 = vmax.f32 %v1613, %v1628
      %v1631 = vmax.f32 %v1614, %v1629
      %1632 = vrot.lane.b32.xlu0 %v1512, 111
      %v1633 = vpop.permute.xlu0 %1632
      %1634 = vrot.lane.b32.xlu0 %v1513, 111
      %v1635 = vpop.permute.xlu0 %1634
      %v1636 = vsel %vm726, %v1633, %v1635
      %v1637 = vsel %vm726, %v1635, %v1633
      %s1638 = scalar_lea.vmem %s3, 16
      %v1639 = vld [vmem:[%s1638] ss:$8 sm:$0x3]
      %v1641 = vperm.slane %v1639, 0
      %v1642 = vperm.slane %v1639, 1
      %v1645 = vadd.f32 %v1636, %v1641
      %v1646 = vadd.f32 %v1637, %v1642
      %v1647 = vmax.f32 %v1630, %v1645
      %v1648 = vmax.f32 %v1631, %v1646
      %v1649 = vld [vmem:[%s1 + $0x50] sm:$0xff]
      %v1650 = vpack.c.bf16 %v1649, %v1649
      %v1651 = vpack.c.bf16 %v1647, %v1647
      %v1652 = vpack.c.bf16 %v1648, %v1648
      %v1654 = vsel %vm267, %v1650, 0
      %v1657 = vsel %vm754, %v1651, 0
      %v1660 = vsel %vm754, %v1652, 0
      %1662 = vmatpush.bf16.msra.mxu0 0
      %1663 = vmatpush.bf16.msra.mxu0 0
      %1664 = vmatpush.bf16.msra.mxu0 0
      %1665 = vmatpush.bf16.msra.mxu0 0
      %1666 = vmatpush.bf16.msra.mxu0 0
      %1667 = vmatpush.bf16.msra.mxu0 0
      %1668 = vmatpush.bf16.msra.mxu0 0
      %1669 = vmatpush.bf16.msra.mxu0 %v1657
      %1670 = vmatmul.bf16.gmra.mxu0 %v1654
      %v1671 = vpop.f32.mrf.mxu0
      %v1672 = vadd.f32 0.0, %v1671
      %v1673 = vpop.f32.mrf.mxu0
      %1674 = vdwg.mxu0
      %1675 = vmatpush.bf16.msra.mxu0 0
      %1676 = vmatpush.bf16.msra.mxu0 0
      %1677 = vmatpush.bf16.msra.mxu0 0
      %1678 = vmatpush.bf16.msra.mxu0 0
      %1679 = vmatpush.bf16.msra.mxu0 0
      %1680 = vmatpush.bf16.msra.mxu0 0
      %1681 = vmatpush.bf16.msra.mxu0 0
      %1682 = vmatpush.bf16.msra.mxu0 %v1660
      %1683 = vmatmul.bf16.gmra.mxu0 %v1654
      %v1684 = vpop.f32.mrf.mxu0
      %v1685 = vadd.f32 0.0, %v1684
      %v1686 = vpop.f32.mrf.mxu0
      %1687 = vdwg.mxu0
      %v1688 = vmax.f32 %v1672, 0.0
      %v1689 = vmax.f32 %v1685, 0.0
      %v1690 = vld [vmem:[%s1 + $0x58] sm:$0xff]
      %v1691 = vpack.c.bf16 %v1690, %v1690
      %v1693 = vsel %vm750, %v1691, 0
      %1695 = vmatpush.bf16.msra.mxu0 0
      %1696 = vmatpush.bf16.msra.mxu0 0
      %1697 = vmatpush.bf16.msra.mxu0 0
      %1698 = vmatpush.bf16.msra.mxu0 %v756
      %1699 = vmatpush.bf16.msra.mxu0 %v744
      %1700 = vmatpush.bf16.msra.mxu0 %v742
      %1701 = vmatpush.bf16.msra.mxu0 %v740
      %1702 = vmatpush.bf16.msra.mxu0 %v738
      %1703 = vmatmul.bf16.gmra.mxu0 %v1693
      %v1704 = vpop.f32.mrf.mxu0
      %v1705 = vadd.f32 0.0, %v1704
      %v1706 = vpop.f32.mrf.mxu0
      %1707 = vdwg.mxu0
      %1708 = vmatpush.bf16.msra.mxu0 0
      %1709 = vmatpush.bf16.msra.mxu0 0
      %1710 = vmatpush.bf16.msra.mxu0 0
      %1711 = vmatpush.bf16.msra.mxu0 %v759
      %1712 = vmatpush.bf16.msra.mxu0 %v745
      %1713 = vmatpush.bf16.msra.mxu0 %v743
      %1714 = vmatpush.bf16.msra.mxu0 %v741
      %1715 = vmatpush.bf16.msra.mxu0 %v739
      %1716 = vmatmul.bf16.gmra.mxu0 %v1693
      %v1717 = vpop.f32.mrf.mxu0
      %v1718 = vadd.f32 0.0, %v1717
      %v1719 = vpop.f32.mrf.mxu0
      %1720 = vdwg.mxu0
      %1721 = vrot.lane.b32.xlu0 %v1705, 17
      %v1722 = vpop.permute.xlu0 %1721
      %1723 = vrot.lane.b32.xlu0 %v1718, 17
      %v1724 = vpop.permute.xlu0 %1723
      %v1725 = vsel %vm615, %v1722, %v1724
      %v1726 = vsel %vm615, %v1724, %v1722
      %v1727 = vmul.f32 %v1726, %v620
      %v1728 = vmul.f32 %v1725, %v621
      %1729 = vrot.lane.b32.xlu0 %v1705, 16
      %v1730 = vpop.permute.xlu0 %1729
      %1731 = vrot.lane.b32.xlu0 %v1718, 16
      %v1732 = vpop.permute.xlu0 %1731
      %v1733 = vsel %vm630, %v1730, %v1732
      %v1734 = vsel %vm630, %v1732, %v1730
      %v1735 = vmul.f32 %v1734, %v636
      %v1736 = vmul.f32 %v1733, %v637
      %1737 = vrot.lane.b32.xlu0 %v1705, 15
      %v1738 = vpop.permute.xlu0 %1737
      %1739 = vrot.lane.b32.xlu0 %v1718, 15
      %v1740 = vpop.permute.xlu0 %1739
      %v1741 = vsel %vm646, %v1738, %v1740
      %v1742 = vsel %vm646, %v1740, %v1738
      %v1743 = vmul.f32 %v1742, %v652
      %v1744 = vmul.f32 %v1741, %v653
      %1745 = vrot.lane.b32.xlu0 %v1705, 1
      %v1746 = vpop.permute.xlu0 %1745
      %1747 = vrot.lane.b32.xlu0 %v1718, 1
      %v1748 = vpop.permute.xlu0 %1747
      %v1749 = vsel %vm662, %v1746, %v1748
      %v1750 = vsel %vm662, %v1748, %v1746
      %v1751 = vmul.f32 %v1750, %v668
      %v1752 = vmul.f32 %v1749, %v669
      %1753 = vrot.lane.b32.xlu0 %v1705, 127
      %v1754 = vpop.permute.xlu0 %1753
      %1755 = vrot.lane.b32.xlu0 %v1718, 127
      %v1756 = vpop.permute.xlu0 %1755
      %v1757 = vsel %vm678, %v1754, %v1756
      %v1758 = vsel %vm678, %v1756, %v1754
      %v1759 = vmul.f32 %v1757, %v684
      %v1760 = vmul.f32 %v1758, %v685
      %1761 = vrot.lane.b32.xlu0 %v1705, 113
      %v1762 = vpop.permute.xlu0 %1761
      %1763 = vrot.lane.b32.xlu0 %v1718, 113
      %v1764 = vpop.permute.xlu0 %1763
      %v1765 = vsel %vm694, %v1762, %v1764
      %v1766 = vsel %vm694, %v1764, %v1762
      %v1767 = vmul.f32 %v1765, %v700
      %v1768 = vmul.f32 %v1766, %v701
      %1769 = vrot.lane.b32.xlu0 %v1705, 112
      %v1770 = vpop.permute.xlu0 %1769
      %1771 = vrot.lane.b32.xlu0 %v1718, 112
      %v1772 = vpop.permute.xlu0 %1771
      %v1773 = vsel %vm710, %v1770, %v1772
      %v1774 = vsel %vm710, %v1772, %v1770
      %v1775 = vmul.f32 %v1773, %v716
      %v1776 = vmul.f32 %v1774, %v717
      %1777 = vrot.lane.b32.xlu0 %v1705, 111
      %v1778 = vpop.permute.xlu0 %1777
      %1779 = vrot.lane.b32.xlu0 %v1718, 111
      %v1780 = vpop.permute.xlu0 %1779
      %v1781 = vsel %vm726, %v1778, %v1780
      %v1782 = vsel %vm726, %v1780, %v1778
      %v1783 = vmul.f32 %v1781, %v732
      %v1784 = vmul.f32 %v1782, %v733
      %v1785 = vpack.c.bf16 %v1735, %v1727
      %v1786 = vpack.c.bf16 %v1736, %v1728
      %v1787 = vpack.c.bf16 %v1751, %v1743
      %v1788 = vpack.c.bf16 %v1752, %v1744
      %v1789 = vpack.c.bf16 %v1759, %v1705
      %v1790 = vpack.c.bf16 %v1760, %v1718
      %v1791 = vpack.c.bf16 %v1775, %v1767
      %v1792 = vpack.c.bf16 %v1776, %v1768
      %v1793 = vpack.c.bf16 %v1783, %v1783
      %v1794 = vpack.c.bf16 %v1784, %v1784
      %v1795 = vld [vmem:[%s1 + $0x70] sm:$0xf]
      %v1796 = vpack.c.bf16 %v1795, %v1795
      %v1798 = vsel %vm750, %v1796, 0
      %v1801 = vsel %vm754, %v1793, 0
      %v1804 = vsel %vm754, %v1794, 0
      %1806 = vmatpush.bf16.msra.mxu0 0
      %1807 = vmatpush.bf16.msra.mxu0 0
      %1808 = vmatpush.bf16.msra.mxu0 0
      %1809 = vmatpush.bf16.msra.mxu0 %v1801
      %1810 = vmatpush.bf16.msra.mxu0 %v1791
      %1811 = vmatpush.bf16.msra.mxu0 %v1789
      %1812 = vmatpush.bf16.msra.mxu0 %v1787
      %1813 = vmatpush.bf16.msra.mxu0 %v1785
      %1814 = vmatmul.bf16.gmra.mxu0 %v1798
      %v1815 = vpop.f32.mrf.mxu0
      %v1816 = vadd.f32 0.0, %v1815
      %v1817 = vpop.f32.mrf.mxu0
      %1818 = vdwg.mxu0
      %1819 = vmatpush.bf16.msra.mxu0 0
      %1820 = vmatpush.bf16.msra.mxu0 0
      %1821 = vmatpush.bf16.msra.mxu0 0
      %1822 = vmatpush.bf16.msra.mxu0 %v1804
      %1823 = vmatpush.bf16.msra.mxu0 %v1792
      %1824 = vmatpush.bf16.msra.mxu0 %v1790
      %1825 = vmatpush.bf16.msra.mxu0 %v1788
      %1826 = vmatpush.bf16.msra.mxu0 %v1786
      %1827 = vmatmul.bf16.gmra.mxu0 %v1798
      %v1828 = vpop.f32.mrf.mxu0
      %v1829 = vadd.f32 0.0, %v1828
      %v1830 = vpop.f32.mrf.mxu0
      %1831 = vdwg.mxu0
      %v1832 = vld [vmem:[%s1 + $0x78] sm:$0xf]
      %vm1833 = vcmp.ge.f32.partialorder %v1816, 0.0
      %vm1834 = vcmp.ge.f32.partialorder %v1829, 0.0
      %1836 = vset.pattern.permute.xlu0 0
      %1837 = vperm.xlu0 %1836, %v1832
      %v1838 = vpop.permute.xlu0 %1837
      %v1840 = vmul.f32 %v1838, %v1816
      %v1841 = vmul.f32 %v1838, %v1829
      %v1842 = vsel %vm1833, %v1816, %v1840
      %v1843 = vsel %vm1834, %v1829, %v1841
      %v1844 = vsel %vm754, %v1842, 0.0
      %v1845 = vsel %vm754, %v1843, 0.0
      %v1846 = vadd.f32 %v1844, %v1845
      %1847 = vadd.xlane.f32.xlu0 %v1846
      %v1848 = vpop.xlane.xlu0 %1847
      %v1849 = vmul.f32 %v1848, %v265
      %v1850 = vsub.f32 %v1842, %v1849
      %v1851 = vsub.f32 %v1843, %v1849
      %v1852 = vmul.f32 %v1850, %v1850
      %v1853 = vmul.f32 %v1851, %v1851
      %v1854 = vsel %vm754, %v1852, 0.0
      %v1855 = vsel %vm754, %v1853, 0.0
      %v1856 = vadd.f32 %v1854, %v1855
      %1857 = vadd.xlane.f32.xlu0 %v1856
      %v1858 = vpop.xlane.xlu0 %1857
      %v1859 = vmul.f32 %v1858, %v265
      %v1860 = vadd.f32 %v1859, 1e-05
      %v1861 = vrsqrt.pop %v1860
      %v1862 = vmul.f32 %v1861, %v1860
      %v1863 = vmul.f32 %v1862, %v1861
      %v1864 = vmul.f32 0.5, %v1863
      %v1865 = vsub.f32 1.5, %v1864
      %v1866 = vmul.f32 %v1861, %v1865
      %vm1867 = vweird.f32 %v1860
      %vm1868 = vweird.f32 %v1861
      %vm1869 = vmor %vm1867, %vm1868
      %v1870 = vsel %vm1869, %v1861, %v1866
      %v1871 = vmul.f32 %v1850, %v1870
      %v1872 = vmul.f32 %v1851, %v1870
      %v1873 = vsub.f32 %v1705, %v607
      %v1874 = vsub.f32 %v1718, %v608
      %v1875 = vld [vmem:[%s1 + $0x60] sm:$0xf]
      %v1876 = vpack.c.bf16 %v1875, %v1875
      %v1877 = vpack.c.bf16 %v1873, %v1873
      %v1878 = vpack.c.bf16 %v1874, %v1874
      %v1880 = vsel %vm267, %v1876, 0
      %v1883 = vsel %vm754, %v1877, 0
      %v1886 = vsel %vm754, %v1878, 0
      %1888 = vmatpush.bf16.msra.mxu0 0
      %1889 = vmatpush.bf16.msra.mxu0 0
      %1890 = vmatpush.bf16.msra.mxu0 0
      %1891 = vmatpush.bf16.msra.mxu0 0
      %1892 = vmatpush.bf16.msra.mxu0 0
      %1893 = vmatpush.bf16.msra.mxu0 0
      %1894 = vmatpush.bf16.msra.mxu0 0
      %1895 = vmatpush.bf16.msra.mxu0 %v1883
      %1896 = vmatmul.bf16.gmra.mxu0 %v1880
      %v1897 = vpop.f32.mrf.mxu0
      %v1898 = vadd.f32 0.0, %v1897
      %v1899 = vpop.f32.mrf.mxu0
      %1900 = vdwg.mxu0
      %1901 = vmatpush.bf16.msra.mxu0 0
      %1902 = vmatpush.bf16.msra.mxu0 0
      %1903 = vmatpush.bf16.msra.mxu0 0
      %1904 = vmatpush.bf16.msra.mxu0 0
      %1905 = vmatpush.bf16.msra.mxu0 0
      %1906 = vmatpush.bf16.msra.mxu0 0
      %1907 = vmatpush.bf16.msra.mxu0 0
      %1908 = vmatpush.bf16.msra.mxu0 %v1886
      %1909 = vmatmul.bf16.gmra.mxu0 %v1880
      %v1910 = vpop.f32.mrf.mxu0
      %v1911 = vadd.f32 0.0, %v1910
      %v1912 = vpop.f32.mrf.mxu0
      %1913 = vdwg.mxu0
      %v1914 = vld [vmem:[%s1 + $0x68] sm:$0xf]
      %vm1915 = vcmp.ge.f32.partialorder %v1898, 0.0
      %vm1916 = vcmp.ge.f32.partialorder %v1911, 0.0
      %1918 = vset.pattern.permute.xlu0 0
      %1919 = vperm.xlu0 %1918, %v1914
      %v1920 = vpop.permute.xlu0 %1919
      %v1922 = vmul.f32 %v1920, %v1898
      %v1923 = vmul.f32 %v1920, %v1911
      %v1924 = vsel %vm1915, %v1898, %v1922
      %v1925 = vsel %vm1916, %v1911, %v1923
      %v1926 = vsel %vm754, %v1924, 0.0
      %v1927 = vsel %vm754, %v1925, 0.0
      %v1928 = vadd.f32 %v1926, %v1927
      %1929 = vadd.xlane.f32.xlu0 %v1928
      %v1930 = vpop.xlane.xlu0 %1929
      %v1931 = vmul.f32 %v1930, %v265
      %v1932 = vsub.f32 %v1924, %v1931
      %v1933 = vsub.f32 %v1925, %v1931
      %v1934 = vmul.f32 %v1932, %v1932
      %v1935 = vmul.f32 %v1933, %v1933
      %v1936 = vsel %vm754, %v1934, 0.0
      %v1937 = vsel %vm754, %v1935, 0.0
      %v1938 = vadd.f32 %v1936, %v1937
      %1939 = vadd.xlane.f32.xlu0 %v1938
      %v1940 = vpop.xlane.xlu0 %1939
      %v1941 = vmul.f32 %v1940, %v265
      %v1942 = vadd.f32 %v1941, 1e-05
      %v1943 = vrsqrt.pop %v1942
      %v1944 = vmul.f32 %v1943, %v1942
      %v1945 = vmul.f32 %v1944, %v1943
      %v1946 = vmul.f32 0.5, %v1945
      %v1947 = vsub.f32 1.5, %v1946
      %v1948 = vmul.f32 %v1943, %v1947
      %vm1949 = vweird.f32 %v1942
      %vm1950 = vweird.f32 %v1943
      %vm1951 = vmor %vm1949, %vm1950
      %v1952 = vsel %vm1951, %v1943, %v1948
      %v1953 = vmul.f32 %v1932, %v1952
      %v1954 = vmul.f32 %v1933, %v1952
      %v1955 = vadd.f32 %v1953, %v1871
      %v1956 = vadd.f32 %v1954, %v1872
      %1957 = vrot.lane.b32.xlu0 %v1955, 17
      %v1958 = vpop.permute.xlu0 %1957
      %1959 = vrot.lane.b32.xlu0 %v1956, 17
      %v1960 = vpop.permute.xlu0 %1959
      %v1961 = vsel %vm615, %v1958, %v1960
      %v1962 = vsel %vm615, %v1960, %v1958
      %v1963 = vmul.f32 %v1962, %v620
      %v1964 = vmul.f32 %v1961, %v621
      %1965 = vrot.lane.b32.xlu0 %v1955, 16
      %v1966 = vpop.permute.xlu0 %1965
      %1967 = vrot.lane.b32.xlu0 %v1956, 16
      %v1968 = vpop.permute.xlu0 %1967
      %v1969 = vsel %vm630, %v1966, %v1968
      %v1970 = vsel %vm630, %v1968, %v1966
      %v1971 = vmul.f32 %v1970, %v636
      %v1972 = vmul.f32 %v1969, %v637
      %1973 = vrot.lane.b32.xlu0 %v1955, 15
      %v1974 = vpop.permute.xlu0 %1973
      %1975 = vrot.lane.b32.xlu0 %v1956, 15
      %v1976 = vpop.permute.xlu0 %1975
      %v1977 = vsel %vm646, %v1974, %v1976
      %v1978 = vsel %vm646, %v1976, %v1974
      %v1979 = vmul.f32 %v1978, %v652
      %v1980 = vmul.f32 %v1977, %v653
      %1981 = vrot.lane.b32.xlu0 %v1955, 1
      %v1982 = vpop.permute.xlu0 %1981
      %1983 = vrot.lane.b32.xlu0 %v1956, 1
      %v1984 = vpop.permute.xlu0 %1983
      %v1985 = vsel %vm662, %v1982, %v1984
      %v1986 = vsel %vm662, %v1984, %v1982
      %v1987 = vmul.f32 %v1986, %v668
      %v1988 = vmul.f32 %v1985, %v669
      %1989 = vrot.lane.b32.xlu0 %v1955, 127
      %v1990 = vpop.permute.xlu0 %1989
      %1991 = vrot.lane.b32.xlu0 %v1956, 127
      %v1992 = vpop.permute.xlu0 %1991
      %v1993 = vsel %vm678, %v1990, %v1992
      %v1994 = vsel %vm678, %v1992, %v1990
      %v1995 = vmul.f32 %v1993, %v684
      %v1996 = vmul.f32 %v1994, %v685
      %1997 = vrot.lane.b32.xlu0 %v1955, 113
      %v1998 = vpop.permute.xlu0 %1997
      %1999 = vrot.lane.b32.xlu0 %v1956, 113
      %v2000 = vpop.permute.xlu0 %1999
      %v2001 = vsel %vm694, %v1998, %v2000
      %v2002 = vsel %vm694, %v2000, %v1998
      %v2003 = vmul.f32 %v2001, %v700
      %v2004 = vmul.f32 %v2002, %v701
      %2005 = vrot.lane.b32.xlu0 %v1955, 112
      %v2006 = vpop.permute.xlu0 %2005
      %2007 = vrot.lane.b32.xlu0 %v1956, 112
      %v2008 = vpop.permute.xlu0 %2007
      %v2009 = vsel %vm710, %v2006, %v2008
      %v2010 = vsel %vm710, %v2008, %v2006
      %v2011 = vmul.f32 %v2009, %v716
      %v2012 = vmul.f32 %v2010, %v717
      %2013 = vrot.lane.b32.xlu0 %v1955, 111
      %v2014 = vpop.permute.xlu0 %2013
      %2015 = vrot.lane.b32.xlu0 %v1956, 111
      %v2016 = vpop.permute.xlu0 %2015
      %v2017 = vsel %vm726, %v2014, %v2016
      %v2018 = vsel %vm726, %v2016, %v2014
      %v2019 = vmul.f32 %v2017, %v732
      %v2020 = vmul.f32 %v2018, %v733
      %v2023 = vrot.slane %v1971, 4
      %v2024 = vrot.slane %v1972, 4
      %v2029 = vrot.slane %v1987, 4
      %v2030 = vrot.slane %v1988, 4
      %v2035 = vrot.slane %v1995, 4
      %v2036 = vrot.slane %v1996, 4
      %v2041 = vrot.slane %v2011, 4
      %v2042 = vrot.slane %v2012, 4
      %v2045 = vsel %vm754, %v1963, %v2023
      %v2046 = vsel %vm754, %v1964, %v2024
      %v2047 = vsel %vm754, %v1979, %v2029
      %v2048 = vsel %vm754, %v1980, %v2030
      %v2049 = vsel %vm754, %v1955, %v2035
      %v2050 = vsel %vm754, %v1956, %v2036
      %v2051 = vsel %vm754, %v2003, %v2041
      %v2052 = vsel %vm754, %v2004, %v2042
      %v2053 = vpack.c.bf16 %v2047, %v2045
      %v2054 = vpack.c.bf16 %v2048, %v2046
      %v2055 = vpack.c.bf16 %v2051, %v2049
      %v2056 = vpack.c.bf16 %v2052, %v2050
      %v2057 = vpack.c.bf16 %v2019, %v2019
      %v2058 = vpack.c.bf16 %v2020, %v2020
      %v2059 = vld [vmem:[%s1 + $0x80] sm:$0xff]
      %v2060 = vpack.c.bf16 %v2059, %v2059
      %vm2061 = vcmask 293888
      %v2063 = vsel %vm2061, %v2060, 0
      %vm2065 = vcmask 1041408
      %v2067 = vsel %vm2065, %v2057, 0
      %v2070 = vsel %vm2065, %v2058, 0
      %2072 = vmatpush.bf16.msra.mxu0 0
      %2073 = vmatpush.bf16.msra.mxu0 0
      %2074 = vmatpush.bf16.msra.mxu0 0
      %2075 = vmatpush.bf16.msra.mxu0 0
      %2076 = vmatpush.bf16.msra.mxu0 0
      %2077 = vmatpush.bf16.msra.mxu0 %v2067
      %2078 = vmatpush.bf16.msra.mxu0 %v2055
      %2079 = vmatpush.bf16.msra.mxu0 %v2053
      %2080 = vmatmul.bf16.gmra.mxu0 %v2063
      %v2081 = vpop.f32.mrf.mxu0
      %v2082 = vadd.f32 0.0, %v2081
      %v2083 = vpop.f32.mrf.mxu0
      %2084 = vdwg.mxu0
      %2085 = vmatpush.bf16.msra.mxu0 0
      %2086 = vmatpush.bf16.msra.mxu0 0
      %2087 = vmatpush.bf16.msra.mxu0 0
      %2088 = vmatpush.bf16.msra.mxu0 0
      %2089 = vmatpush.bf16.msra.mxu0 0
      %2090 = vmatpush.bf16.msra.mxu0 %v2070
      %2091 = vmatpush.bf16.msra.mxu0 %v2056
      %2092 = vmatpush.bf16.msra.mxu0 %v2054
      %2093 = vmatmul.bf16.gmra.mxu0 %v2063
      %v2094 = vpop.f32.mrf.mxu0
      %v2095 = vadd.f32 0.0, %v2094
      %v2096 = vpop.f32.mrf.mxu0
      %2097 = vdwg.mxu0
      %v2098 = vld [vmem:[%s1 + $0x88] sm:$0xff]
      %vm2099 = vcmp.ge.f32.partialorder %v2082, 0.0
      %vm2100 = vcmp.ge.f32.partialorder %v2095, 0.0
      %2102 = vset.pattern.permute.xlu0 0
      %2103 = vperm.xlu0 %2102, %v2098
      %v2104 = vpop.permute.xlu0 %2103
      %v2106 = vmul.f32 %v2104, %v2082
      %v2107 = vmul.f32 %v2104, %v2095
      %v2108 = vsel %vm2099, %v2082, %v2106
      %v2109 = vsel %vm2100, %v2095, %v2107
      %v2110 = vadd.f32 %v2108, %v2109
      %2111 = vadd.xlane.f32.xlu0 %v2110
      %v2112 = vpop.xlane.xlu0 %2111
      %v2113 = vmul.f32 %v2112, %v265
      %2114 = vmatpush.msra.mxu0 0.0
      %2115 = vmatpush.msra.mxu0 0.0
      %2116 = vmatpush.msra.mxu0 0.0
      %2117 = vmatpush.msra.mxu0 0.0
      %2118 = vmatpush.msra.mxu0 0.0
      %2119 = vmatpush.msra.mxu0 0.0
      %2120 = vmatpush.msra.mxu0 0.0
      %2121 = vmatpush.msra.mxu0 0.0
      %2122 = vmatpush.msra.mxu0 0.0
      %2123 = vmatpush.msra.mxu0 0.0
      %2124 = vmatpush.msra.mxu0 0.0
      %2125 = vmatpush.msra.mxu0 0.0
      %2126 = vmatpush.msra.mxu0 0.0
      %2127 = vmatpush.msra.mxu0 0.0
      %2128 = vmatpush.msra.mxu0 0.0
      %v2129 = vand.u32 %v2113, 4294901760
      %2130 = vmatpush.msra.mxu0 %v2129
      %v2131 = vand.u32 %v269, 4294901760
      %v2132 = vsub.f32 %v269, %v2131
      %v2133 = vand.u32 %v2132, 4294901760
      %v2134 = vsub.f32 %v2132, %v2133
      %v2135 = vand.u32 %v2134, 4294901760
      %2136 = vmatmul.f32.gmra.mxu0 %v2135
      %v2137 = vpop.f32.mrf.mxu0
      %v2138 = vadd.f32 0.0, %v2137
      %2139 = vdwg.mxu0
      %2140 = vmatpush.msra.mxu0 0.0
      %2141 = vmatpush.msra.mxu0 0.0
      %2142 = vmatpush.msra.mxu0 0.0
      %2143 = vmatpush.msra.mxu0 0.0
      %2144 = vmatpush.msra.mxu0 0.0
      %2145 = vmatpush.msra.mxu0 0.0
      %2146 = vmatpush.msra.mxu0 0.0
      %2147 = vmatpush.msra.mxu0 0.0
      %2148 = vmatpush.msra.mxu0 0.0
      %2149 = vmatpush.msra.mxu0 0.0
      %2150 = vmatpush.msra.mxu0 0.0
      %2151 = vmatpush.msra.mxu0 0.0
      %2152 = vmatpush.msra.mxu0 0.0
      %2153 = vmatpush.msra.mxu0 0.0
      %2154 = vmatpush.msra.mxu0 0.0
      %v2155 = vand.u32 %v2113, 4294901760
      %v2156 = vsub.f32 %v2113, %v2155
      %v2157 = vand.u32 %v2156, 4294901760
      %v2158 = vsub.f32 %v2156, %v2157
      %v2159 = vand.u32 %v2158, 4294901760
      %2160 = vmatpush.msra.mxu0 %v2159
      %v2161 = vand.u32 %v269, 4294901760
      %2162 = vmatmul.f32.gmra.mxu0 %v2161
      %v2163 = vpop.f32.mrf.mxu0
      %v2164 = vadd.f32 %v2138, %v2163
      %2165 = vdwg.mxu0
      %2166 = vmatpush.msra.mxu0 0.0
      %2167 = vmatpush.msra.mxu0 0.0
      %2168 = vmatpush.msra.mxu0 0.0
      %2169 = vmatpush.msra.mxu0 0.0
      %2170 = vmatpush.msra.mxu0 0.0
      %2171 = vmatpush.msra.mxu0 0.0
      %2172 = vmatpush.msra.mxu0 0.0
      %2173 = vmatpush.msra.mxu0 0.0
      %2174 = vmatpush.msra.mxu0 0.0
      %2175 = vmatpush.msra.mxu0 0.0
      %2176 = vmatpush.msra.mxu0 0.0
      %2177 = vmatpush.msra.mxu0 0.0
      %2178 = vmatpush.msra.mxu0 0.0
      %2179 = vmatpush.msra.mxu0 0.0
      %2180 = vmatpush.msra.mxu0 0.0
      %v2181 = vand.u32 %v2113, 4294901760
      %v2182 = vsub.f32 %v2113, %v2181
      %2183 = vmatpush.msra.mxu0 %v2182
      %v2184 = vand.u32 %v269, 4294901760
      %v2185 = vsub.f32 %v269, %v2184
      %2186 = vmatmul.f32.gmra.mxu0 %v2185
      %v2187 = vpop.f32.mrf.mxu0
      %v2188 = vadd.f32 %v2164, %v2187
      %2189 = vdwg.mxu0
      %2190 = vmatpush.msra.mxu0 0.0
      %2191 = vmatpush.msra.mxu0 0.0
      %2192 = vmatpush.msra.mxu0 0.0
      %2193 = vmatpush.msra.mxu0 0.0
      %2194 = vmatpush.msra.mxu0 0.0
      %2195 = vmatpush.msra.mxu0 0.0
      %2196 = vmatpush.msra.mxu0 0.0
      %2197 = vmatpush.msra.mxu0 0.0
      %2198 = vmatpush.msra.mxu0 0.0
      %2199 = vmatpush.msra.mxu0 0.0
      %2200 = vmatpush.msra.mxu0 0.0
      %2201 = vmatpush.msra.mxu0 0.0
      %2202 = vmatpush.msra.mxu0 0.0
      %2203 = vmatpush.msra.mxu0 0.0
      %2204 = vmatpush.msra.mxu0 0.0
      %v2205 = vand.u32 %v2113, 4294901760
      %2206 = vmatpush.msra.mxu0 %v2205
      %v2207 = vand.u32 %v269, 4294901760
      %v2208 = vsub.f32 %v269, %v2207
      %v2209 = vand.u32 %v2208, 4294901760
      %2210 = vmatmul.f32.gmra.mxu0 %v2209
      %v2211 = vpop.f32.mrf.mxu0
      %v2212 = vadd.f32 %v2188, %v2211
      %2213 = vdwg.mxu0
      %2214 = vmatpush.msra.mxu0 0.0
      %2215 = vmatpush.msra.mxu0 0.0
      %2216 = vmatpush.msra.mxu0 0.0
      %2217 = vmatpush.msra.mxu0 0.0
      %2218 = vmatpush.msra.mxu0 0.0
      %2219 = vmatpush.msra.mxu0 0.0
      %2220 = vmatpush.msra.mxu0 0.0
      %2221 = vmatpush.msra.mxu0 0.0
      %2222 = vmatpush.msra.mxu0 0.0
      %2223 = vmatpush.msra.mxu0 0.0
      %2224 = vmatpush.msra.mxu0 0.0
      %2225 = vmatpush.msra.mxu0 0.0
      %2226 = vmatpush.msra.mxu0 0.0
      %2227 = vmatpush.msra.mxu0 0.0
      %2228 = vmatpush.msra.mxu0 0.0
      %v2229 = vand.u32 %v2113, 4294901760
      %v2230 = vsub.f32 %v2113, %v2229
      %v2231 = vand.u32 %v2230, 4294901760
      %2232 = vmatpush.msra.mxu0 %v2231
      %v2233 = vand.u32 %v269, 4294901760
      %2234 = vmatmul.f32.gmra.mxu0 %v2233
      %v2235 = vpop.f32.mrf.mxu0
      %v2236 = vadd.f32 %v2212, %v2235
      %2237 = vdwg.mxu0
      %2238 = vmatpush.msra.mxu0 0.0
      %2239 = vmatpush.msra.mxu0 0.0
      %2240 = vmatpush.msra.mxu0 0.0
      %2241 = vmatpush.msra.mxu0 0.0
      %2242 = vmatpush.msra.mxu0 0.0
      %2243 = vmatpush.msra.mxu0 0.0
      %2244 = vmatpush.msra.mxu0 0.0
      %2245 = vmatpush.msra.mxu0 0.0
      %2246 = vmatpush.msra.mxu0 0.0
      %2247 = vmatpush.msra.mxu0 0.0
      %2248 = vmatpush.msra.mxu0 0.0
      %2249 = vmatpush.msra.mxu0 0.0
      %2250 = vmatpush.msra.mxu0 0.0
      %2251 = vmatpush.msra.mxu0 0.0
      %2252 = vmatpush.msra.mxu0 0.0
      %v2253 = vand.u32 %v2113, 4294901760
      %2254 = vmatpush.msra.mxu0 %v2253
      %v2255 = vand.u32 %v269, 4294901760
      %2256 = vmatmul.f32.gmra.mxu0 %v2255
      %v2257 = vpop.f32.mrf.mxu0
      %v2258 = vadd.f32 %v2236, %v2257
      %2259 = vdwg.mxu0
      %2261 = vset.pattern.permute.xlu0 0
      %2262 = vperm.xlu0 %2261, %v2258
      %v2263 = vpop.permute.xlu0 %2262
      %v2265 = vsub.f32 %v2108, %v2263
      %v2266 = vsub.f32 %v2109, %v2263
      %v2267 = vmul.f32 %v2265, %v2265
      %v2268 = vmul.f32 %v2266, %v2266
      %v2269 = vadd.f32 %v2267, %v2268
      %2270 = vadd.xlane.f32.xlu0 %v2269
      %v2271 = vpop.xlane.xlu0 %2270
      %v2272 = vmul.f32 %v2271, %v265
      %2273 = vmatpush.msra.mxu0 0.0
      %2274 = vmatpush.msra.mxu0 0.0
      %2275 = vmatpush.msra.mxu0 0.0
      %2276 = vmatpush.msra.mxu0 0.0
      %2277 = vmatpush.msra.mxu0 0.0
      %2278 = vmatpush.msra.mxu0 0.0
      %2279 = vmatpush.msra.mxu0 0.0
      %2280 = vmatpush.msra.mxu0 0.0
      %2281 = vmatpush.msra.mxu0 0.0
      %2282 = vmatpush.msra.mxu0 0.0
      %2283 = vmatpush.msra.mxu0 0.0
      %2284 = vmatpush.msra.mxu0 0.0
      %2285 = vmatpush.msra.mxu0 0.0
      %2286 = vmatpush.msra.mxu0 0.0
      %2287 = vmatpush.msra.mxu0 0.0
      %v2288 = vand.u32 %v2272, 4294901760
      %2289 = vmatpush.msra.mxu0 %v2288
      %v2290 = vand.u32 %v269, 4294901760
      %v2291 = vsub.f32 %v269, %v2290
      %v2292 = vand.u32 %v2291, 4294901760
      %v2293 = vsub.f32 %v2291, %v2292
      %v2294 = vand.u32 %v2293, 4294901760
      %2295 = vmatmul.f32.gmra.mxu0 %v2294
      %v2296 = vpop.f32.mrf.mxu0
      %v2297 = vadd.f32 1e-05, %v2296
      %2298 = vdwg.mxu0
      %2299 = vmatpush.msra.mxu0 0.0
      %2300 = vmatpush.msra.mxu0 0.0
      %2301 = vmatpush.msra.mxu0 0.0
      %2302 = vmatpush.msra.mxu0 0.0
      %2303 = vmatpush.msra.mxu0 0.0
      %2304 = vmatpush.msra.mxu0 0.0
      %2305 = vmatpush.msra.mxu0 0.0
      %2306 = vmatpush.msra.mxu0 0.0
      %2307 = vmatpush.msra.mxu0 0.0
      %2308 = vmatpush.msra.mxu0 0.0
      %2309 = vmatpush.msra.mxu0 0.0
      %2310 = vmatpush.msra.mxu0 0.0
      %2311 = vmatpush.msra.mxu0 0.0
      %2312 = vmatpush.msra.mxu0 0.0
      %2313 = vmatpush.msra.mxu0 0.0
      %v2314 = vand.u32 %v2272, 4294901760
      %v2315 = vsub.f32 %v2272, %v2314
      %v2316 = vand.u32 %v2315, 4294901760
      %v2317 = vsub.f32 %v2315, %v2316
      %v2318 = vand.u32 %v2317, 4294901760
      %2319 = vmatpush.msra.mxu0 %v2318
      %v2320 = vand.u32 %v269, 4294901760
      %2321 = vmatmul.f32.gmra.mxu0 %v2320
      %v2322 = vpop.f32.mrf.mxu0
      %v2323 = vadd.f32 %v2297, %v2322
      %2324 = vdwg.mxu0
      %2325 = vmatpush.msra.mxu0 0.0
      %2326 = vmatpush.msra.mxu0 0.0
      %2327 = vmatpush.msra.mxu0 0.0
      %2328 = vmatpush.msra.mxu0 0.0
      %2329 = vmatpush.msra.mxu0 0.0
      %2330 = vmatpush.msra.mxu0 0.0
      %2331 = vmatpush.msra.mxu0 0.0
      %2332 = vmatpush.msra.mxu0 0.0
      %2333 = vmatpush.msra.mxu0 0.0
      %2334 = vmatpush.msra.mxu0 0.0
      %2335 = vmatpush.msra.mxu0 0.0
      %2336 = vmatpush.msra.mxu0 0.0
      %2337 = vmatpush.msra.mxu0 0.0
      %2338 = vmatpush.msra.mxu0 0.0
      %2339 = vmatpush.msra.mxu0 0.0
      %v2340 = vand.u32 %v2272, 4294901760
      %v2341 = vsub.f32 %v2272, %v2340
      %2342 = vmatpush.msra.mxu0 %v2341
      %v2343 = vand.u32 %v269, 4294901760
      %v2344 = vsub.f32 %v269, %v2343
      %2345 = vmatmul.f32.gmra.mxu0 %v2344
      %v2346 = vpop.f32.mrf.mxu0
      %v2347 = vadd.f32 %v2323, %v2346
      %2348 = vdwg.mxu0
      %2349 = vmatpush.msra.mxu0 0.0
      %2350 = vmatpush.msra.mxu0 0.0
      %2351 = vmatpush.msra.mxu0 0.0
      %2352 = vmatpush.msra.mxu0 0.0
      %2353 = vmatpush.msra.mxu0 0.0
      %2354 = vmatpush.msra.mxu0 0.0
      %2355 = vmatpush.msra.mxu0 0.0
      %2356 = vmatpush.msra.mxu0 0.0
      %2357 = vmatpush.msra.mxu0 0.0
      %2358 = vmatpush.msra.mxu0 0.0
      %2359 = vmatpush.msra.mxu0 0.0
      %2360 = vmatpush.msra.mxu0 0.0
      %2361 = vmatpush.msra.mxu0 0.0
      %2362 = vmatpush.msra.mxu0 0.0
      %2363 = vmatpush.msra.mxu0 0.0
      %v2364 = vand.u32 %v2272, 4294901760
      %2365 = vmatpush.msra.mxu0 %v2364
      %v2366 = vand.u32 %v269, 4294901760
      %v2367 = vsub.f32 %v269, %v2366
      %v2368 = vand.u32 %v2367, 4294901760
      %2369 = vmatmul.f32.gmra.mxu0 %v2368
      %v2370 = vpop.f32.mrf.mxu0
      %v2371 = vadd.f32 %v2347, %v2370
      %2372 = vdwg.mxu0
      %2373 = vmatpush.msra.mxu0 0.0
      %2374 = vmatpush.msra.mxu0 0.0
      %2375 = vmatpush.msra.mxu0 0.0
      %2376 = vmatpush.msra.mxu0 0.0
      %2377 = vmatpush.msra.mxu0 0.0
      %2378 = vmatpush.msra.mxu0 0.0
      %2379 = vmatpush.msra.mxu0 0.0
      %2380 = vmatpush.msra.mxu0 0.0
      %2381 = vmatpush.msra.mxu0 0.0
      %2382 = vmatpush.msra.mxu0 0.0
      %2383 = vmatpush.msra.mxu0 0.0
      %2384 = vmatpush.msra.mxu0 0.0
      %2385 = vmatpush.msra.mxu0 0.0
      %2386 = vmatpush.msra.mxu0 0.0
      %2387 = vmatpush.msra.mxu0 0.0
      %v2388 = vand.u32 %v2272, 4294901760
      %v2389 = vsub.f32 %v2272, %v2388
      %v2390 = vand.u32 %v2389, 4294901760
      %2391 = vmatpush.msra.mxu0 %v2390
      %v2392 = vand.u32 %v269, 4294901760
      %2393 = vmatmul.f32.gmra.mxu0 %v2392
      %v2394 = vpop.f32.mrf.mxu0
      %v2395 = vadd.f32 %v2371, %v2394
      %2396 = vdwg.mxu0
      %2397 = vmatpush.msra.mxu0 0.0
      %2398 = vmatpush.msra.mxu0 0.0
      %2399 = vmatpush.msra.mxu0 0.0
      %2400 = vmatpush.msra.mxu0 0.0
      %2401 = vmatpush.msra.mxu0 0.0
      %2402 = vmatpush.msra.mxu0 0.0
      %2403 = vmatpush.msra.mxu0 0.0
      %2404 = vmatpush.msra.mxu0 0.0
      %2405 = vmatpush.msra.mxu0 0.0
      %2406 = vmatpush.msra.mxu0 0.0
      %2407 = vmatpush.msra.mxu0 0.0
      %2408 = vmatpush.msra.mxu0 0.0
      %2409 = vmatpush.msra.mxu0 0.0
      %2410 = vmatpush.msra.mxu0 0.0
      %2411 = vmatpush.msra.mxu0 0.0
      %v2412 = vand.u32 %v2272, 4294901760
      %2413 = vmatpush.msra.mxu0 %v2412
      %v2414 = vand.u32 %v269, 4294901760
      %2415 = vmatmul.f32.gmra.mxu0 %v2414
      %v2416 = vpop.f32.mrf.mxu0
      %v2417 = vadd.f32 %v2395, %v2416
      %2418 = vdwg.mxu0
      %v2419 = vrsqrt.pop %v2417
      %v2420 = vmul.f32 %v2419, %v2417
      %v2421 = vmul.f32 %v2420, %v2419
      %v2422 = vmul.f32 0.5, %v2421
      %v2423 = vsub.f32 1.5, %v2422
      %v2424 = vmul.f32 %v2419, %v2423
      %vm2425 = vweird.f32 %v2417
      %vm2426 = vweird.f32 %v2419
      %vm2427 = vmor %vm2425, %vm2426
      %v2428 = vsel %vm2427, %v2419, %v2424
      %2430 = vset.pattern.permute.xlu0 0
      %2431 = vperm.xlu0 %2430, %v2428
      %v2432 = vpop.permute.xlu0 %2431
      %v2434 = vmul.f32 %v2265, %v2432
      %v2435 = vmul.f32 %v2266, %v2432
      %v2436 = vld [vmem:[%s1 + $0x90] sm:$0xff]
      %2438 = vset.pattern.permute.xlu0 0
      %2439 = vperm.xlu0 %2438, %v2436
      %v2440 = vpop.permute.xlu0 %2439
      %v2442 = vmul.f32 %v2434, %v2440
      %v2443 = vmul.f32 %v2435, %v2440
      %v2444 = vld [vmem:[%s1 + $0x98] sm:$0xff]
      %2446 = vset.pattern.permute.xlu0 0
      %2447 = vperm.xlu0 %2446, %v2444
      %v2448 = vpop.permute.xlu0 %2447
      %v2450 = vadd.f32 %v2442, %v2448
      %v2451 = vadd.f32 %v2443, %v2448
      %2452 = vrot.lane.b32.xlu0 %v2450, 17
      %v2453 = vpop.permute.xlu0 %2452
      %2454 = vrot.lane.b32.xlu0 %v2451, 17
      %v2455 = vpop.permute.xlu0 %2454
      %v2456 = vsel %vm615, %v2453, %v2455
      %v2457 = vsel %vm615, %v2455, %v2453
      %v2458 = vadd.f32 %v2457, %v1522
      %v2459 = vadd.f32 %v2456, %v1523
      %v2460 = vmax.f32 %v2450, %v2458
      %v2461 = vmax.f32 %v2451, %v2459
      %2462 = vrot.lane.b32.xlu0 %v2450, 16
      %v2463 = vpop.permute.xlu0 %2462
      %2464 = vrot.lane.b32.xlu0 %v2451, 16
      %v2465 = vpop.permute.xlu0 %2464
      %v2466 = vsel %vm630, %v2463, %v2465
      %v2467 = vsel %vm630, %v2465, %v2463
      %v2468 = vadd.f32 %v2467, %v1539
      %v2469 = vadd.f32 %v2466, %v1540
      %v2470 = vmax.f32 %v2460, %v2468
      %v2471 = vmax.f32 %v2461, %v2469
      %2472 = vrot.lane.b32.xlu0 %v2450, 15
      %v2473 = vpop.permute.xlu0 %2472
      %2474 = vrot.lane.b32.xlu0 %v2451, 15
      %v2475 = vpop.permute.xlu0 %2474
      %v2476 = vsel %vm646, %v2473, %v2475
      %v2477 = vsel %vm646, %v2475, %v2473
      %v2478 = vadd.f32 %v2477, %v1556
      %v2479 = vadd.f32 %v2476, %v1557
      %v2480 = vmax.f32 %v2470, %v2478
      %v2481 = vmax.f32 %v2471, %v2479
      %2482 = vrot.lane.b32.xlu0 %v2450, 1
      %v2483 = vpop.permute.xlu0 %2482
      %2484 = vrot.lane.b32.xlu0 %v2451, 1
      %v2485 = vpop.permute.xlu0 %2484
      %v2486 = vsel %vm662, %v2483, %v2485
      %v2487 = vsel %vm662, %v2485, %v2483
      %v2488 = vadd.f32 %v2487, %v1573
      %v2489 = vadd.f32 %v2486, %v1574
      %v2490 = vmax.f32 %v2480, %v2488
      %v2491 = vmax.f32 %v2481, %v2489
      %2492 = vrot.lane.b32.xlu0 %v2450, 127
      %v2493 = vpop.permute.xlu0 %2492
      %2494 = vrot.lane.b32.xlu0 %v2451, 127
      %v2495 = vpop.permute.xlu0 %2494
      %v2496 = vsel %vm678, %v2493, %v2495
      %v2497 = vsel %vm678, %v2495, %v2493
      %v2498 = vadd.f32 %v2496, %v1590
      %v2499 = vadd.f32 %v2497, %v1591
      %v2500 = vmax.f32 %v2490, %v2498
      %v2501 = vmax.f32 %v2491, %v2499
      %2502 = vrot.lane.b32.xlu0 %v2450, 113
      %v2503 = vpop.permute.xlu0 %2502
      %2504 = vrot.lane.b32.xlu0 %v2451, 113
      %v2505 = vpop.permute.xlu0 %2504
      %v2506 = vsel %vm694, %v2503, %v2505
      %v2507 = vsel %vm694, %v2505, %v2503
      %v2508 = vadd.f32 %v2506, %v1607
      %v2509 = vadd.f32 %v2507, %v1608
      %v2510 = vmax.f32 %v2500, %v2508
      %v2511 = vmax.f32 %v2501, %v2509
      %2512 = vrot.lane.b32.xlu0 %v2450, 112
      %v2513 = vpop.permute.xlu0 %2512
      %2514 = vrot.lane.b32.xlu0 %v2451, 112
      %v2515 = vpop.permute.xlu0 %2514
      %v2516 = vsel %vm710, %v2513, %v2515
      %v2517 = vsel %vm710, %v2515, %v2513
      %v2518 = vadd.f32 %v2516, %v1624
      %v2519 = vadd.f32 %v2517, %v1625
      %v2520 = vmax.f32 %v2510, %v2518
      %v2521 = vmax.f32 %v2511, %v2519
      %2522 = vrot.lane.b32.xlu0 %v2450, 111
      %v2523 = vpop.permute.xlu0 %2522
      %2524 = vrot.lane.b32.xlu0 %v2451, 111
      %v2525 = vpop.permute.xlu0 %2524
      %v2526 = vsel %vm726, %v2523, %v2525
      %v2527 = vsel %vm726, %v2525, %v2523
      %v2528 = vadd.f32 %v2526, %v1641
      %v2529 = vadd.f32 %v2527, %v1642
      %v2530 = vmax.f32 %v2520, %v2528
      %v2531 = vmax.f32 %v2521, %v2529
      %v2532 = vld [vmem:[%s1 + $0xa0] sm:$0xff]
      %v2533 = vpack.c.bf16 %v2532, %v2532
      %v2534 = vpack.c.bf16 %v2530, %v2530
      %v2535 = vpack.c.bf16 %v2531, %v2531
      %v2537 = vsel %vm267, %v2533, 0
      %v2540 = vsel %vm754, %v2534, 0
      %v2543 = vsel %vm754, %v2535, 0
      %2545 = vmatpush.bf16.msra.mxu0 0
      %2546 = vmatpush.bf16.msra.mxu0 0
      %2547 = vmatpush.bf16.msra.mxu0 0
      %2548 = vmatpush.bf16.msra.mxu0 0
      %2549 = vmatpush.bf16.msra.mxu0 0
      %2550 = vmatpush.bf16.msra.mxu0 0
      %2551 = vmatpush.bf16.msra.mxu0 0
      %2552 = vmatpush.bf16.msra.mxu0 %v2540
      %2553 = vmatmul.bf16.gmra.mxu0 %v2537
      %v2554 = vpop.f32.mrf.mxu0
      %v2555 = vadd.f32 0.0, %v2554
      %v2556 = vpop.f32.mrf.mxu0
      %2557 = vdwg.mxu0
      %2558 = vmatpush.bf16.msra.mxu0 0
      %2559 = vmatpush.bf16.msra.mxu0 0
      %2560 = vmatpush.bf16.msra.mxu0 0
      %2561 = vmatpush.bf16.msra.mxu0 0
      %2562 = vmatpush.bf16.msra.mxu0 0
      %2563 = vmatpush.bf16.msra.mxu0 0
      %2564 = vmatpush.bf16.msra.mxu0 0
      %2565 = vmatpush.bf16.msra.mxu0 %v2543
      %2566 = vmatmul.bf16.gmra.mxu0 %v2537
      %v2567 = vpop.f32.mrf.mxu0
      %v2568 = vadd.f32 0.0, %v2567
      %v2569 = vpop.f32.mrf.mxu0
      %2570 = vdwg.mxu0
      %v2571 = vld [vmem:[%s1 + $0xa8] sm:$0xff]
      %vm2572 = vcmp.ge.f32.partialorder %v2555, 0.0
      %vm2573 = vcmp.ge.f32.partialorder %v2568, 0.0
      %2575 = vset.pattern.permute.xlu0 0
      %2576 = vperm.xlu0 %2575, %v2571
      %v2577 = vpop.permute.xlu0 %2576
      %v2579 = vmul.f32 %v2577, %v2555
      %v2580 = vmul.f32 %v2577, %v2568
      %v2581 = vsel %vm2572, %v2555, %v2579
      %v2582 = vsel %vm2573, %v2568, %v2580
      %v2583 = vadd.f32 %v2581, %v2582
      %2584 = vadd.xlane.f32.xlu0 %v2583
      %v2585 = vpop.xlane.xlu0 %2584
      %v2586 = vmul.f32 %v2585, %v265
      %v2587 = vld [vmem:[%s1 + $0xb0] sm:$0x3]
      %v2589 = vsel %vm267, %v2587, 0
      %2591 = vmatpush.msra.mxu0 0.0
      %2592 = vmatpush.msra.mxu0 0.0
      %2593 = vmatpush.msra.mxu0 0.0
      %2594 = vmatpush.msra.mxu0 0.0
      %2595 = vmatpush.msra.mxu0 0.0
      %2596 = vmatpush.msra.mxu0 0.0
      %2597 = vmatpush.msra.mxu0 0.0
      %2598 = vmatpush.msra.mxu0 0.0
      %2599 = vmatpush.msra.mxu0 0.0
      %2600 = vmatpush.msra.mxu0 0.0
      %2601 = vmatpush.msra.mxu0 0.0
      %2602 = vmatpush.msra.mxu0 0.0
      %2603 = vmatpush.msra.mxu0 0.0
      %2604 = vmatpush.msra.mxu0 0.0
      %2605 = vmatpush.msra.mxu0 0.0
      %v2606 = vand.u32 %v2586, 4294901760
      %2607 = vmatpush.msra.mxu0 %v2606
      %v2608 = vand.u32 %v2589, 4294901760
      %v2609 = vsub.f32 %v2589, %v2608
      %v2610 = vand.u32 %v2609, 4294901760
      %v2611 = vsub.f32 %v2609, %v2610
      %v2612 = vand.u32 %v2611, 4294901760
      %2613 = vmatmul.f32.gmra.mxu0 %v2612
      %v2614 = vpop.f32.mrf.mxu0
      %v2615 = vadd.f32 0.0, %v2614
      %2616 = vdwg.mxu0
      %2617 = vmatpush.msra.mxu0 0.0
      %2618 = vmatpush.msra.mxu0 0.0
      %2619 = vmatpush.msra.mxu0 0.0
      %2620 = vmatpush.msra.mxu0 0.0
      %2621 = vmatpush.msra.mxu0 0.0
      %2622 = vmatpush.msra.mxu0 0.0
      %2623 = vmatpush.msra.mxu0 0.0
      %2624 = vmatpush.msra.mxu0 0.0
      %2625 = vmatpush.msra.mxu0 0.0
      %2626 = vmatpush.msra.mxu0 0.0
      %2627 = vmatpush.msra.mxu0 0.0
      %2628 = vmatpush.msra.mxu0 0.0
      %2629 = vmatpush.msra.mxu0 0.0
      %2630 = vmatpush.msra.mxu0 0.0
      %2631 = vmatpush.msra.mxu0 0.0
      %v2632 = vand.u32 %v2586, 4294901760
      %v2633 = vsub.f32 %v2586, %v2632
      %v2634 = vand.u32 %v2633, 4294901760
      %v2635 = vsub.f32 %v2633, %v2634
      %v2636 = vand.u32 %v2635, 4294901760
      %2637 = vmatpush.msra.mxu0 %v2636
      %v2638 = vand.u32 %v2589, 4294901760
      %2639 = vmatmul.f32.gmra.mxu0 %v2638
      %v2640 = vpop.f32.mrf.mxu0
      %v2641 = vadd.f32 %v2615, %v2640
      %2642 = vdwg.mxu0
      %2643 = vmatpush.msra.mxu0 0.0
      %2644 = vmatpush.msra.mxu0 0.0
      %2645 = vmatpush.msra.mxu0 0.0
      %2646 = vmatpush.msra.mxu0 0.0
      %2647 = vmatpush.msra.mxu0 0.0
      %2648 = vmatpush.msra.mxu0 0.0
      %2649 = vmatpush.msra.mxu0 0.0
      %2650 = vmatpush.msra.mxu0 0.0
      %2651 = vmatpush.msra.mxu0 0.0
      %2652 = vmatpush.msra.mxu0 0.0
      %2653 = vmatpush.msra.mxu0 0.0
      %2654 = vmatpush.msra.mxu0 0.0
      %2655 = vmatpush.msra.mxu0 0.0
      %2656 = vmatpush.msra.mxu0 0.0
      %2657 = vmatpush.msra.mxu0 0.0
      %v2658 = vand.u32 %v2586, 4294901760
      %v2659 = vsub.f32 %v2586, %v2658
      %2660 = vmatpush.msra.mxu0 %v2659
      %v2661 = vand.u32 %v2589, 4294901760
      %v2662 = vsub.f32 %v2589, %v2661
      %2663 = vmatmul.f32.gmra.mxu0 %v2662
      %v2664 = vpop.f32.mrf.mxu0
      %v2665 = vadd.f32 %v2641, %v2664
      %2666 = vdwg.mxu0
      %2667 = vmatpush.msra.mxu0 0.0
      %2668 = vmatpush.msra.mxu0 0.0
      %2669 = vmatpush.msra.mxu0 0.0
      %2670 = vmatpush.msra.mxu0 0.0
      %2671 = vmatpush.msra.mxu0 0.0
      %2672 = vmatpush.msra.mxu0 0.0
      %2673 = vmatpush.msra.mxu0 0.0
      %2674 = vmatpush.msra.mxu0 0.0
      %2675 = vmatpush.msra.mxu0 0.0
      %2676 = vmatpush.msra.mxu0 0.0
      %2677 = vmatpush.msra.mxu0 0.0
      %2678 = vmatpush.msra.mxu0 0.0
      %2679 = vmatpush.msra.mxu0 0.0
      %2680 = vmatpush.msra.mxu0 0.0
      %2681 = vmatpush.msra.mxu0 0.0
      %v2682 = vand.u32 %v2586, 4294901760
      %2683 = vmatpush.msra.mxu0 %v2682
      %v2684 = vand.u32 %v2589, 4294901760
      %v2685 = vsub.f32 %v2589, %v2684
      %v2686 = vand.u32 %v2685, 4294901760
      %2687 = vmatmul.f32.gmra.mxu0 %v2686
      %v2688 = vpop.f32.mrf.mxu0
      %v2689 = vadd.f32 %v2665, %v2688
      %2690 = vdwg.mxu0
      %2691 = vmatpush.msra.mxu0 0.0
      %2692 = vmatpush.msra.mxu0 0.0
      %2693 = vmatpush.msra.mxu0 0.0
      %2694 = vmatpush.msra.mxu0 0.0
      %2695 = vmatpush.msra.mxu0 0.0
      %2696 = vmatpush.msra.mxu0 0.0
      %2697 = vmatpush.msra.mxu0 0.0
      %2698 = vmatpush.msra.mxu0 0.0
      %2699 = vmatpush.msra.mxu0 0.0
      %2700 = vmatpush.msra.mxu0 0.0
      %2701 = vmatpush.msra.mxu0 0.0
      %2702 = vmatpush.msra.mxu0 0.0
      %2703 = vmatpush.msra.mxu0 0.0
      %2704 = vmatpush.msra.mxu0 0.0
      %2705 = vmatpush.msra.mxu0 0.0
      %v2706 = vand.u32 %v2586, 4294901760
      %v2707 = vsub.f32 %v2586, %v2706
      %v2708 = vand.u32 %v2707, 4294901760
      %2709 = vmatpush.msra.mxu0 %v2708
      %v2710 = vand.u32 %v2589, 4294901760
      %2711 = vmatmul.f32.gmra.mxu0 %v2710
      %v2712 = vpop.f32.mrf.mxu0
      %v2713 = vadd.f32 %v2689, %v2712
      %2714 = vdwg.mxu0
      %2715 = vmatpush.msra.mxu0 0.0
      %2716 = vmatpush.msra.mxu0 0.0
      %2717 = vmatpush.msra.mxu0 0.0
      %2718 = vmatpush.msra.mxu0 0.0
      %2719 = vmatpush.msra.mxu0 0.0
      %2720 = vmatpush.msra.mxu0 0.0
      %2721 = vmatpush.msra.mxu0 0.0
      %2722 = vmatpush.msra.mxu0 0.0
      %2723 = vmatpush.msra.mxu0 0.0
      %2724 = vmatpush.msra.mxu0 0.0
      %2725 = vmatpush.msra.mxu0 0.0
      %2726 = vmatpush.msra.mxu0 0.0
      %2727 = vmatpush.msra.mxu0 0.0
      %2728 = vmatpush.msra.mxu0 0.0
      %2729 = vmatpush.msra.mxu0 0.0
      %v2730 = vand.u32 %v2586, 4294901760
      %2731 = vmatpush.msra.mxu0 %v2730
      %v2732 = vand.u32 %v2589, 4294901760
      %2733 = vmatmul.f32.gmra.mxu0 %v2732
      %v2734 = vpop.f32.mrf.mxu0
      %v2735 = vadd.f32 %v2713, %v2734
      %2736 = vdwg.mxu0
      %v2737 = vmax.f32 %v2735, 0.0
      %v2738 = vld [vmem:[%s1 + $0xb8] sm:$0xff]
      %vm2739 = vcmask 15360
      %v2741 = vsel %vm2739, %v2738, 0
      %v2744 = vsel %vm2065, %v2737, 0
      %2746 = vmatpush.msra.mxu0 0.0
      %2747 = vmatpush.msra.mxu0 0.0
      %2748 = vmatpush.msra.mxu0 0.0
      %2749 = vmatpush.msra.mxu0 0.0
      %2750 = vmatpush.msra.mxu0 0.0
      %2751 = vmatpush.msra.mxu0 0.0
      %2752 = vmatpush.msra.mxu0 0.0
      %2753 = vmatpush.msra.mxu0 0.0
      %2754 = vmatpush.msra.mxu0 0.0
      %2755 = vmatpush.msra.mxu0 0.0
      %2756 = vmatpush.msra.mxu0 0.0
      %2757 = vmatpush.msra.mxu0 0.0
      %2758 = vmatpush.msra.mxu0 0.0
      %2759 = vmatpush.msra.mxu0 0.0
      %2760 = vmatpush.msra.mxu0 0.0
      %v2761 = vand.u32 %v2744, 4294901760
      %2762 = vmatpush.msra.mxu0 %v2761
      %v2763 = vand.u32 %v2741, 4294901760
      %v2764 = vsub.f32 %v2741, %v2763
      %v2765 = vand.u32 %v2764, 4294901760
      %v2766 = vsub.f32 %v2764, %v2765
      %v2767 = vand.u32 %v2766, 4294901760
      %2768 = vmatmul.f32.gmra.mxu0 %v2767
      %v2769 = vpop.f32.mrf.mxu0
      %v2770 = vadd.f32 0.0, %v2769
      %2771 = vdwg.mxu0
      %2772 = vmatpush.msra.mxu0 0.0
      %2773 = vmatpush.msra.mxu0 0.0
      %2774 = vmatpush.msra.mxu0 0.0
      %2775 = vmatpush.msra.mxu0 0.0
      %2776 = vmatpush.msra.mxu0 0.0
      %2777 = vmatpush.msra.mxu0 0.0
      %2778 = vmatpush.msra.mxu0 0.0
      %2779 = vmatpush.msra.mxu0 0.0
      %2780 = vmatpush.msra.mxu0 0.0
      %2781 = vmatpush.msra.mxu0 0.0
      %2782 = vmatpush.msra.mxu0 0.0
      %2783 = vmatpush.msra.mxu0 0.0
      %2784 = vmatpush.msra.mxu0 0.0
      %2785 = vmatpush.msra.mxu0 0.0
      %2786 = vmatpush.msra.mxu0 0.0
      %v2787 = vand.u32 %v2744, 4294901760
      %v2788 = vsub.f32 %v2744, %v2787
      %v2789 = vand.u32 %v2788, 4294901760
      %v2790 = vsub.f32 %v2788, %v2789
      %v2791 = vand.u32 %v2790, 4294901760
      %2792 = vmatpush.msra.mxu0 %v2791
      %v2793 = vand.u32 %v2741, 4294901760
      %2794 = vmatmul.f32.gmra.mxu0 %v2793
      %v2795 = vpop.f32.mrf.mxu0
      %v2796 = vadd.f32 %v2770, %v2795
      %2797 = vdwg.mxu0
      %2798 = vmatpush.msra.mxu0 0.0
      %2799 = vmatpush.msra.mxu0 0.0
      %2800 = vmatpush.msra.mxu0 0.0
      %2801 = vmatpush.msra.mxu0 0.0
      %2802 = vmatpush.msra.mxu0 0.0
      %2803 = vmatpush.msra.mxu0 0.0
      %2804 = vmatpush.msra.mxu0 0.0
      %2805 = vmatpush.msra.mxu0 0.0
      %2806 = vmatpush.msra.mxu0 0.0
      %2807 = vmatpush.msra.mxu0 0.0
      %2808 = vmatpush.msra.mxu0 0.0
      %2809 = vmatpush.msra.mxu0 0.0
      %2810 = vmatpush.msra.mxu0 0.0
      %2811 = vmatpush.msra.mxu0 0.0
      %2812 = vmatpush.msra.mxu0 0.0
      %v2813 = vand.u32 %v2744, 4294901760
      %v2814 = vsub.f32 %v2744, %v2813
      %2815 = vmatpush.msra.mxu0 %v2814
      %v2816 = vand.u32 %v2741, 4294901760
      %v2817 = vsub.f32 %v2741, %v2816
      %2818 = vmatmul.f32.gmra.mxu0 %v2817
      %v2819 = vpop.f32.mrf.mxu0
      %v2820 = vadd.f32 %v2796, %v2819
      %2821 = vdwg.mxu0
      %2822 = vmatpush.msra.mxu0 0.0
      %2823 = vmatpush.msra.mxu0 0.0
      %2824 = vmatpush.msra.mxu0 0.0
      %2825 = vmatpush.msra.mxu0 0.0
      %2826 = vmatpush.msra.mxu0 0.0
      %2827 = vmatpush.msra.mxu0 0.0
      %2828 = vmatpush.msra.mxu0 0.0
      %2829 = vmatpush.msra.mxu0 0.0
      %2830 = vmatpush.msra.mxu0 0.0
      %2831 = vmatpush.msra.mxu0 0.0
      %2832 = vmatpush.msra.mxu0 0.0
      %2833 = vmatpush.msra.mxu0 0.0
      %2834 = vmatpush.msra.mxu0 0.0
      %2835 = vmatpush.msra.mxu0 0.0
      %2836 = vmatpush.msra.mxu0 0.0
      %v2837 = vand.u32 %v2744, 4294901760
      %2838 = vmatpush.msra.mxu0 %v2837
      %v2839 = vand.u32 %v2741, 4294901760
      %v2840 = vsub.f32 %v2741, %v2839
      %v2841 = vand.u32 %v2840, 4294901760
      %2842 = vmatmul.f32.gmra.mxu0 %v2841
      %v2843 = vpop.f32.mrf.mxu0
      %v2844 = vadd.f32 %v2820, %v2843
      %2845 = vdwg.mxu0
      %2846 = vmatpush.msra.mxu0 0.0
      %2847 = vmatpush.msra.mxu0 0.0
      %2848 = vmatpush.msra.mxu0 0.0
      %2849 = vmatpush.msra.mxu0 0.0
      %2850 = vmatpush.msra.mxu0 0.0
      %2851 = vmatpush.msra.mxu0 0.0
      %2852 = vmatpush.msra.mxu0 0.0
      %2853 = vmatpush.msra.mxu0 0.0
      %2854 = vmatpush.msra.mxu0 0.0
      %2855 = vmatpush.msra.mxu0 0.0
      %2856 = vmatpush.msra.mxu0 0.0
      %2857 = vmatpush.msra.mxu0 0.0
      %2858 = vmatpush.msra.mxu0 0.0
      %2859 = vmatpush.msra.mxu0 0.0
      %2860 = vmatpush.msra.mxu0 0.0
      %v2861 = vand.u32 %v2744, 4294901760
      %v2862 = vsub.f32 %v2744, %v2861
      %v2863 = vand.u32 %v2862, 4294901760
      %2864 = vmatpush.msra.mxu0 %v2863
      %v2865 = vand.u32 %v2741, 4294901760
      %2866 = vmatmul.f32.gmra.mxu0 %v2865
      %v2867 = vpop.f32.mrf.mxu0
      %v2868 = vadd.f32 %v2844, %v2867
      %2869 = vdwg.mxu0
      %2870 = vmatpush.msra.mxu0 0.0
      %2871 = vmatpush.msra.mxu0 0.0
      %2872 = vmatpush.msra.mxu0 0.0
      %2873 = vmatpush.msra.mxu0 0.0
      %2874 = vmatpush.msra.mxu0 0.0
      %2875 = vmatpush.msra.mxu0 0.0
      %2876 = vmatpush.msra.mxu0 0.0
      %2877 = vmatpush.msra.mxu0 0.0
      %2878 = vmatpush.msra.mxu0 0.0
      %2879 = vmatpush.msra.mxu0 0.0
      %2880 = vmatpush.msra.mxu0 0.0
      %2881 = vmatpush.msra.mxu0 0.0
      %2882 = vmatpush.msra.mxu0 0.0
      %2883 = vmatpush.msra.mxu0 0.0
      %2884 = vmatpush.msra.mxu0 0.0
      %v2885 = vand.u32 %v2744, 4294901760
      %2886 = vmatpush.msra.mxu0 %v2885
      %v2887 = vand.u32 %v2741, 4294901760
      %2888 = vmatmul.f32.gmra.mxu0 %v2887
      %v2889 = vpop.f32.mrf.mxu0
      %v2890 = vadd.f32 %v2868, %v2889
      %2891 = vdwg.mxu0
      %v2892 = vxor.u32 %v2890, 2147483648
      %v2893 = vmul.f32 %v2892, 1.442695
      %v2894 = vpow.pop %v2893
      %v2895 = vadd.f32 %v2894, 1.0
      %v2896 = vrcp.pop %v2895
      %v2897 = vmul.f32 %v2895, %v2896
      %v2898 = vsub.f32 1.0, %v2897
      %v2899 = vmul.f32 %v2896, %v2898
      %v2900 = vadd.f32 %v2896, %v2899
      %vm2901 = vweird.f32 %v2895
      %vm2902 = vweird.f32 %v2896
      %vm2903 = vmor %vm2901, %vm2902
      %v2904 = vsel %vm2903, %v2896, %v2900
      %v2905 = vand.u32 2147483647, %v2895
      %vm2906 = vcmp.eq.f32.partialorder %v2905, 8.507059e+37
      %v2907 = vand.u32 %v2895, 2147483648
      %v2908 = vor.u32 1.1754944e-38, %v2907
      %v2909 = vsel %vm2906, %v2908, %v2904
      %v2910 = vmul.f32 1.0, %v2909
      %2912 = vset.pattern.permute.xlu0 0
      %2913 = vperm.xlu0 %2912, %v2910
      %v2914 = vpop.permute.xlu0 %2913
      %v2916 = vmul.f32 %v2581, %v2914
      %v2917 = vmul.f32 %v2582, %v2914
      %v2918 = vadd.f32 %v607, %v608
      %2919 = vadd.xlane.f32.xlu0 %v2918
      %v2920 = vpop.xlane.xlu0 %2919
      %v2921 = vmul.f32 %v2920, %v265
      %v2922 = vld [vmem:[%s1 + $0xc0] sm:$0x3]
      %v2924 = vsel %vm267, %v2922, 0
      %2926 = vmatpush.msra.mxu0 0.0
      %2927 = vmatpush.msra.mxu0 0.0
      %2928 = vmatpush.msra.mxu0 0.0
      %2929 = vmatpush.msra.mxu0 0.0
      %2930 = vmatpush.msra.mxu0 0.0
      %2931 = vmatpush.msra.mxu0 0.0
      %2932 = vmatpush.msra.mxu0 0.0
      %2933 = vmatpush.msra.mxu0 0.0
      %2934 = vmatpush.msra.mxu0 0.0
      %2935 = vmatpush.msra.mxu0 0.0
      %2936 = vmatpush.msra.mxu0 0.0
      %2937 = vmatpush.msra.mxu0 0.0
      %2938 = vmatpush.msra.mxu0 0.0
      %2939 = vmatpush.msra.mxu0 0.0
      %2940 = vmatpush.msra.mxu0 0.0
      %v2941 = vand.u32 %v2921, 4294901760
      %2942 = vmatpush.msra.mxu0 %v2941
      %v2943 = vand.u32 %v2924, 4294901760
      %v2944 = vsub.f32 %v2924, %v2943
      %v2945 = vand.u32 %v2944, 4294901760
      %v2946 = vsub.f32 %v2944, %v2945
      %v2947 = vand.u32 %v2946, 4294901760
      %2948 = vmatmul.f32.gmra.mxu0 %v2947
      %v2949 = vpop.f32.mrf.mxu0
      %v2950 = vadd.f32 0.0, %v2949
      %2951 = vdwg.mxu0
      %2952 = vmatpush.msra.mxu0 0.0
      %2953 = vmatpush.msra.mxu0 0.0
      %2954 = vmatpush.msra.mxu0 0.0
      %2955 = vmatpush.msra.mxu0 0.0
      %2956 = vmatpush.msra.mxu0 0.0
      %2957 = vmatpush.msra.mxu0 0.0
      %2958 = vmatpush.msra.mxu0 0.0
      %2959 = vmatpush.msra.mxu0 0.0
      %2960 = vmatpush.msra.mxu0 0.0
      %2961 = vmatpush.msra.mxu0 0.0
      %2962 = vmatpush.msra.mxu0 0.0
      %2963 = vmatpush.msra.mxu0 0.0
      %2964 = vmatpush.msra.mxu0 0.0
      %2965 = vmatpush.msra.mxu0 0.0
      %2966 = vmatpush.msra.mxu0 0.0
      %v2967 = vand.u32 %v2921, 4294901760
      %v2968 = vsub.f32 %v2921, %v2967
      %v2969 = vand.u32 %v2968, 4294901760
      %v2970 = vsub.f32 %v2968, %v2969
      %v2971 = vand.u32 %v2970, 4294901760
      %2972 = vmatpush.msra.mxu0 %v2971
      %v2973 = vand.u32 %v2924, 4294901760
      %2974 = vmatmul.f32.gmra.mxu0 %v2973
      %v2975 = vpop.f32.mrf.mxu0
      %v2976 = vadd.f32 %v2950, %v2975
      %2977 = vdwg.mxu0
      %2978 = vmatpush.msra.mxu0 0.0
      %2979 = vmatpush.msra.mxu0 0.0
      %2980 = vmatpush.msra.mxu0 0.0
      %2981 = vmatpush.msra.mxu0 0.0
      %2982 = vmatpush.msra.mxu0 0.0
      %2983 = vmatpush.msra.mxu0 0.0
      %2984 = vmatpush.msra.mxu0 0.0
      %2985 = vmatpush.msra.mxu0 0.0
      %2986 = vmatpush.msra.mxu0 0.0
      %2987 = vmatpush.msra.mxu0 0.0
      %2988 = vmatpush.msra.mxu0 0.0
      %2989 = vmatpush.msra.mxu0 0.0
      %2990 = vmatpush.msra.mxu0 0.0
      %2991 = vmatpush.msra.mxu0 0.0
      %2992 = vmatpush.msra.mxu0 0.0
      %v2993 = vand.u32 %v2921, 4294901760
      %v2994 = vsub.f32 %v2921, %v2993
      %2995 = vmatpush.msra.mxu0 %v2994
      %v2996 = vand.u32 %v2924, 4294901760
      %v2997 = vsub.f32 %v2924, %v2996
      %2998 = vmatmul.f32.gmra.mxu0 %v2997
      %v2999 = vpop.f32.mrf.mxu0
      %v3000 = vadd.f32 %v2976, %v2999
      %3001 = vdwg.mxu0
      %3002 = vmatpush.msra.mxu0 0.0
      %3003 = vmatpush.msra.mxu0 0.0
      %3004 = vmatpush.msra.mxu0 0.0
      %3005 = vmatpush.msra.mxu0 0.0
      %3006 = vmatpush.msra.mxu0 0.0
      %3007 = vmatpush.msra.mxu0 0.0
      %3008 = vmatpush.msra.mxu0 0.0
      %3009 = vmatpush.msra.mxu0 0.0
      %3010 = vmatpush.msra.mxu0 0.0
      %3011 = vmatpush.msra.mxu0 0.0
      %3012 = vmatpush.msra.mxu0 0.0
      %3013 = vmatpush.msra.mxu0 0.0
      %3014 = vmatpush.msra.mxu0 0.0
      %3015 = vmatpush.msra.mxu0 0.0
      %3016 = vmatpush.msra.mxu0 0.0
      %v3017 = vand.u32 %v2921, 4294901760
      %3018 = vmatpush.msra.mxu0 %v3017
      %v3019 = vand.u32 %v2924, 4294901760
      %v3020 = vsub.f32 %v2924, %v3019
      %v3021 = vand.u32 %v3020, 4294901760
      %3022 = vmatmul.f32.gmra.mxu0 %v3021
      %v3023 = vpop.f32.mrf.mxu0
      %v3024 = vadd.f32 %v3000, %v3023
      %3025 = vdwg.mxu0
      %3026 = vmatpush.msra.mxu0 0.0
      %3027 = vmatpush.msra.mxu0 0.0
      %3028 = vmatpush.msra.mxu0 0.0
      %3029 = vmatpush.msra.mxu0 0.0
      %3030 = vmatpush.msra.mxu0 0.0
      %3031 = vmatpush.msra.mxu0 0.0
      %3032 = vmatpush.msra.mxu0 0.0
      %3033 = vmatpush.msra.mxu0 0.0
      %3034 = vmatpush.msra.mxu0 0.0
      %3035 = vmatpush.msra.mxu0 0.0
      %3036 = vmatpush.msra.mxu0 0.0
      %3037 = vmatpush.msra.mxu0 0.0
      %3038 = vmatpush.msra.mxu0 0.0
      %3039 = vmatpush.msra.mxu0 0.0
      %3040 = vmatpush.msra.mxu0 0.0
      %v3041 = vand.u32 %v2921, 4294901760
      %v3042 = vsub.f32 %v2921, %v3041
      %v3043 = vand.u32 %v3042, 4294901760
      %3044 = vmatpush.msra.mxu0 %v3043
      %v3045 = vand.u32 %v2924, 4294901760
      %3046 = vmatmul.f32.gmra.mxu0 %v3045
      %v3047 = vpop.f32.mrf.mxu0
      %v3048 = vadd.f32 %v3024, %v3047
      %3049 = vdwg.mxu0
      %3050 = vmatpush.msra.mxu0 0.0
      %3051 = vmatpush.msra.mxu0 0.0
      %3052 = vmatpush.msra.mxu0 0.0
      %3053 = vmatpush.msra.mxu0 0.0
      %3054 = vmatpush.msra.mxu0 0.0
      %3055 = vmatpush.msra.mxu0 0.0
      %3056 = vmatpush.msra.mxu0 0.0
      %3057 = vmatpush.msra.mxu0 0.0
      %3058 = vmatpush.msra.mxu0 0.0
      %3059 = vmatpush.msra.mxu0 0.0
      %3060 = vmatpush.msra.mxu0 0.0
      %3061 = vmatpush.msra.mxu0 0.0
      %3062 = vmatpush.msra.mxu0 0.0
      %3063 = vmatpush.msra.mxu0 0.0
      %3064 = vmatpush.msra.mxu0 0.0
      %v3065 = vand.u32 %v2921, 4294901760
      %3066 = vmatpush.msra.mxu0 %v3065
      %v3067 = vand.u32 %v2924, 4294901760
      %3068 = vmatmul.f32.gmra.mxu0 %v3067
      %v3069 = vpop.f32.mrf.mxu0
      %v3070 = vadd.f32 %v3048, %v3069
      %3071 = vdwg.mxu0
      %v3072 = vmax.f32 %v3070, 0.0
      %v3073 = vld [vmem:[%s1 + $0xc8] sm:$0xff]
      %v3075 = vsel %vm2739, %v3073, 0
      %v3078 = vsel %vm2065, %v3072, 0
      %3080 = vmatpush.msra.mxu0 0.0
      %3081 = vmatpush.msra.mxu0 0.0
      %3082 = vmatpush.msra.mxu0 0.0
      %3083 = vmatpush.msra.mxu0 0.0
      %3084 = vmatpush.msra.mxu0 0.0
      %3085 = vmatpush.msra.mxu0 0.0
      %3086 = vmatpush.msra.mxu0 0.0
      %3087 = vmatpush.msra.mxu0 0.0
      %3088 = vmatpush.msra.mxu0 0.0
      %3089 = vmatpush.msra.mxu0 0.0
      %3090 = vmatpush.msra.mxu0 0.0
      %3091 = vmatpush.msra.mxu0 0.0
      %3092 = vmatpush.msra.mxu0 0.0
      %3093 = vmatpush.msra.mxu0 0.0
      %3094 = vmatpush.msra.mxu0 0.0
      %v3095 = vand.u32 %v3078, 4294901760
      %3096 = vmatpush.msra.mxu0 %v3095
      %v3097 = vand.u32 %v3075, 4294901760
      %v3098 = vsub.f32 %v3075, %v3097
      %v3099 = vand.u32 %v3098, 4294901760
      %v3100 = vsub.f32 %v3098, %v3099
      %v3101 = vand.u32 %v3100, 4294901760
      %3102 = vmatmul.f32.gmra.mxu0 %v3101
      %v3103 = vpop.f32.mrf.mxu0
      %v3104 = vadd.f32 0.0, %v3103
      %3105 = vdwg.mxu0
      %3106 = vmatpush.msra.mxu0 0.0
      %3107 = vmatpush.msra.mxu0 0.0
      %3108 = vmatpush.msra.mxu0 0.0
      %3109 = vmatpush.msra.mxu0 0.0
      %3110 = vmatpush.msra.mxu0 0.0
      %3111 = vmatpush.msra.mxu0 0.0
      %3112 = vmatpush.msra.mxu0 0.0
      %3113 = vmatpush.msra.mxu0 0.0
      %3114 = vmatpush.msra.mxu0 0.0
      %3115 = vmatpush.msra.mxu0 0.0
      %3116 = vmatpush.msra.mxu0 0.0
      %3117 = vmatpush.msra.mxu0 0.0
      %3118 = vmatpush.msra.mxu0 0.0
      %3119 = vmatpush.msra.mxu0 0.0
      %3120 = vmatpush.msra.mxu0 0.0
      %v3121 = vand.u32 %v3078, 4294901760
      %v3122 = vsub.f32 %v3078, %v3121
      %v3123 = vand.u32 %v3122, 4294901760
      %v3124 = vsub.f32 %v3122, %v3123
      %v3125 = vand.u32 %v3124, 4294901760
      %3126 = vmatpush.msra.mxu0 %v3125
      %v3127 = vand.u32 %v3075, 4294901760
      %3128 = vmatmul.f32.gmra.mxu0 %v3127
      %v3129 = vpop.f32.mrf.mxu0
      %v3130 = vadd.f32 %v3104, %v3129
      %3131 = vdwg.mxu0
      %3132 = vmatpush.msra.mxu0 0.0
      %3133 = vmatpush.msra.mxu0 0.0
      %3134 = vmatpush.msra.mxu0 0.0
      %3135 = vmatpush.msra.mxu0 0.0
      %3136 = vmatpush.msra.mxu0 0.0
      %3137 = vmatpush.msra.mxu0 0.0
      %3138 = vmatpush.msra.mxu0 0.0
      %3139 = vmatpush.msra.mxu0 0.0
      %3140 = vmatpush.msra.mxu0 0.0
      %3141 = vmatpush.msra.mxu0 0.0
      %3142 = vmatpush.msra.mxu0 0.0
      %3143 = vmatpush.msra.mxu0 0.0
      %3144 = vmatpush.msra.mxu0 0.0
      %3145 = vmatpush.msra.mxu0 0.0
      %3146 = vmatpush.msra.mxu0 0.0
      %v3147 = vand.u32 %v3078, 4294901760
      %v3148 = vsub.f32 %v3078, %v3147
      %3149 = vmatpush.msra.mxu0 %v3148
      %v3150 = vand.u32 %v3075, 4294901760
      %v3151 = vsub.f32 %v3075, %v3150
      %3152 = vmatmul.f32.gmra.mxu0 %v3151
      %v3153 = vpop.f32.mrf.mxu0
      %v3154 = vadd.f32 %v3130, %v3153
      %3155 = vdwg.mxu0
      %3156 = vmatpush.msra.mxu0 0.0
      %3157 = vmatpush.msra.mxu0 0.0
      %3158 = vmatpush.msra.mxu0 0.0
      %3159 = vmatpush.msra.mxu0 0.0
      %3160 = vmatpush.msra.mxu0 0.0
      %3161 = vmatpush.msra.mxu0 0.0
      %3162 = vmatpush.msra.mxu0 0.0
      %3163 = vmatpush.msra.mxu0 0.0
      %3164 = vmatpush.msra.mxu0 0.0
      %3165 = vmatpush.msra.mxu0 0.0
      %3166 = vmatpush.msra.mxu0 0.0
      %3167 = vmatpush.msra.mxu0 0.0
      %3168 = vmatpush.msra.mxu0 0.0
      %3169 = vmatpush.msra.mxu0 0.0
      %3170 = vmatpush.msra.mxu0 0.0
      %v3171 = vand.u32 %v3078, 4294901760
      %3172 = vmatpush.msra.mxu0 %v3171
      %v3173 = vand.u32 %v3075, 4294901760
      %v3174 = vsub.f32 %v3075, %v3173
      %v3175 = vand.u32 %v3174, 4294901760
      %3176 = vmatmul.f32.gmra.mxu0 %v3175
      %v3177 = vpop.f32.mrf.mxu0
      %v3178 = vadd.f32 %v3154, %v3177
      %3179 = vdwg.mxu0
      %3180 = vmatpush.msra.mxu0 0.0
      %3181 = vmatpush.msra.mxu0 0.0
      %3182 = vmatpush.msra.mxu0 0.0
      %3183 = vmatpush.msra.mxu0 0.0
      %3184 = vmatpush.msra.mxu0 0.0
      %3185 = vmatpush.msra.mxu0 0.0
      %3186 = vmatpush.msra.mxu0 0.0
      %3187 = vmatpush.msra.mxu0 0.0
      %3188 = vmatpush.msra.mxu0 0.0
      %3189 = vmatpush.msra.mxu0 0.0
      %3190 = vmatpush.msra.mxu0 0.0
      %3191 = vmatpush.msra.mxu0 0.0
      %3192 = vmatpush.msra.mxu0 0.0
      %3193 = vmatpush.msra.mxu0 0.0
      %3194 = vmatpush.msra.mxu0 0.0
      %v3195 = vand.u32 %v3078, 4294901760
      %v3196 = vsub.f32 %v3078, %v3195
      %v3197 = vand.u32 %v3196, 4294901760
      %3198 = vmatpush.msra.mxu0 %v3197
      %v3199 = vand.u32 %v3075, 4294901760
      %3200 = vmatmul.f32.gmra.mxu0 %v3199
      %v3201 = vpop.f32.mrf.mxu0
      %v3202 = vadd.f32 %v3178, %v3201
      %3203 = vdwg.mxu0
      %3204 = vmatpush.msra.mxu0 0.0
      %3205 = vmatpush.msra.mxu0 0.0
      %3206 = vmatpush.msra.mxu0 0.0
      %3207 = vmatpush.msra.mxu0 0.0
      %3208 = vmatpush.msra.mxu0 0.0
      %3209 = vmatpush.msra.mxu0 0.0
      %3210 = vmatpush.msra.mxu0 0.0
      %3211 = vmatpush.msra.mxu0 0.0
      %3212 = vmatpush.msra.mxu0 0.0
      %3213 = vmatpush.msra.mxu0 0.0
      %3214 = vmatpush.msra.mxu0 0.0
      %3215 = vmatpush.msra.mxu0 0.0
      %3216 = vmatpush.msra.mxu0 0.0
      %3217 = vmatpush.msra.mxu0 0.0
      %3218 = vmatpush.msra.mxu0 0.0
      %v3219 = vand.u32 %v3078, 4294901760
      %3220 = vmatpush.msra.mxu0 %v3219
      %v3221 = vand.u32 %v3075, 4294901760
      %3222 = vmatmul.f32.gmra.mxu0 %v3221
      %v3223 = vpop.f32.mrf.mxu0
      %v3224 = vadd.f32 %v3202, %v3223
      %3225 = vdwg.mxu0
      %v3226 = vxor.u32 %v3224, 2147483648
      %v3227 = vmul.f32 %v3226, 1.442695
      %v3228 = vpow.pop %v3227
      %v3229 = vadd.f32 %v3228, 1.0
      %v3230 = vrcp.pop %v3229
      %v3231 = vmul.f32 %v3229, %v3230
      %v3232 = vsub.f32 1.0, %v3231
      %v3233 = vmul.f32 %v3230, %v3232
      %v3234 = vadd.f32 %v3230, %v3233
      %vm3235 = vweird.f32 %v3229
      %vm3236 = vweird.f32 %v3230
      %vm3237 = vmor %vm3235, %vm3236
      %v3238 = vsel %vm3237, %v3230, %v3234
      %v3239 = vand.u32 2147483647, %v3229
      %vm3240 = vcmp.eq.f32.partialorder %v3239, 8.507059e+37
      %v3241 = vand.u32 %v3229, 2147483648
      %v3242 = vor.u32 1.1754944e-38, %v3241
      %v3243 = vsel %vm3240, %v3242, %v3238
      %v3244 = vmul.f32 1.0, %v3243
      %3246 = vset.pattern.permute.xlu0 0
      %3247 = vperm.xlu0 %3246, %v3244
      %v3248 = vpop.permute.xlu0 %3247
      %v3250 = vmul.f32 %v607, %v3248
      %v3251 = vmul.f32 %v608, %v3248
      %v3252 = vadd.f32 %v607, %v3250
      %v3253 = vadd.f32 %v608, %v3251
      %v3254 = vadd.f32 %v3252, %v2581
      %v3255 = vadd.f32 %v3253, %v2582
      %v3256 = vadd.f32 %v3254, %v2916
      %v3257 = vadd.f32 %v3255, %v2917
      %v3258 = vld [vmem:[%s1 + $0xd0] sm:$0xff]
      %vm3259 = vcmp.ge.f32.partialorder %v3256, 0.0
      %vm3260 = vcmp.ge.f32.partialorder %v3257, 0.0
      %3262 = vset.pattern.permute.xlu0 0
      %3263 = vperm.xlu0 %3262, %v3258
      %v3264 = vpop.permute.xlu0 %3263
      %v3266 = vmul.f32 %v3264, %v3256
      %v3267 = vmul.f32 %v3264, %v3257
      %v3268 = vsel %vm3259, %v3256, %v3266
      %v3269 = vsel %vm3260, %v3257, %v3267
      %v3270 = vadd.f32 %v1129, %v1688
      %v3271 = vadd.f32 %v1130, %v1689
      %v3272 = vadd.f32 %v3270, %v3268
      %v3273 = vadd.f32 %v3271, %v3269
      %v3274 = vadd.f32 %v607, %v3272
      %v3275 = vadd.f32 %v608, %v3273
      %3276 = vrot.lane.b32.xlu0 %v3274, 17
      %v3277 = vpop.permute.xlu0 %3276
      %3278 = vrot.lane.b32.xlu0 %v3275, 17
      %v3279 = vpop.permute.xlu0 %3278
      %v3280 = vsel %vm615, %v3277, %v3279
      %v3281 = vsel %vm615, %v3279, %v3277
      %v3282 = vmul.f32 %v3281, %v620
      %v3283 = vmul.f32 %v3280, %v621
      %3284 = vrot.lane.b32.xlu0 %v3274, 16
      %v3285 = vpop.permute.xlu0 %3284
      %3286 = vrot.lane.b32.xlu0 %v3275, 16
      %v3287 = vpop.permute.xlu0 %3286
      %v3288 = vsel %vm630, %v3285, %v3287
      %v3289 = vsel %vm630, %v3287, %v3285
      %v3290 = vmul.f32 %v3289, %v636
      %v3291 = vmul.f32 %v3288, %v637
      %3292 = vrot.lane.b32.xlu0 %v3274, 15
      %v3293 = vpop.permute.xlu0 %3292
      %3294 = vrot.lane.b32.xlu0 %v3275, 15
      %v3295 = vpop.permute.xlu0 %3294
      %v3296 = vsel %vm646, %v3293, %v3295
      %v3297 = vsel %vm646, %v3295, %v3293
      %v3298 = vmul.f32 %v3297, %v652
      %v3299 = vmul.f32 %v3296, %v653
      %3300 = vrot.lane.b32.xlu0 %v3274, 1
      %v3301 = vpop.permute.xlu0 %3300
      %3302 = vrot.lane.b32.xlu0 %v3275, 1
      %v3303 = vpop.permute.xlu0 %3302
      %v3304 = vsel %vm662, %v3301, %v3303
      %v3305 = vsel %vm662, %v3303, %v3301
      %v3306 = vmul.f32 %v3305, %v668
      %v3307 = vmul.f32 %v3304, %v669
      %3308 = vrot.lane.b32.xlu0 %v3274, 127
      %v3309 = vpop.permute.xlu0 %3308
      %3310 = vrot.lane.b32.xlu0 %v3275, 127
      %v3311 = vpop.permute.xlu0 %3310
      %v3312 = vsel %vm678, %v3309, %v3311
      %v3313 = vsel %vm678, %v3311, %v3309
      %v3314 = vmul.f32 %v3312, %v684
      %v3315 = vmul.f32 %v3313, %v685
      %3316 = vrot.lane.b32.xlu0 %v3274, 113
      %v3317 = vpop.permute.xlu0 %3316
      %3318 = vrot.lane.b32.xlu0 %v3275, 113
      %v3319 = vpop.permute.xlu0 %3318
      %v3320 = vsel %vm694, %v3317, %v3319
      %v3321 = vsel %vm694, %v3319, %v3317
      %v3322 = vmul.f32 %v3320, %v700
      %v3323 = vmul.f32 %v3321, %v701
      %3324 = vrot.lane.b32.xlu0 %v3274, 112
      %v3325 = vpop.permute.xlu0 %3324
      %3326 = vrot.lane.b32.xlu0 %v3275, 112
      %v3327 = vpop.permute.xlu0 %3326
      %v3328 = vsel %vm710, %v3325, %v3327
      %v3329 = vsel %vm710, %v3327, %v3325
      %v3330 = vmul.f32 %v3328, %v716
      %v3331 = vmul.f32 %v3329, %v717
      %3332 = vrot.lane.b32.xlu0 %v3274, 111
      %v3333 = vpop.permute.xlu0 %3332
      %3334 = vrot.lane.b32.xlu0 %v3275, 111
      %v3335 = vpop.permute.xlu0 %3334
      %v3336 = vsel %vm726, %v3333, %v3335
      %v3337 = vsel %vm726, %v3335, %v3333
      %v3338 = vmul.f32 %v3336, %v732
      %v3339 = vmul.f32 %v3337, %v733
      %v3340 = vpack.c.bf16 %v3290, %v3282
      %v3341 = vpack.c.bf16 %v3291, %v3283
      %v3342 = vpack.c.bf16 %v3306, %v3298
      %v3343 = vpack.c.bf16 %v3307, %v3299
      %v3344 = vpack.c.bf16 %v3314, %v3274
      %v3345 = vpack.c.bf16 %v3315, %v3275
      %v3346 = vpack.c.bf16 %v3330, %v3322
      %v3347 = vpack.c.bf16 %v3331, %v3323
      %v3348 = vpack.c.bf16 %v3338, %v3338
      %v3349 = vpack.c.bf16 %v3339, %v3339
      %v3350 = vld [vmem:[%s1 + $0xd8] sm:$0xff]
      %v3351 = vld [vmem:[%s1 + $0xe0] sm:$0xff]
      %v3352 = vld [vmem:[%s1 + $0xe8] sm:$0xff]
      %v3353 = vpack.c.bf16 %v3351, %v3350
      %v3354 = vpack.c.bf16 %v3352, %v3352
      %v3356 = vsel %vm750, %v3353, 0
      %v3359 = vsel %vm750, %v3354, 0
      %v3362 = vsel %vm754, %v3348, 0
      %v3365 = vsel %vm754, %v3349, 0
      %3367 = vmatpush.bf16.msra.mxu0 0
      %3368 = vmatpush.bf16.msra.mxu0 0
      %3369 = vmatpush.bf16.msra.mxu0 0
      %3370 = vmatpush.bf16.msra.mxu0 %v3362
      %3371 = vmatpush.bf16.msra.mxu0 %v3346
      %3372 = vmatpush.bf16.msra.mxu0 %v3344
      %3373 = vmatpush.bf16.msra.mxu0 %v3342
      %3374 = vmatpush.bf16.msra.mxu0 %v3340
      %3375 = vmatmul.bf16.gmra.mxu0 %v3356
      %v3376 = vpop.f32.mrf.mxu0
      %v3377 = vadd.f32 0.0, %v3376
      %v3378 = vpop.f32.mrf.mxu0
      %v3379 = vadd.f32 0.0, %v3378
      %3380 = vmatmul.bf16.gmra.mxu0 %v3359
      %v3381 = vpop.f32.mrf.mxu0
      %v3382 = vadd.f32 0.0, %v3381
      %v3383 = vpop.f32.mrf.mxu0
      %3384 = vdwg.mxu0
      %3385 = vmatpush.bf16.msra.mxu0 0
      %3386 = vmatpush.bf16.msra.mxu0 0
      %3387 = vmatpush.bf16.msra.mxu0 0
      %3388 = vmatpush.bf16.msra.mxu0 %v3365
      %3389 = vmatpush.bf16.msra.mxu0 %v3347
      %3390 = vmatpush.bf16.msra.mxu0 %v3345
      %3391 = vmatpush.bf16.msra.mxu0 %v3343
      %3392 = vmatpush.bf16.msra.mxu0 %v3341
      %3393 = vmatmul.bf16.gmra.mxu0 %v3356
      %v3394 = vpop.f32.mrf.mxu0
      %v3395 = vadd.f32 0.0, %v3394
      %v3396 = vpop.f32.mrf.mxu0
      %v3397 = vadd.f32 0.0, %v3396
      %3398 = vmatmul.bf16.gmra.mxu0 %v3359
      %v3399 = vpop.f32.mrf.mxu0
      %v3400 = vadd.f32 0.0, %v3399
      %v3401 = vpop.f32.mrf.mxu0
      %3402 = vdwg.mxu0
      %v3403 = vld [vmem:[%s1 + $0xf0] sm:$0xff]
      %v3404 = vld [vmem:[%s1 + $0xf8] sm:$0xff]
      %v3405 = vld [vmem:[%s1 + $0x100] sm:$0xff]
      %vm3406 = vcmp.ge.f32.partialorder %v3377, 0.0
      %vm3407 = vcmp.ge.f32.partialorder %v3395, 0.0
      %vm3408 = vcmp.ge.f32.partialorder %v3379, 0.0
      %vm3409 = vcmp.ge.f32.partialorder %v3397, 0.0
      %vm3410 = vcmp.ge.f32.partialorder %v3382, 0.0
      %vm3411 = vcmp.ge.f32.partialorder %v3400, 0.0
      %3413 = vset.pattern.permute.xlu0 0
      %3414 = vperm.xlu0 %3413, %v3403
      %v3415 = vpop.permute.xlu0 %3414
      %3418 = vset.pattern.permute.xlu0 0
      %3419 = vperm.xlu0 %3418, %v3404
      %v3420 = vpop.permute.xlu0 %3419
      %3423 = vset.pattern.permute.xlu0 0
      %3424 = vperm.xlu0 %3423, %v3405
      %v3425 = vpop.permute.xlu0 %3424
      %v3427 = vmul.f32 %v3415, %v3377
      %v3428 = vmul.f32 %v3415, %v3395
      %v3429 = vmul.f32 %v3420, %v3379
      %v3430 = vmul.f32 %v3420, %v3397
      %v3431 = vmul.f32 %v3425, %v3382
      %v3432 = vmul.f32 %v3425, %v3400
      %v3433 = vsel %vm3406, %v3377, %v3427
      %v3434 = vsel %vm3407, %v3395, %v3428
      %v3435 = vsel %vm3408, %v3379, %v3429
      %v3436 = vsel %vm3409, %v3397, %v3430
      %v3437 = vsel %vm3410, %v3382, %v3431
      %v3438 = vsel %vm3411, %v3400, %v3432
      %v3439 = vld [vmem:[%s1 + $0x1b0] sm:$0xff]
      %v3440 = vld [vmem:[%s1 + $0x1b8] sm:$0xff]
      %v3441 = vld [vmem:[%s1 + $0x1c0] sm:$0xff]
      %v3442 = vadd.f32 %v3433, %v3434
      %3443 = vadd.xlane.f32.xlu0 %v3442
      %v3444 = vpop.xlane.xlu0 %3443
      %v3445 = vadd.f32 %v3435, %v3436
      %3446 = vadd.xlane.f32.xlu0 %v3445
      %v3447 = vpop.xlane.xlu0 %3446
      %v3448 = vadd.f32 %v3437, %v3438
      %3449 = vadd.xlane.f32.xlu0 %v3448
      %v3450 = vpop.xlane.xlu0 %3449
      %v3451 = vmul.f32 %v3444, %v265
      %v3452 = vmul.f32 %v3447, %v265
      %v3453 = vmul.f32 %v3450, %v265
      %vm3454 = vcmask 195584
      %v3456 = vsel %vm3454, %v3439, 0
      %v3459 = vsel %vm3454, %v3440, 0
      %v3462 = vsel %vm3454, %v3441, 0
      %3464 = vmatpush.msra.mxu0 0.0
      %3465 = vmatpush.msra.mxu0 0.0
      %3466 = vmatpush.msra.mxu0 0.0
      %3467 = vmatpush.msra.mxu0 0.0
      %3468 = vmatpush.msra.mxu0 0.0
      %3469 = vmatpush.msra.mxu0 0.0
      %3470 = vmatpush.msra.mxu0 0.0
      %3471 = vmatpush.msra.mxu0 0.0
      %3472 = vmatpush.msra.mxu0 0.0
      %3473 = vmatpush.msra.mxu0 0.0
      %3474 = vmatpush.msra.mxu0 0.0
      %3475 = vmatpush.msra.mxu0 0.0
      %3476 = vmatpush.msra.mxu0 0.0
      %v3477 = vand.u32 %v3453, 4294901760
      %3478 = vmatpush.msra.mxu0 %v3477
      %v3479 = vand.u32 %v3452, 4294901760
      %3480 = vmatpush.msra.mxu0 %v3479
      %v3481 = vand.u32 %v3451, 4294901760
      %3482 = vmatpush.msra.mxu0 %v3481
      %v3483 = vand.u32 %v3456, 4294901760
      %v3484 = vsub.f32 %v3456, %v3483
      %v3485 = vand.u32 %v3484, 4294901760
      %v3486 = vsub.f32 %v3484, %v3485
      %v3487 = vand.u32 %v3486, 4294901760
      %3488 = vmatmul.f32.gmra.mxu0 %v3487
      %v3489 = vpop.f32.mrf.mxu0
      %v3490 = vadd.f32 0.0, %v3489
      %v3491 = vand.u32 %v3459, 4294901760
      %v3492 = vsub.f32 %v3459, %v3491
      %v3493 = vand.u32 %v3492, 4294901760
      %v3494 = vsub.f32 %v3492, %v3493
      %v3495 = vand.u32 %v3494, 4294901760
      %3496 = vmatmul.f32.gmra.mxu0 %v3495
      %v3497 = vpop.f32.mrf.mxu0
      %v3498 = vadd.f32 0.0, %v3497
      %v3499 = vand.u32 %v3462, 4294901760
      %v3500 = vsub.f32 %v3462, %v3499
      %v3501 = vand.u32 %v3500, 4294901760
      %v3502 = vsub.f32 %v3500, %v3501
      %v3503 = vand.u32 %v3502, 4294901760
      %3504 = vmatmul.f32.gmra.mxu0 %v3503
      %v3505 = vpop.f32.mrf.mxu0
      %v3506 = vadd.f32 0.0, %v3505
      %3507 = vdwg.mxu0
      %3508 = vmatpush.msra.mxu0 0.0
      %3509 = vmatpush.msra.mxu0 0.0
      %3510 = vmatpush.msra.mxu0 0.0
      %3511 = vmatpush.msra.mxu0 0.0
      %3512 = vmatpush.msra.mxu0 0.0
      %3513 = vmatpush.msra.mxu0 0.0
      %3514 = vmatpush.msra.mxu0 0.0
      %3515 = vmatpush.msra.mxu0 0.0
      %3516 = vmatpush.msra.mxu0 0.0
      %3517 = vmatpush.msra.mxu0 0.0
      %3518 = vmatpush.msra.mxu0 0.0
      %3519 = vmatpush.msra.mxu0 0.0
      %3520 = vmatpush.msra.mxu0 0.0
      %v3521 = vand.u32 %v3453, 4294901760
      %v3522 = vsub.f32 %v3453, %v3521
      %v3523 = vand.u32 %v3522, 4294901760
      %v3524 = vsub.f32 %v3522, %v3523
      %v3525 = vand.u32 %v3524, 4294901760
      %3526 = vmatpush.msra.mxu0 %v3525
      %v3527 = vand.u32 %v3452, 4294901760
      %v3528 = vsub.f32 %v3452, %v3527
      %v3529 = vand.u32 %v3528, 4294901760
      %v3530 = vsub.f32 %v3528, %v3529
      %v3531 = vand.u32 %v3530, 4294901760
      %3532 = vmatpush.msra.mxu0 %v3531
      %v3533 = vand.u32 %v3451, 4294901760
      %v3534 = vsub.f32 %v3451, %v3533
      %v3535 = vand.u32 %v3534, 4294901760
      %v3536 = vsub.f32 %v3534, %v3535
      %v3537 = vand.u32 %v3536, 4294901760
      %3538 = vmatpush.msra.mxu0 %v3537
      %v3539 = vand.u32 %v3456, 4294901760
      %3540 = vmatmul.f32.gmra.mxu0 %v3539
      %v3541 = vpop.f32.mrf.mxu0
      %v3542 = vadd.f32 %v3490, %v3541
      %v3543 = vand.u32 %v3459, 4294901760
      %3544 = vmatmul.f32.gmra.mxu0 %v3543
      %v3545 = vpop.f32.mrf.mxu0
      %v3546 = vadd.f32 %v3498, %v3545
      %v3547 = vand.u32 %v3462, 4294901760
      %3548 = vmatmul.f32.gmra.mxu0 %v3547
      %v3549 = vpop.f32.mrf.mxu0
      %v3550 = vadd.f32 %v3506, %v3549
      %3551 = vdwg.mxu0
      %3552 = vmatpush.msra.mxu0 0.0
      %3553 = vmatpush.msra.mxu0 0.0
      %3554 = vmatpush.msra.mxu0 0.0
      %3555 = vmatpush.msra.mxu0 0.0
      %3556 = vmatpush.msra.mxu0 0.0
      %3557 = vmatpush.msra.mxu0 0.0
      %3558 = vmatpush.msra.mxu0 0.0
      %3559 = vmatpush.msra.mxu0 0.0
      %3560 = vmatpush.msra.mxu0 0.0
      %3561 = vmatpush.msra.mxu0 0.0
      %3562 = vmatpush.msra.mxu0 0.0
      %3563 = vmatpush.msra.mxu0 0.0
      %3564 = vmatpush.msra.mxu0 0.0
      %v3565 = vand.u32 %v3453, 4294901760
      %v3566 = vsub.f32 %v3453, %v3565
      %3567 = vmatpush.msra.mxu0 %v3566
      %v3568 = vand.u32 %v3452, 4294901760
      %v3569 = vsub.f32 %v3452, %v3568
      %3570 = vmatpush.msra.mxu0 %v3569
      %v3571 = vand.u32 %v3451, 4294901760
      %v3572 = vsub.f32 %v3451, %v3571
      %3573 = vmatpush.msra.mxu0 %v3572
      %v3574 = vand.u32 %v3456, 4294901760
      %v3575 = vsub.f32 %v3456, %v3574
      %3576 = vmatmul.f32.gmra.mxu0 %v3575
      %v3577 = vpop.f32.mrf.mxu0
      %v3578 = vadd.f32 %v3542, %v3577
      %v3579 = vand.u32 %v3459, 4294901760
      %v3580 = vsub.f32 %v3459, %v3579
      %3581 = vmatmul.f32.gmra.mxu0 %v3580
      %v3582 = vpop.f32.mrf.mxu0
      %v3583 = vadd.f32 %v3546, %v3582
      %v3584 = vand.u32 %v3462, 4294901760
      %v3585 = vsub.f32 %v3462, %v3584
      %3586 = vmatmul.f32.gmra.mxu0 %v3585
      %v3587 = vpop.f32.mrf.mxu0
      %v3588 = vadd.f32 %v3550, %v3587
      %3589 = vdwg.mxu0
      %3590 = vmatpush.msra.mxu0 0.0
      %3591 = vmatpush.msra.mxu0 0.0
      %3592 = vmatpush.msra.mxu0 0.0
      %3593 = vmatpush.msra.mxu0 0.0
      %3594 = vmatpush.msra.mxu0 0.0
      %3595 = vmatpush.msra.mxu0 0.0
      %3596 = vmatpush.msra.mxu0 0.0
      %3597 = vmatpush.msra.mxu0 0.0
      %3598 = vmatpush.msra.mxu0 0.0
      %3599 = vmatpush.msra.mxu0 0.0
      %3600 = vmatpush.msra.mxu0 0.0
      %3601 = vmatpush.msra.mxu0 0.0
      %3602 = vmatpush.msra.mxu0 0.0
      %v3603 = vand.u32 %v3453, 4294901760
      %3604 = vmatpush.msra.mxu0 %v3603
      %v3605 = vand.u32 %v3452, 4294901760
      %3606 = vmatpush.msra.mxu0 %v3605
      %v3607 = vand.u32 %v3451, 4294901760
      %3608 = vmatpush.msra.mxu0 %v3607
      %v3609 = vand.u32 %v3456, 4294901760
      %v3610 = vsub.f32 %v3456, %v3609
      %v3611 = vand.u32 %v3610, 4294901760
      %3612 = vmatmul.f32.gmra.mxu0 %v3611
      %v3613 = vpop.f32.mrf.mxu0
      %v3614 = vadd.f32 %v3578, %v3613
      %v3615 = vand.u32 %v3459, 4294901760
      %v3616 = vsub.f32 %v3459, %v3615
      %v3617 = vand.u32 %v3616, 4294901760
      %3618 = vmatmul.f32.gmra.mxu0 %v3617
      %v3619 = vpop.f32.mrf.mxu0
      %v3620 = vadd.f32 %v3583, %v3619
      %v3621 = vand.u32 %v3462, 4294901760
      %v3622 = vsub.f32 %v3462, %v3621
      %v3623 = vand.u32 %v3622, 4294901760
      %3624 = vmatmul.f32.gmra.mxu0 %v3623
      %v3625 = vpop.f32.mrf.mxu0
      %v3626 = vadd.f32 %v3588, %v3625
      %3627 = vdwg.mxu0
      %3628 = vmatpush.msra.mxu0 0.0
      %3629 = vmatpush.msra.mxu0 0.0
      %3630 = vmatpush.msra.mxu0 0.0
      %3631 = vmatpush.msra.mxu0 0.0
      %3632 = vmatpush.msra.mxu0 0.0
      %3633 = vmatpush.msra.mxu0 0.0
      %3634 = vmatpush.msra.mxu0 0.0
      %3635 = vmatpush.msra.mxu0 0.0
      %3636 = vmatpush.msra.mxu0 0.0
      %3637 = vmatpush.msra.mxu0 0.0
      %3638 = vmatpush.msra.mxu0 0.0
      %3639 = vmatpush.msra.mxu0 0.0
      %3640 = vmatpush.msra.mxu0 0.0
      %v3641 = vand.u32 %v3453, 4294901760
      %v3642 = vsub.f32 %v3453, %v3641
      %v3643 = vand.u32 %v3642, 4294901760
      %3644 = vmatpush.msra.mxu0 %v3643
      %v3645 = vand.u32 %v3452, 4294901760
      %v3646 = vsub.f32 %v3452, %v3645
      %v3647 = vand.u32 %v3646, 4294901760
      %3648 = vmatpush.msra.mxu0 %v3647
      %v3649 = vand.u32 %v3451, 4294901760
      %v3650 = vsub.f32 %v3451, %v3649
      %v3651 = vand.u32 %v3650, 4294901760
      %3652 = vmatpush.msra.mxu0 %v3651
      %v3653 = vand.u32 %v3456, 4294901760
      %3654 = vmatmul.f32.gmra.mxu0 %v3653
      %v3655 = vpop.f32.mrf.mxu0
      %v3656 = vadd.f32 %v3614, %v3655
      %v3657 = vand.u32 %v3459, 4294901760
      %3658 = vmatmul.f32.gmra.mxu0 %v3657
      %v3659 = vpop.f32.mrf.mxu0
      %v3660 = vadd.f32 %v3620, %v3659
      %v3661 = vand.u32 %v3462, 4294901760
      %3662 = vmatmul.f32.gmra.mxu0 %v3661
      %v3663 = vpop.f32.mrf.mxu0
      %v3664 = vadd.f32 %v3626, %v3663
      %3665 = vdwg.mxu0
      %3666 = vmatpush.msra.mxu0 0.0
      %3667 = vmatpush.msra.mxu0 0.0
      %3668 = vmatpush.msra.mxu0 0.0
      %3669 = vmatpush.msra.mxu0 0.0
      %3670 = vmatpush.msra.mxu0 0.0
      %3671 = vmatpush.msra.mxu0 0.0
      %3672 = vmatpush.msra.mxu0 0.0
      %3673 = vmatpush.msra.mxu0 0.0
      %3674 = vmatpush.msra.mxu0 0.0
      %3675 = vmatpush.msra.mxu0 0.0
      %3676 = vmatpush.msra.mxu0 0.0
      %3677 = vmatpush.msra.mxu0 0.0
      %3678 = vmatpush.msra.mxu0 0.0
      %v3679 = vand.u32 %v3453, 4294901760
      %3680 = vmatpush.msra.mxu0 %v3679
      %v3681 = vand.u32 %v3452, 4294901760
      %3682 = vmatpush.msra.mxu0 %v3681
      %v3683 = vand.u32 %v3451, 4294901760
      %3684 = vmatpush.msra.mxu0 %v3683
      %v3685 = vand.u32 %v3456, 4294901760
      %3686 = vmatmul.f32.gmra.mxu0 %v3685
      %v3687 = vpop.f32.mrf.mxu0
      %v3688 = vadd.f32 %v3656, %v3687
      %v3689 = vand.u32 %v3459, 4294901760
      %3690 = vmatmul.f32.gmra.mxu0 %v3689
      %v3691 = vpop.f32.mrf.mxu0
      %v3692 = vadd.f32 %v3660, %v3691
      %v3693 = vand.u32 %v3462, 4294901760
      %3694 = vmatmul.f32.gmra.mxu0 %v3693
      %v3695 = vpop.f32.mrf.mxu0
      %v3696 = vadd.f32 %v3664, %v3695
      %3697 = vdwg.mxu0
      %3699 = vset.pattern.permute.xlu0 0
      %3700 = vperm.xlu0 %3699, %v3688
      %v3701 = vpop.permute.xlu0 %3700
      %3704 = vset.pattern.permute.xlu0 0
      %3705 = vperm.xlu0 %3704, %v3692
      %v3706 = vpop.permute.xlu0 %3705
      %3709 = vset.pattern.permute.xlu0 0
      %3710 = vperm.xlu0 %3709, %v3696
      %v3711 = vpop.permute.xlu0 %3710
      %v3713 = vsub.f32 %v3433, %v3701
      %v3714 = vsub.f32 %v3434, %v3701
      %v3715 = vsub.f32 %v3435, %v3706
      %v3716 = vsub.f32 %v3436, %v3706
      %v3717 = vsub.f32 %v3437, %v3711
      %v3718 = vsub.f32 %v3438, %v3711
      %v3719 = vmul.f32 %v3713, %v3713
      %v3720 = vmul.f32 %v3714, %v3714
      %v3721 = vmul.f32 %v3715, %v3715
      %v3722 = vmul.f32 %v3716, %v3716
      %v3723 = vmul.f32 %v3717, %v3717
      %v3724 = vmul.f32 %v3718, %v3718
      %v3725 = vadd.f32 %v3719, %v3720
      %3726 = vadd.xlane.f32.xlu0 %v3725
      %v3727 = vpop.xlane.xlu0 %3726
      %v3728 = vadd.f32 %v3721, %v3722
      %3729 = vadd.xlane.f32.xlu0 %v3728
      %v3730 = vpop.xlane.xlu0 %3729
      %v3731 = vadd.f32 %v3723, %v3724
      %3732 = vadd.xlane.f32.xlu0 %v3731
      %v3733 = vpop.xlane.xlu0 %3732
      %v3734 = vmul.f32 %v3727, %v265
      %v3735 = vmul.f32 %v3730, %v265
      %v3736 = vmul.f32 %v3733, %v265
      %3737 = vmatpush.msra.mxu0 0.0
      %3738 = vmatpush.msra.mxu0 0.0
      %3739 = vmatpush.msra.mxu0 0.0
      %3740 = vmatpush.msra.mxu0 0.0
      %3741 = vmatpush.msra.mxu0 0.0
      %3742 = vmatpush.msra.mxu0 0.0
      %3743 = vmatpush.msra.mxu0 0.0
      %3744 = vmatpush.msra.mxu0 0.0
      %3745 = vmatpush.msra.mxu0 0.0
      %3746 = vmatpush.msra.mxu0 0.0
      %3747 = vmatpush.msra.mxu0 0.0
      %3748 = vmatpush.msra.mxu0 0.0
      %3749 = vmatpush.msra.mxu0 0.0
      %v3750 = vand.u32 %v3736, 4294901760
      %3751 = vmatpush.msra.mxu0 %v3750
      %v3752 = vand.u32 %v3735, 4294901760
      %3753 = vmatpush.msra.mxu0 %v3752
      %v3754 = vand.u32 %v3734, 4294901760
      %3755 = vmatpush.msra.mxu0 %v3754
      %v3756 = vand.u32 %v3456, 4294901760
      %v3757 = vsub.f32 %v3456, %v3756
      %v3758 = vand.u32 %v3757, 4294901760
      %v3759 = vsub.f32 %v3757, %v3758
      %v3760 = vand.u32 %v3759, 4294901760
      %3761 = vmatmul.f32.gmra.mxu0 %v3760
      %v3762 = vpop.f32.mrf.mxu0
      %v3763 = vadd.f32 1e-05, %v3762
      %v3764 = vand.u32 %v3459, 4294901760
      %v3765 = vsub.f32 %v3459, %v3764
      %v3766 = vand.u32 %v3765, 4294901760
      %v3767 = vsub.f32 %v3765, %v3766
      %v3768 = vand.u32 %v3767, 4294901760
      %3769 = vmatmul.f32.gmra.mxu0 %v3768
      %v3770 = vpop.f32.mrf.mxu0
      %v3771 = vadd.f32 1e-05, %v3770
      %v3772 = vand.u32 %v3462, 4294901760
      %v3773 = vsub.f32 %v3462, %v3772
      %v3774 = vand.u32 %v3773, 4294901760
      %v3775 = vsub.f32 %v3773, %v3774
      %v3776 = vand.u32 %v3775, 4294901760
      %3777 = vmatmul.f32.gmra.mxu0 %v3776
      %v3778 = vpop.f32.mrf.mxu0
      %v3779 = vadd.f32 1e-05, %v3778
      %3780 = vdwg.mxu0
      %3781 = vmatpush.msra.mxu0 0.0
      %3782 = vmatpush.msra.mxu0 0.0
      %3783 = vmatpush.msra.mxu0 0.0
      %3784 = vmatpush.msra.mxu0 0.0
      %3785 = vmatpush.msra.mxu0 0.0
      %3786 = vmatpush.msra.mxu0 0.0
      %3787 = vmatpush.msra.mxu0 0.0
      %3788 = vmatpush.msra.mxu0 0.0
      %3789 = vmatpush.msra.mxu0 0.0
      %3790 = vmatpush.msra.mxu0 0.0
      %3791 = vmatpush.msra.mxu0 0.0
      %3792 = vmatpush.msra.mxu0 0.0
      %3793 = vmatpush.msra.mxu0 0.0
      %v3794 = vand.u32 %v3736, 4294901760
      %v3795 = vsub.f32 %v3736, %v3794
      %v3796 = vand.u32 %v3795, 4294901760
      %v3797 = vsub.f32 %v3795, %v3796
      %v3798 = vand.u32 %v3797, 4294901760
      %3799 = vmatpush.msra.mxu0 %v3798
      %v3800 = vand.u32 %v3735, 4294901760
      %v3801 = vsub.f32 %v3735, %v3800
      %v3802 = vand.u32 %v3801, 4294901760
      %v3803 = vsub.f32 %v3801, %v3802
      %v3804 = vand.u32 %v3803, 4294901760
      %3805 = vmatpush.msra.mxu0 %v3804
      %v3806 = vand.u32 %v3734, 4294901760
      %v3807 = vsub.f32 %v3734, %v3806
      %v3808 = vand.u32 %v3807, 4294901760
      %v3809 = vsub.f32 %v3807, %v3808
      %v3810 = vand.u32 %v3809, 4294901760
      %3811 = vmatpush.msra.mxu0 %v3810
      %v3812 = vand.u32 %v3456, 4294901760
      %3813 = vmatmul.f32.gmra.mxu0 %v3812
      %v3814 = vpop.f32.mrf.mxu0
      %v3815 = vadd.f32 %v3763, %v3814
      %v3816 = vand.u32 %v3459, 4294901760
      %3817 = vmatmul.f32.gmra.mxu0 %v3816
      %v3818 = vpop.f32.mrf.mxu0
      %v3819 = vadd.f32 %v3771, %v3818
      %v3820 = vand.u32 %v3462, 4294901760
      %3821 = vmatmul.f32.gmra.mxu0 %v3820
      %v3822 = vpop.f32.mrf.mxu0
      %v3823 = vadd.f32 %v3779, %v3822
      %3824 = vdwg.mxu0
      %3825 = vmatpush.msra.mxu0 0.0
      %3826 = vmatpush.msra.mxu0 0.0
      %3827 = vmatpush.msra.mxu0 0.0
      %3828 = vmatpush.msra.mxu0 0.0
      %3829 = vmatpush.msra.mxu0 0.0
      %3830 = vmatpush.msra.mxu0 0.0
      %3831 = vmatpush.msra.mxu0 0.0
      %3832 = vmatpush.msra.mxu0 0.0
      %3833 = vmatpush.msra.mxu0 0.0
      %3834 = vmatpush.msra.mxu0 0.0
      %3835 = vmatpush.msra.mxu0 0.0
      %3836 = vmatpush.msra.mxu0 0.0
      %3837 = vmatpush.msra.mxu0 0.0
      %v3838 = vand.u32 %v3736, 4294901760
      %v3839 = vsub.f32 %v3736, %v3838
      %3840 = vmatpush.msra.mxu0 %v3839
      %v3841 = vand.u32 %v3735, 4294901760
      %v3842 = vsub.f32 %v3735, %v3841
      %3843 = vmatpush.msra.mxu0 %v3842
      %v3844 = vand.u32 %v3734, 4294901760
      %v3845 = vsub.f32 %v3734, %v3844
      %3846 = vmatpush.msra.mxu0 %v3845
      %v3847 = vand.u32 %v3456, 4294901760
      %v3848 = vsub.f32 %v3456, %v3847
      %3849 = vmatmul.f32.gmra.mxu0 %v3848
      %v3850 = vpop.f32.mrf.mxu0
      %v3851 = vadd.f32 %v3815, %v3850
      %v3852 = vand.u32 %v3459, 4294901760
      %v3853 = vsub.f32 %v3459, %v3852
      %3854 = vmatmul.f32.gmra.mxu0 %v3853
      %v3855 = vpop.f32.mrf.mxu0
      %v3856 = vadd.f32 %v3819, %v3855
      %v3857 = vand.u32 %v3462, 4294901760
      %v3858 = vsub.f32 %v3462, %v3857
      %3859 = vmatmul.f32.gmra.mxu0 %v3858
      %v3860 = vpop.f32.mrf.mxu0
      %v3861 = vadd.f32 %v3823, %v3860
      %3862 = vdwg.mxu0
      %3863 = vmatpush.msra.mxu0 0.0
      %3864 = vmatpush.msra.mxu0 0.0
      %3865 = vmatpush.msra.mxu0 0.0
      %3866 = vmatpush.msra.mxu0 0.0
      %3867 = vmatpush.msra.mxu0 0.0
      %3868 = vmatpush.msra.mxu0 0.0
      %3869 = vmatpush.msra.mxu0 0.0
      %3870 = vmatpush.msra.mxu0 0.0
      %3871 = vmatpush.msra.mxu0 0.0
      %3872 = vmatpush.msra.mxu0 0.0
      %3873 = vmatpush.msra.mxu0 0.0
      %3874 = vmatpush.msra.mxu0 0.0
      %3875 = vmatpush.msra.mxu0 0.0
      %v3876 = vand.u32 %v3736, 4294901760
      %3877 = vmatpush.msra.mxu0 %v3876
      %v3878 = vand.u32 %v3735, 4294901760
      %3879 = vmatpush.msra.mxu0 %v3878
      %v3880 = vand.u32 %v3734, 4294901760
      %3881 = vmatpush.msra.mxu0 %v3880
      %v3882 = vand.u32 %v3456, 4294901760
      %v3883 = vsub.f32 %v3456, %v3882
      %v3884 = vand.u32 %v3883, 4294901760
      %3885 = vmatmul.f32.gmra.mxu0 %v3884
      %v3886 = vpop.f32.mrf.mxu0
      %v3887 = vadd.f32 %v3851, %v3886
      %v3888 = vand.u32 %v3459, 4294901760
      %v3889 = vsub.f32 %v3459, %v3888
      %v3890 = vand.u32 %v3889, 4294901760
      %3891 = vmatmul.f32.gmra.mxu0 %v3890
      %v3892 = vpop.f32.mrf.mxu0
      %v3893 = vadd.f32 %v3856, %v3892
      %v3894 = vand.u32 %v3462, 4294901760
      %v3895 = vsub.f32 %v3462, %v3894
      %v3896 = vand.u32 %v3895, 4294901760
      %3897 = vmatmul.f32.gmra.mxu0 %v3896
      %v3898 = vpop.f32.mrf.mxu0
      %v3899 = vadd.f32 %v3861, %v3898
      %3900 = vdwg.mxu0
      %3901 = vmatpush.msra.mxu0 0.0
      %3902 = vmatpush.msra.mxu0 0.0
      %3903 = vmatpush.msra.mxu0 0.0
      %3904 = vmatpush.msra.mxu0 0.0
      %3905 = vmatpush.msra.mxu0 0.0
      %3906 = vmatpush.msra.mxu0 0.0
      %3907 = vmatpush.msra.mxu0 0.0
      %3908 = vmatpush.msra.mxu0 0.0
      %3909 = vmatpush.msra.mxu0 0.0
      %3910 = vmatpush.msra.mxu0 0.0
      %3911 = vmatpush.msra.mxu0 0.0
      %3912 = vmatpush.msra.mxu0 0.0
      %3913 = vmatpush.msra.mxu0 0.0
      %v3914 = vand.u32 %v3736, 4294901760
      %v3915 = vsub.f32 %v3736, %v3914
      %v3916 = vand.u32 %v3915, 4294901760
      %3917 = vmatpush.msra.mxu0 %v3916
      %v3918 = vand.u32 %v3735, 4294901760
      %v3919 = vsub.f32 %v3735, %v3918
      %v3920 = vand.u32 %v3919, 4294901760
      %3921 = vmatpush.msra.mxu0 %v3920
      %v3922 = vand.u32 %v3734, 4294901760
      %v3923 = vsub.f32 %v3734, %v3922
      %v3924 = vand.u32 %v3923, 4294901760
      %3925 = vmatpush.msra.mxu0 %v3924
      %v3926 = vand.u32 %v3456, 4294901760
      %3927 = vmatmul.f32.gmra.mxu0 %v3926
      %v3928 = vpop.f32.mrf.mxu0
      %v3929 = vadd.f32 %v3887, %v3928
      %v3930 = vand.u32 %v3459, 4294901760
      %3931 = vmatmul.f32.gmra.mxu0 %v3930
      %v3932 = vpop.f32.mrf.mxu0
      %v3933 = vadd.f32 %v3893, %v3932
      %v3934 = vand.u32 %v3462, 4294901760
      %3935 = vmatmul.f32.gmra.mxu0 %v3934
      %v3936 = vpop.f32.mrf.mxu0
      %v3937 = vadd.f32 %v3899, %v3936
      %3938 = vdwg.mxu0
      %3939 = vmatpush.msra.mxu0 0.0
      %3940 = vmatpush.msra.mxu0 0.0
      %3941 = vmatpush.msra.mxu0 0.0
      %3942 = vmatpush.msra.mxu0 0.0
      %3943 = vmatpush.msra.mxu0 0.0
      %3944 = vmatpush.msra.mxu0 0.0
      %3945 = vmatpush.msra.mxu0 0.0
      %3946 = vmatpush.msra.mxu0 0.0
      %3947 = vmatpush.msra.mxu0 0.0
      %3948 = vmatpush.msra.mxu0 0.0
      %3949 = vmatpush.msra.mxu0 0.0
      %3950 = vmatpush.msra.mxu0 0.0
      %3951 = vmatpush.msra.mxu0 0.0
      %v3952 = vand.u32 %v3736, 4294901760
      %3953 = vmatpush.msra.mxu0 %v3952
      %v3954 = vand.u32 %v3735, 4294901760
      %3955 = vmatpush.msra.mxu0 %v3954
      %v3956 = vand.u32 %v3734, 4294901760
      %3957 = vmatpush.msra.mxu0 %v3956
      %v3958 = vand.u32 %v3456, 4294901760
      %3959 = vmatmul.f32.gmra.mxu0 %v3958
      %v3960 = vpop.f32.mrf.mxu0
      %v3961 = vadd.f32 %v3929, %v3960
      %v3962 = vand.u32 %v3459, 4294901760
      %3963 = vmatmul.f32.gmra.mxu0 %v3962
      %v3964 = vpop.f32.mrf.mxu0
      %v3965 = vadd.f32 %v3933, %v3964
      %v3966 = vand.u32 %v3462, 4294901760
      %3967 = vmatmul.f32.gmra.mxu0 %v3966
      %v3968 = vpop.f32.mrf.mxu0
      %v3969 = vadd.f32 %v3937, %v3968
      %3970 = vdwg.mxu0
      %v3971 = vrsqrt.pop %v3961
      %v3972 = vmul.f32 %v3971, %v3961
      %v3973 = vmul.f32 %v3972, %v3971
      %v3974 = vmul.f32 0.5, %v3973
      %v3975 = vsub.f32 1.5, %v3974
      %v3976 = vmul.f32 %v3971, %v3975
      %vm3977 = vweird.f32 %v3961
      %vm3978 = vweird.f32 %v3971
      %vm3979 = vmor %vm3977, %vm3978
      %v3980 = vsel %vm3979, %v3971, %v3976
      %v3981 = vrsqrt.pop %v3965
      %v3982 = vmul.f32 %v3981, %v3965
      %v3983 = vmul.f32 %v3982, %v3981
      %v3984 = vmul.f32 0.5, %v3983
      %v3985 = vsub.f32 1.5, %v3984
      %v3986 = vmul.f32 %v3981, %v3985
      %vm3987 = vweird.f32 %v3965
      %vm3988 = vweird.f32 %v3981
      %vm3989 = vmor %vm3987, %vm3988
      %v3990 = vsel %vm3989, %v3981, %v3986
      %v3991 = vrsqrt.pop %v3969
      %v3992 = vmul.f32 %v3991, %v3969
      %v3993 = vmul.f32 %v3992, %v3991
      %v3994 = vmul.f32 0.5, %v3993
      %v3995 = vsub.f32 1.5, %v3994
      %v3996 = vmul.f32 %v3991, %v3995
      %vm3997 = vweird.f32 %v3969
      %vm3998 = vweird.f32 %v3991
      %vm3999 = vmor %vm3997, %vm3998
      %v4000 = vsel %vm3999, %v3991, %v3996
      %4002 = vset.pattern.permute.xlu0 0
      %4003 = vperm.xlu0 %4002, %v3980
      %v4004 = vpop.permute.xlu0 %4003
      %4007 = vset.pattern.permute.xlu0 0
      %4008 = vperm.xlu0 %4007, %v3990
      %v4009 = vpop.permute.xlu0 %4008
      %4012 = vset.pattern.permute.xlu0 0
      %4013 = vperm.xlu0 %4012, %v4000
      %v4014 = vpop.permute.xlu0 %4013
      %v4016 = vmul.f32 %v3713, %v4004
      %v4017 = vmul.f32 %v3714, %v4004
      %v4018 = vmul.f32 %v3715, %v4009
      %v4019 = vmul.f32 %v3716, %v4009
      %v4020 = vmul.f32 %v3717, %v4014
      %v4021 = vmul.f32 %v3718, %v4014
      %v4022 = vld [vmem:[%s1 + $0x108] sm:$0xff]
      %v4023 = vld [vmem:[%s1 + $0x110] sm:$0xff]
      %v4024 = vld [vmem:[%s1 + $0x118] sm:$0xff]
      %4026 = vset.pattern.permute.xlu0 0
      %4027 = vperm.xlu0 %4026, %v4022
      %v4028 = vpop.permute.xlu0 %4027
      %4031 = vset.pattern.permute.xlu0 0
      %4032 = vperm.xlu0 %4031, %v4023
      %v4033 = vpop.permute.xlu0 %4032
      %4036 = vset.pattern.permute.xlu0 0
      %4037 = vperm.xlu0 %4036, %v4024
      %v4038 = vpop.permute.xlu0 %4037
      %v4040 = vmul.f32 %v4016, %v4028
      %v4041 = vmul.f32 %v4017, %v4028
      %v4042 = vmul.f32 %v4018, %v4033
      %v4043 = vmul.f32 %v4019, %v4033
      %v4044 = vmul.f32 %v4020, %v4038
      %v4045 = vmul.f32 %v4021, %v4038
      %v4046 = vld [vmem:[%s1 + $0x120] sm:$0xff]
      %v4047 = vld [vmem:[%s1 + $0x128] sm:$0xff]
      %v4048 = vld [vmem:[%s1 + $0x130] sm:$0xff]
      %4050 = vset.pattern.permute.xlu0 0
      %4051 = vperm.xlu0 %4050, %v4046
      %v4052 = vpop.permute.xlu0 %4051
      %4055 = vset.pattern.permute.xlu0 0
      %4056 = vperm.xlu0 %4055, %v4047
      %v4057 = vpop.permute.xlu0 %4056
      %4060 = vset.pattern.permute.xlu0 0
      %4061 = vperm.xlu0 %4060, %v4048
      %v4062 = vpop.permute.xlu0 %4061
      %v4064 = vadd.f32 %v4040, %v4052
      %v4065 = vadd.f32 %v4041, %v4052
      %v4066 = vadd.f32 %v4042, %v4057
      %v4067 = vadd.f32 %v4043, %v4057
      %v4068 = vadd.f32 %v4044, %v4062
      %v4069 = vadd.f32 %v4045, %v4062
      %v4070 = vadd.f32 %v4064, %v4065
      %4071 = vadd.xlane.f32.xlu0 %v4070
      %v4072 = vpop.xlane.xlu0 %4071
      %v4073 = vadd.f32 %v4066, %v4067
      %4074 = vadd.xlane.f32.xlu0 %v4073
      %v4075 = vpop.xlane.xlu0 %4074
      %v4076 = vadd.f32 %v4068, %v4069
      %4077 = vadd.xlane.f32.xlu0 %v4076
      %v4078 = vpop.xlane.xlu0 %4077
      %v4079 = vadd.f32 %v3274, %v3275
      %4080 = vadd.xlane.f32.xlu0 %v4079
      %v4081 = vpop.xlane.xlu0 %4080
      %v4082 = vmul.f32 %v4072, %v265
      %v4083 = vmul.f32 %v4075, %v265
      %v4084 = vmul.f32 %v4078, %v265
      %v4085 = vmul.f32 %v4081, %v265
      %v4086 = vld [vmem:[%s1 + $0x138] sm:$0xf]
      %v4088 = vsel %vm213, %v4086, 0
      %4090 = vmatpush.msra.mxu0 0.0
      %4091 = vmatpush.msra.mxu0 0.0
      %4092 = vmatpush.msra.mxu0 0.0
      %4093 = vmatpush.msra.mxu0 0.0
      %4094 = vmatpush.msra.mxu0 0.0
      %4095 = vmatpush.msra.mxu0 0.0
      %4096 = vmatpush.msra.mxu0 0.0
      %4097 = vmatpush.msra.mxu0 0.0
      %4098 = vmatpush.msra.mxu0 0.0
      %4099 = vmatpush.msra.mxu0 0.0
      %4100 = vmatpush.msra.mxu0 0.0
      %4101 = vmatpush.msra.mxu0 0.0
      %v4102 = vand.u32 %v4085, 4294901760
      %4103 = vmatpush.msra.mxu0 %v4102
      %v4104 = vand.u32 %v4084, 4294901760
      %4105 = vmatpush.msra.mxu0 %v4104
      %v4106 = vand.u32 %v4083, 4294901760
      %4107 = vmatpush.msra.mxu0 %v4106
      %v4108 = vand.u32 %v4082, 4294901760
      %4109 = vmatpush.msra.mxu0 %v4108
      %v4110 = vand.u32 %v4088, 4294901760
      %v4111 = vsub.f32 %v4088, %v4110
      %v4112 = vand.u32 %v4111, 4294901760
      %v4113 = vsub.f32 %v4111, %v4112
      %v4114 = vand.u32 %v4113, 4294901760
      %4115 = vmatmul.f32.gmra.mxu0 %v4114
      %v4116 = vpop.f32.mrf.mxu0
      %v4117 = vadd.f32 0.0, %v4116
      %4118 = vdwg.mxu0
      %4119 = vmatpush.msra.mxu0 0.0
      %4120 = vmatpush.msra.mxu0 0.0
      %4121 = vmatpush.msra.mxu0 0.0
      %4122 = vmatpush.msra.mxu0 0.0
      %4123 = vmatpush.msra.mxu0 0.0
      %4124 = vmatpush.msra.mxu0 0.0
      %4125 = vmatpush.msra.mxu0 0.0
      %4126 = vmatpush.msra.mxu0 0.0
      %4127 = vmatpush.msra.mxu0 0.0
      %4128 = vmatpush.msra.mxu0 0.0
      %4129 = vmatpush.msra.mxu0 0.0
      %4130 = vmatpush.msra.mxu0 0.0
      %v4131 = vand.u32 %v4085, 4294901760
      %v4132 = vsub.f32 %v4085, %v4131
      %v4133 = vand.u32 %v4132, 4294901760
      %v4134 = vsub.f32 %v4132, %v4133
      %v4135 = vand.u32 %v4134, 4294901760
      %4136 = vmatpush.msra.mxu0 %v4135
      %v4137 = vand.u32 %v4084, 4294901760
      %v4138 = vsub.f32 %v4084, %v4137
      %v4139 = vand.u32 %v4138, 4294901760
      %v4140 = vsub.f32 %v4138, %v4139
      %v4141 = vand.u32 %v4140, 4294901760
      %4142 = vmatpush.msra.mxu0 %v4141
      %v4143 = vand.u32 %v4083, 4294901760
      %v4144 = vsub.f32 %v4083, %v4143
      %v4145 = vand.u32 %v4144, 4294901760
      %v4146 = vsub.f32 %v4144, %v4145
      %v4147 = vand.u32 %v4146, 4294901760
      %4148 = vmatpush.msra.mxu0 %v4147
      %v4149 = vand.u32 %v4082, 4294901760
      %v4150 = vsub.f32 %v4082, %v4149
      %v4151 = vand.u32 %v4150, 4294901760
      %v4152 = vsub.f32 %v4150, %v4151
      %v4153 = vand.u32 %v4152, 4294901760
      %4154 = vmatpush.msra.mxu0 %v4153
      %v4155 = vand.u32 %v4088, 4294901760
      %4156 = vmatmul.f32.gmra.mxu0 %v4155
      %v4157 = vpop.f32.mrf.mxu0
      %v4158 = vadd.f32 %v4117, %v4157
      %4159 = vdwg.mxu0
      %4160 = vmatpush.msra.mxu0 0.0
      %4161 = vmatpush.msra.mxu0 0.0
      %4162 = vmatpush.msra.mxu0 0.0
      %4163 = vmatpush.msra.mxu0 0.0
      %4164 = vmatpush.msra.mxu0 0.0
      %4165 = vmatpush.msra.mxu0 0.0
      %4166 = vmatpush.msra.mxu0 0.0
      %4167 = vmatpush.msra.mxu0 0.0
      %4168 = vmatpush.msra.mxu0 0.0
      %4169 = vmatpush.msra.mxu0 0.0
      %4170 = vmatpush.msra.mxu0 0.0
      %4171 = vmatpush.msra.mxu0 0.0
      %v4172 = vand.u32 %v4085, 4294901760
      %v4173 = vsub.f32 %v4085, %v4172
      %4174 = vmatpush.msra.mxu0 %v4173
      %v4175 = vand.u32 %v4084, 4294901760
      %v4176 = vsub.f32 %v4084, %v4175
      %4177 = vmatpush.msra.mxu0 %v4176
      %v4178 = vand.u32 %v4083, 4294901760
      %v4179 = vsub.f32 %v4083, %v4178
      %4180 = vmatpush.msra.mxu0 %v4179
      %v4181 = vand.u32 %v4082, 4294901760
      %v4182 = vsub.f32 %v4082, %v4181
      %4183 = vmatpush.msra.mxu0 %v4182
      %v4184 = vand.u32 %v4088, 4294901760
      %v4185 = vsub.f32 %v4088, %v4184
      %4186 = vmatmul.f32.gmra.mxu0 %v4185
      %v4187 = vpop.f32.mrf.mxu0
      %v4188 = vadd.f32 %v4158, %v4187
      %4189 = vdwg.mxu0
      %4190 = vmatpush.msra.mxu0 0.0
      %4191 = vmatpush.msra.mxu0 0.0
      %4192 = vmatpush.msra.mxu0 0.0
      %4193 = vmatpush.msra.mxu0 0.0
      %4194 = vmatpush.msra.mxu0 0.0
      %4195 = vmatpush.msra.mxu0 0.0
      %4196 = vmatpush.msra.mxu0 0.0
      %4197 = vmatpush.msra.mxu0 0.0
      %4198 = vmatpush.msra.mxu0 0.0
      %4199 = vmatpush.msra.mxu0 0.0
      %4200 = vmatpush.msra.mxu0 0.0
      %4201 = vmatpush.msra.mxu0 0.0
      %v4202 = vand.u32 %v4085, 4294901760
      %4203 = vmatpush.msra.mxu0 %v4202
      %v4204 = vand.u32 %v4084, 4294901760
      %4205 = vmatpush.msra.mxu0 %v4204
      %v4206 = vand.u32 %v4083, 4294901760
      %4207 = vmatpush.msra.mxu0 %v4206
      %v4208 = vand.u32 %v4082, 4294901760
      %4209 = vmatpush.msra.mxu0 %v4208
      %v4210 = vand.u32 %v4088, 4294901760
      %v4211 = vsub.f32 %v4088, %v4210
      %v4212 = vand.u32 %v4211, 4294901760
      %4213 = vmatmul.f32.gmra.mxu0 %v4212
      %v4214 = vpop.f32.mrf.mxu0
      %v4215 = vadd.f32 %v4188, %v4214
      %4216 = vdwg.mxu0
      %4217 = vmatpush.msra.mxu0 0.0
      %4218 = vmatpush.msra.mxu0 0.0
      %4219 = vmatpush.msra.mxu0 0.0
      %4220 = vmatpush.msra.mxu0 0.0
      %4221 = vmatpush.msra.mxu0 0.0
      %4222 = vmatpush.msra.mxu0 0.0
      %4223 = vmatpush.msra.mxu0 0.0
      %4224 = vmatpush.msra.mxu0 0.0
      %4225 = vmatpush.msra.mxu0 0.0
      %4226 = vmatpush.msra.mxu0 0.0
      %4227 = vmatpush.msra.mxu0 0.0
      %4228 = vmatpush.msra.mxu0 0.0
      %v4229 = vand.u32 %v4085, 4294901760
      %v4230 = vsub.f32 %v4085, %v4229
      %v4231 = vand.u32 %v4230, 4294901760
      %4232 = vmatpush.msra.mxu0 %v4231
      %v4233 = vand.u32 %v4084, 4294901760
      %v4234 = vsub.f32 %v4084, %v4233
      %v4235 = vand.u32 %v4234, 4294901760
      %4236 = vmatpush.msra.mxu0 %v4235
      %v4237 = vand.u32 %v4083, 4294901760
      %v4238 = vsub.f32 %v4083, %v4237
      %v4239 = vand.u32 %v4238, 4294901760
      %4240 = vmatpush.msra.mxu0 %v4239
      %v4241 = vand.u32 %v4082, 4294901760
      %v4242 = vsub.f32 %v4082, %v4241
      %v4243 = vand.u32 %v4242, 4294901760
      %4244 = vmatpush.msra.mxu0 %v4243
      %v4245 = vand.u32 %v4088, 4294901760
      %4246 = vmatmul.f32.gmra.mxu0 %v4245
      %v4247 = vpop.f32.mrf.mxu0
      %v4248 = vadd.f32 %v4215, %v4247
      %4249 = vdwg.mxu0
      %4250 = vmatpush.msra.mxu0 0.0
      %4251 = vmatpush.msra.mxu0 0.0
      %4252 = vmatpush.msra.mxu0 0.0
      %4253 = vmatpush.msra.mxu0 0.0
      %4254 = vmatpush.msra.mxu0 0.0
      %4255 = vmatpush.msra.mxu0 0.0
      %4256 = vmatpush.msra.mxu0 0.0
      %4257 = vmatpush.msra.mxu0 0.0
      %4258 = vmatpush.msra.mxu0 0.0
      %4259 = vmatpush.msra.mxu0 0.0
      %4260 = vmatpush.msra.mxu0 0.0
      %4261 = vmatpush.msra.mxu0 0.0
      %v4262 = vand.u32 %v4085, 4294901760
      %4263 = vmatpush.msra.mxu0 %v4262
      %v4264 = vand.u32 %v4084, 4294901760
      %4265 = vmatpush.msra.mxu0 %v4264
      %v4266 = vand.u32 %v4083, 4294901760
      %4267 = vmatpush.msra.mxu0 %v4266
      %v4268 = vand.u32 %v4082, 4294901760
      %4269 = vmatpush.msra.mxu0 %v4268
      %v4270 = vand.u32 %v4088, 4294901760
      %4271 = vmatmul.f32.gmra.mxu0 %v4270
      %v4272 = vpop.f32.mrf.mxu0
      %v4273 = vadd.f32 %v4248, %v4272
      %4274 = vdwg.mxu0
      %v4275 = vmax.f32 %v4273, 0.0
      %v4276 = vld [vmem:[%s1 + $0x140] sm:$0xff]
      %v4277 = vld [vmem:[%s1 + $0x148] sm:$0xff]
      %v4278 = vld [vmem:[%s1 + $0x150] sm:$0xff]
      %v4279 = vld [vmem:[%s1 + $0x158] sm:$0xff]
      %vm4280 = vcmask 31744
      %v4282 = vsel %vm4280, %v4276, 0
      %v4285 = vsel %vm4280, %v4277, 0
      %v4288 = vsel %vm4280, %v4278, 0
      %v4291 = vsel %vm4280, %v4279, 0
      %v4294 = vsel %vm754, %v4275, 0
      %4296 = vmatpush.msra.mxu0 0.0
      %4297 = vmatpush.msra.mxu0 0.0
      %4298 = vmatpush.msra.mxu0 0.0
      %4299 = vmatpush.msra.mxu0 0.0
      %4300 = vmatpush.msra.mxu0 0.0
      %4301 = vmatpush.msra.mxu0 0.0
      %4302 = vmatpush.msra.mxu0 0.0
      %4303 = vmatpush.msra.mxu0 0.0
      %4304 = vmatpush.msra.mxu0 0.0
      %4305 = vmatpush.msra.mxu0 0.0
      %4306 = vmatpush.msra.mxu0 0.0
      %4307 = vmatpush.msra.mxu0 0.0
      %4308 = vmatpush.msra.mxu0 0.0
      %4309 = vmatpush.msra.mxu0 0.0
      %4310 = vmatpush.msra.mxu0 0.0
      %v4311 = vand.u32 %v4294, 4294901760
      %4312 = vmatpush.msra.mxu0 %v4311
      %v4313 = vand.u32 %v4282, 4294901760
      %v4314 = vsub.f32 %v4282, %v4313
      %v4315 = vand.u32 %v4314, 4294901760
      %v4316 = vsub.f32 %v4314, %v4315
      %v4317 = vand.u32 %v4316, 4294901760
      %4318 = vmatmul.f32.gmra.mxu0 %v4317
      %v4319 = vpop.f32.mrf.mxu0
      %v4320 = vadd.f32 0.0, %v4319
      %v4321 = vand.u32 %v4285, 4294901760
      %v4322 = vsub.f32 %v4285, %v4321
      %v4323 = vand.u32 %v4322, 4294901760
      %v4324 = vsub.f32 %v4322, %v4323
      %v4325 = vand.u32 %v4324, 4294901760
      %4326 = vmatmul.f32.gmra.mxu0 %v4325
      %v4327 = vpop.f32.mrf.mxu0
      %v4328 = vadd.f32 0.0, %v4327
      %v4329 = vand.u32 %v4288, 4294901760
      %v4330 = vsub.f32 %v4288, %v4329
      %v4331 = vand.u32 %v4330, 4294901760
      %v4332 = vsub.f32 %v4330, %v4331
      %v4333 = vand.u32 %v4332, 4294901760
      %4334 = vmatmul.f32.gmra.mxu0 %v4333
      %v4335 = vpop.f32.mrf.mxu0
      %v4336 = vadd.f32 0.0, %v4335
      %v4337 = vand.u32 %v4291, 4294901760
      %v4338 = vsub.f32 %v4291, %v4337
      %v4339 = vand.u32 %v4338, 4294901760
      %v4340 = vsub.f32 %v4338, %v4339
      %v4341 = vand.u32 %v4340, 4294901760
      %4342 = vmatmul.f32.gmra.mxu0 %v4341
      %v4343 = vpop.f32.mrf.mxu0
      %v4344 = vadd.f32 0.0, %v4343
      %4345 = vdwg.mxu0
      %4346 = vmatpush.msra.mxu0 0.0
      %4347 = vmatpush.msra.mxu0 0.0
      %4348 = vmatpush.msra.mxu0 0.0
      %4349 = vmatpush.msra.mxu0 0.0
      %4350 = vmatpush.msra.mxu0 0.0
      %4351 = vmatpush.msra.mxu0 0.0
      %4352 = vmatpush.msra.mxu0 0.0
      %4353 = vmatpush.msra.mxu0 0.0
      %4354 = vmatpush.msra.mxu0 0.0
      %4355 = vmatpush.msra.mxu0 0.0
      %4356 = vmatpush.msra.mxu0 0.0
      %4357 = vmatpush.msra.mxu0 0.0
      %4358 = vmatpush.msra.mxu0 0.0
      %4359 = vmatpush.msra.mxu0 0.0
      %4360 = vmatpush.msra.mxu0 0.0
      %v4361 = vand.u32 %v4294, 4294901760
      %v4362 = vsub.f32 %v4294, %v4361
      %v4363 = vand.u32 %v4362, 4294901760
      %v4364 = vsub.f32 %v4362, %v4363
      %v4365 = vand.u32 %v4364, 4294901760
      %4366 = vmatpush.msra.mxu0 %v4365
      %v4367 = vand.u32 %v4282, 4294901760
      %4368 = vmatmul.f32.gmra.mxu0 %v4367
      %v4369 = vpop.f32.mrf.mxu0
      %v4370 = vadd.f32 %v4320, %v4369
      %v4371 = vand.u32 %v4285, 4294901760
      %4372 = vmatmul.f32.gmra.mxu0 %v4371
      %v4373 = vpop.f32.mrf.mxu0
      %v4374 = vadd.f32 %v4328, %v4373
      %v4375 = vand.u32 %v4288, 4294901760
      %4376 = vmatmul.f32.gmra.mxu0 %v4375
      %v4377 = vpop.f32.mrf.mxu0
      %v4378 = vadd.f32 %v4336, %v4377
      %v4379 = vand.u32 %v4291, 4294901760
      %4380 = vmatmul.f32.gmra.mxu0 %v4379
      %v4381 = vpop.f32.mrf.mxu0
      %v4382 = vadd.f32 %v4344, %v4381
      %4383 = vdwg.mxu0
      %4384 = vmatpush.msra.mxu0 0.0
      %4385 = vmatpush.msra.mxu0 0.0
      %4386 = vmatpush.msra.mxu0 0.0
      %4387 = vmatpush.msra.mxu0 0.0
      %4388 = vmatpush.msra.mxu0 0.0
      %4389 = vmatpush.msra.mxu0 0.0
      %4390 = vmatpush.msra.mxu0 0.0
      %4391 = vmatpush.msra.mxu0 0.0
      %4392 = vmatpush.msra.mxu0 0.0
      %4393 = vmatpush.msra.mxu0 0.0
      %4394 = vmatpush.msra.mxu0 0.0
      %4395 = vmatpush.msra.mxu0 0.0
      %4396 = vmatpush.msra.mxu0 0.0
      %4397 = vmatpush.msra.mxu0 0.0
      %4398 = vmatpush.msra.mxu0 0.0
      %v4399 = vand.u32 %v4294, 4294901760
      %v4400 = vsub.f32 %v4294, %v4399
      %4401 = vmatpush.msra.mxu0 %v4400
      %v4402 = vand.u32 %v4282, 4294901760
      %v4403 = vsub.f32 %v4282, %v4402
      %4404 = vmatmul.f32.gmra.mxu0 %v4403
      %v4405 = vpop.f32.mrf.mxu0
      %v4406 = vadd.f32 %v4370, %v4405
      %v4407 = vand.u32 %v4285, 4294901760
      %v4408 = vsub.f32 %v4285, %v4407
      %4409 = vmatmul.f32.gmra.mxu0 %v4408
      %v4410 = vpop.f32.mrf.mxu0
      %v4411 = vadd.f32 %v4374, %v4410
      %v4412 = vand.u32 %v4288, 4294901760
      %v4413 = vsub.f32 %v4288, %v4412
      %4414 = vmatmul.f32.gmra.mxu0 %v4413
      %v4415 = vpop.f32.mrf.mxu0
      %v4416 = vadd.f32 %v4378, %v4415
      %v4417 = vand.u32 %v4291, 4294901760
      %v4418 = vsub.f32 %v4291, %v4417
      %4419 = vmatmul.f32.gmra.mxu0 %v4418
      %v4420 = vpop.f32.mrf.mxu0
      %v4421 = vadd.f32 %v4382, %v4420
      %4422 = vdwg.mxu0
      %4423 = vmatpush.msra.mxu0 0.0
      %4424 = vmatpush.msra.mxu0 0.0
      %4425 = vmatpush.msra.mxu0 0.0
      %4426 = vmatpush.msra.mxu0 0.0
      %4427 = vmatpush.msra.mxu0 0.0
      %4428 = vmatpush.msra.mxu0 0.0
      %4429 = vmatpush.msra.mxu0 0.0
      %4430 = vmatpush.msra.mxu0 0.0
      %4431 = vmatpush.msra.mxu0 0.0
      %4432 = vmatpush.msra.mxu0 0.0
      %4433 = vmatpush.msra.mxu0 0.0
      %4434 = vmatpush.msra.mxu0 0.0
      %4435 = vmatpush.msra.mxu0 0.0
      %4436 = vmatpush.msra.mxu0 0.0
      %4437 = vmatpush.msra.mxu0 0.0
      %v4438 = vand.u32 %v4294, 4294901760
      %4439 = vmatpush.msra.mxu0 %v4438
      %v4440 = vand.u32 %v4282, 4294901760
      %v4441 = vsub.f32 %v4282, %v4440
      %v4442 = vand.u32 %v4441, 4294901760
      %4443 = vmatmul.f32.gmra.mxu0 %v4442
      %v4444 = vpop.f32.mrf.mxu0
      %v4445 = vadd.f32 %v4406, %v4444
      %v4446 = vand.u32 %v4285, 4294901760
      %v4447 = vsub.f32 %v4285, %v4446
      %v4448 = vand.u32 %v4447, 4294901760
      %4449 = vmatmul.f32.gmra.mxu0 %v4448
      %v4450 = vpop.f32.mrf.mxu0
      %v4451 = vadd.f32 %v4411, %v4450
      %v4452 = vand.u32 %v4288, 4294901760
      %v4453 = vsub.f32 %v4288, %v4452
      %v4454 = vand.u32 %v4453, 4294901760
      %4455 = vmatmul.f32.gmra.mxu0 %v4454
      %v4456 = vpop.f32.mrf.mxu0
      %v4457 = vadd.f32 %v4416, %v4456
      %v4458 = vand.u32 %v4291, 4294901760
      %v4459 = vsub.f32 %v4291, %v4458
      %v4460 = vand.u32 %v4459, 4294901760
      %4461 = vmatmul.f32.gmra.mxu0 %v4460
      %v4462 = vpop.f32.mrf.mxu0
      %v4463 = vadd.f32 %v4421, %v4462
      %4464 = vdwg.mxu0
      %4465 = vmatpush.msra.mxu0 0.0
      %4466 = vmatpush.msra.mxu0 0.0
      %4467 = vmatpush.msra.mxu0 0.0
      %4468 = vmatpush.msra.mxu0 0.0
      %4469 = vmatpush.msra.mxu0 0.0
      %4470 = vmatpush.msra.mxu0 0.0
      %4471 = vmatpush.msra.mxu0 0.0
      %4472 = vmatpush.msra.mxu0 0.0
      %4473 = vmatpush.msra.mxu0 0.0
      %4474 = vmatpush.msra.mxu0 0.0
      %4475 = vmatpush.msra.mxu0 0.0
      %4476 = vmatpush.msra.mxu0 0.0
      %4477 = vmatpush.msra.mxu0 0.0
      %4478 = vmatpush.msra.mxu0 0.0
      %4479 = vmatpush.msra.mxu0 0.0
      %v4480 = vand.u32 %v4294, 4294901760
      %v4481 = vsub.f32 %v4294, %v4480
      %v4482 = vand.u32 %v4481, 4294901760
      %4483 = vmatpush.msra.mxu0 %v4482
      %v4484 = vand.u32 %v4282, 4294901760
      %4485 = vmatmul.f32.gmra.mxu0 %v4484
      %v4486 = vpop.f32.mrf.mxu0
      %v4487 = vadd.f32 %v4445, %v4486
      %v4488 = vand.u32 %v4285, 4294901760
      %4489 = vmatmul.f32.gmra.mxu0 %v4488
      %v4490 = vpop.f32.mrf.mxu0
      %v4491 = vadd.f32 %v4451, %v4490
      %v4492 = vand.u32 %v4288, 4294901760
      %4493 = vmatmul.f32.gmra.mxu0 %v4492
      %v4494 = vpop.f32.mrf.mxu0
      %v4495 = vadd.f32 %v4457, %v4494
      %v4496 = vand.u32 %v4291, 4294901760
      %4497 = vmatmul.f32.gmra.mxu0 %v4496
      %v4498 = vpop.f32.mrf.mxu0
      %v4499 = vadd.f32 %v4463, %v4498
      %4500 = vdwg.mxu0
      %4501 = vmatpush.msra.mxu0 0.0
      %4502 = vmatpush.msra.mxu0 0.0
      %4503 = vmatpush.msra.mxu0 0.0
      %4504 = vmatpush.msra.mxu0 0.0
      %4505 = vmatpush.msra.mxu0 0.0
      %4506 = vmatpush.msra.mxu0 0.0
      %4507 = vmatpush.msra.mxu0 0.0
      %4508 = vmatpush.msra.mxu0 0.0
      %4509 = vmatpush.msra.mxu0 0.0
      %4510 = vmatpush.msra.mxu0 0.0
      %4511 = vmatpush.msra.mxu0 0.0
      %4512 = vmatpush.msra.mxu0 0.0
      %4513 = vmatpush.msra.mxu0 0.0
      %4514 = vmatpush.msra.mxu0 0.0
      %4515 = vmatpush.msra.mxu0 0.0
      %v4516 = vand.u32 %v4294, 4294901760
      %4517 = vmatpush.msra.mxu0 %v4516
      %v4518 = vand.u32 %v4282, 4294901760
      %4519 = vmatmul.f32.gmra.mxu0 %v4518
      %v4520 = vpop.f32.mrf.mxu0
      %v4521 = vadd.f32 %v4487, %v4520
      %v4522 = vand.u32 %v4285, 4294901760
      %4523 = vmatmul.f32.gmra.mxu0 %v4522
      %v4524 = vpop.f32.mrf.mxu0
      %v4525 = vadd.f32 %v4491, %v4524
      %v4526 = vand.u32 %v4288, 4294901760
      %4527 = vmatmul.f32.gmra.mxu0 %v4526
      %v4528 = vpop.f32.mrf.mxu0
      %v4529 = vadd.f32 %v4495, %v4528
      %v4530 = vand.u32 %v4291, 4294901760
      %4531 = vmatmul.f32.gmra.mxu0 %v4530
      %v4532 = vpop.f32.mrf.mxu0
      %v4533 = vadd.f32 %v4499, %v4532
      %4534 = vdwg.mxu0
      %v4535 = vxor.u32 %v4521, 2147483648
      %v4536 = vxor.u32 %v4525, 2147483648
      %v4537 = vxor.u32 %v4529, 2147483648
      %v4538 = vxor.u32 %v4533, 2147483648
      %v4539 = vmul.f32 %v4535, 1.442695
      %v4540 = vpow.pop %v4539
      %v4541 = vmul.f32 %v4536, 1.442695
      %v4542 = vpow.pop %v4541
      %v4543 = vmul.f32 %v4537, 1.442695
      %v4544 = vpow.pop %v4543
      %v4545 = vmul.f32 %v4538, 1.442695
      %v4546 = vpow.pop %v4545
      %v4547 = vadd.f32 %v4540, 1.0
      %v4548 = vadd.f32 %v4542, 1.0
      %v4549 = vadd.f32 %v4544, 1.0
      %v4550 = vadd.f32 %v4546, 1.0
      %v4551 = vrcp.pop %v4547
      %v4552 = vmul.f32 %v4547, %v4551
      %v4553 = vsub.f32 1.0, %v4552
      %v4554 = vmul.f32 %v4551, %v4553
      %v4555 = vadd.f32 %v4551, %v4554
      %vm4556 = vweird.f32 %v4547
      %vm4557 = vweird.f32 %v4551
      %vm4558 = vmor %vm4556, %vm4557
      %v4559 = vsel %vm4558, %v4551, %v4555
      %v4560 = vand.u32 2147483647, %v4547
      %vm4561 = vcmp.eq.f32.partialorder %v4560, 8.507059e+37
      %v4562 = vand.u32 %v4547, 2147483648
      %v4563 = vor.u32 1.1754944e-38, %v4562
      %v4564 = vsel %vm4561, %v4563, %v4559
      %v4565 = vmul.f32 1.0, %v4564
      %v4566 = vrcp.pop %v4548
      %v4567 = vmul.f32 %v4548, %v4566
      %v4568 = vsub.f32 1.0, %v4567
      %v4569 = vmul.f32 %v4566, %v4568
      %v4570 = vadd.f32 %v4566, %v4569
      %vm4571 = vweird.f32 %v4548
      %vm4572 = vweird.f32 %v4566
      %vm4573 = vmor %vm4571, %vm4572
      %v4574 = vsel %vm4573, %v4566, %v4570
      %v4575 = vand.u32 2147483647, %v4548
      %vm4576 = vcmp.eq.f32.partialorder %v4575, 8.507059e+37
      %v4577 = vand.u32 %v4548, 2147483648
      %v4578 = vor.u32 1.1754944e-38, %v4577
      %v4579 = vsel %vm4576, %v4578, %v4574
      %v4580 = vmul.f32 1.0, %v4579
      %v4581 = vrcp.pop %v4549
      %v4582 = vmul.f32 %v4549, %v4581
      %v4583 = vsub.f32 1.0, %v4582
      %v4584 = vmul.f32 %v4581, %v4583
      %v4585 = vadd.f32 %v4581, %v4584
      %vm4586 = vweird.f32 %v4549
      %vm4587 = vweird.f32 %v4581
      %vm4588 = vmor %vm4586, %vm4587
      %v4589 = vsel %vm4588, %v4581, %v4585
      %v4590 = vand.u32 2147483647, %v4549
      %vm4591 = vcmp.eq.f32.partialorder %v4590, 8.507059e+37
      %v4592 = vand.u32 %v4549, 2147483648
      %v4593 = vor.u32 1.1754944e-38, %v4592
      %v4594 = vsel %vm4591, %v4593, %v4589
      %v4595 = vmul.f32 1.0, %v4594
      %v4596 = vrcp.pop %v4550
      %v4597 = vmul.f32 %v4550, %v4596
      %v4598 = vsub.f32 1.0, %v4597
      %v4599 = vmul.f32 %v4596, %v4598
      %v4600 = vadd.f32 %v4596, %v4599
      %vm4601 = vweird.f32 %v4550
      %vm4602 = vweird.f32 %v4596
      %vm4603 = vmor %vm4601, %vm4602
      %v4604 = vsel %vm4603, %v4596, %v4600
      %v4605 = vand.u32 2147483647, %v4550
      %vm4606 = vcmp.eq.f32.partialorder %v4605, 8.507059e+37
      %v4607 = vand.u32 %v4550, 2147483648
      %v4608 = vor.u32 1.1754944e-38, %v4607
      %v4609 = vsel %vm4606, %v4608, %v4604
      %v4610 = vmul.f32 1.0, %v4609
      %4612 = vset.pattern.permute.xlu0 0
      %4613 = vperm.xlu0 %4612, %v4565
      %v4614 = vpop.permute.xlu0 %4613
      %4617 = vset.pattern.permute.xlu0 0
      %4618 = vperm.xlu0 %4617, %v4580
      %v4619 = vpop.permute.xlu0 %4618
      %4622 = vset.pattern.permute.xlu0 0
      %4623 = vperm.xlu0 %4622, %v4595
      %v4624 = vpop.permute.xlu0 %4623
      %4627 = vset.pattern.permute.xlu0 0
      %4628 = vperm.xlu0 %4627, %v4610
      %v4629 = vpop.permute.xlu0 %4628
      %v4631 = vmul.f32 %v4064, %v4614
      %v4632 = vmul.f32 %v4065, %v4614
      %v4633 = vmul.f32 %v4066, %v4619
      %v4634 = vmul.f32 %v4067, %v4619
      %v4635 = vmul.f32 %v4068, %v4624
      %v4636 = vmul.f32 %v4069, %v4624
      %v4637 = vmul.f32 %v3274, %v4629
      %v4638 = vmul.f32 %v3275, %v4629
      %v4639 = vadd.f32 %v199, %v200
      %4640 = vadd.xlane.f32.xlu0 %v4639
      %v4641 = vpop.xlane.xlu0 %4640
      %v4642 = vadd.f32 %v201, %v202
      %4643 = vadd.xlane.f32.xlu0 %v4642
      %v4644 = vpop.xlane.xlu0 %4643
      %v4645 = vadd.f32 %v203, %v204
      %4646 = vadd.xlane.f32.xlu0 %v4645
      %v4647 = vpop.xlane.xlu0 %4646
      %v4648 = vadd.f32 %v205, %v206
      %4649 = vadd.xlane.f32.xlu0 %v4648
      %v4650 = vpop.xlane.xlu0 %4649
      %v4651 = vmul.f32 %v4641, %v265
      %v4652 = vmul.f32 %v4644, %v265
      %v4653 = vmul.f32 %v4647, %v265
      %v4654 = vmul.f32 %v4650, %v265
      %v4655 = vld [vmem:[%s1 + $0x160] sm:$0xf]
      %v4657 = vsel %vm213, %v4655, 0
      %4659 = vmatpush.msra.mxu0 0.0
      %4660 = vmatpush.msra.mxu0 0.0
      %4661 = vmatpush.msra.mxu0 0.0
      %4662 = vmatpush.msra.mxu0 0.0
      %4663 = vmatpush.msra.mxu0 0.0
      %4664 = vmatpush.msra.mxu0 0.0
      %4665 = vmatpush.msra.mxu0 0.0
      %4666 = vmatpush.msra.mxu0 0.0
      %4667 = vmatpush.msra.mxu0 0.0
      %4668 = vmatpush.msra.mxu0 0.0
      %4669 = vmatpush.msra.mxu0 0.0
      %4670 = vmatpush.msra.mxu0 0.0
      %v4671 = vand.u32 %v4654, 4294901760
      %4672 = vmatpush.msra.mxu0 %v4671
      %v4673 = vand.u32 %v4653, 4294901760
      %4674 = vmatpush.msra.mxu0 %v4673
      %v4675 = vand.u32 %v4652, 4294901760
      %4676 = vmatpush.msra.mxu0 %v4675
      %v4677 = vand.u32 %v4651, 4294901760
      %4678 = vmatpush.msra.mxu0 %v4677
      %v4679 = vand.u32 %v4657, 4294901760
      %v4680 = vsub.f32 %v4657, %v4679
      %v4681 = vand.u32 %v4680, 4294901760
      %v4682 = vsub.f32 %v4680, %v4681
      %v4683 = vand.u32 %v4682, 4294901760
      %4684 = vmatmul.f32.gmra.mxu0 %v4683
      %v4685 = vpop.f32.mrf.mxu0
      %v4686 = vadd.f32 0.0, %v4685
      %4687 = vdwg.mxu0
      %4688 = vmatpush.msra.mxu0 0.0
      %4689 = vmatpush.msra.mxu0 0.0
      %4690 = vmatpush.msra.mxu0 0.0
      %4691 = vmatpush.msra.mxu0 0.0
      %4692 = vmatpush.msra.mxu0 0.0
      %4693 = vmatpush.msra.mxu0 0.0
      %4694 = vmatpush.msra.mxu0 0.0
      %4695 = vmatpush.msra.mxu0 0.0
      %4696 = vmatpush.msra.mxu0 0.0
      %4697 = vmatpush.msra.mxu0 0.0
      %4698 = vmatpush.msra.mxu0 0.0
      %4699 = vmatpush.msra.mxu0 0.0
      %v4700 = vand.u32 %v4654, 4294901760
      %v4701 = vsub.f32 %v4654, %v4700
      %v4702 = vand.u32 %v4701, 4294901760
      %v4703 = vsub.f32 %v4701, %v4702
      %v4704 = vand.u32 %v4703, 4294901760
      %4705 = vmatpush.msra.mxu0 %v4704
      %v4706 = vand.u32 %v4653, 4294901760
      %v4707 = vsub.f32 %v4653, %v4706
      %v4708 = vand.u32 %v4707, 4294901760
      %v4709 = vsub.f32 %v4707, %v4708
      %v4710 = vand.u32 %v4709, 4294901760
      %4711 = vmatpush.msra.mxu0 %v4710
      %v4712 = vand.u32 %v4652, 4294901760
      %v4713 = vsub.f32 %v4652, %v4712
      %v4714 = vand.u32 %v4713, 4294901760
      %v4715 = vsub.f32 %v4713, %v4714
      %v4716 = vand.u32 %v4715, 4294901760
      %4717 = vmatpush.msra.mxu0 %v4716
      %v4718 = vand.u32 %v4651, 4294901760
      %v4719 = vsub.f32 %v4651, %v4718
      %v4720 = vand.u32 %v4719, 4294901760
      %v4721 = vsub.f32 %v4719, %v4720
      %v4722 = vand.u32 %v4721, 4294901760
      %4723 = vmatpush.msra.mxu0 %v4722
      %v4724 = vand.u32 %v4657, 4294901760
      %4725 = vmatmul.f32.gmra.mxu0 %v4724
      %v4726 = vpop.f32.mrf.mxu0
      %v4727 = vadd.f32 %v4686, %v4726
      %4728 = vdwg.mxu0
      %4729 = vmatpush.msra.mxu0 0.0
      %4730 = vmatpush.msra.mxu0 0.0
      %4731 = vmatpush.msra.mxu0 0.0
      %4732 = vmatpush.msra.mxu0 0.0
      %4733 = vmatpush.msra.mxu0 0.0
      %4734 = vmatpush.msra.mxu0 0.0
      %4735 = vmatpush.msra.mxu0 0.0
      %4736 = vmatpush.msra.mxu0 0.0
      %4737 = vmatpush.msra.mxu0 0.0
      %4738 = vmatpush.msra.mxu0 0.0
      %4739 = vmatpush.msra.mxu0 0.0
      %4740 = vmatpush.msra.mxu0 0.0
      %v4741 = vand.u32 %v4654, 4294901760
      %v4742 = vsub.f32 %v4654, %v4741
      %4743 = vmatpush.msra.mxu0 %v4742
      %v4744 = vand.u32 %v4653, 4294901760
      %v4745 = vsub.f32 %v4653, %v4744
      %4746 = vmatpush.msra.mxu0 %v4745
      %v4747 = vand.u32 %v4652, 4294901760
      %v4748 = vsub.f32 %v4652, %v4747
      %4749 = vmatpush.msra.mxu0 %v4748
      %v4750 = vand.u32 %v4651, 4294901760
      %v4751 = vsub.f32 %v4651, %v4750
      %4752 = vmatpush.msra.mxu0 %v4751
      %v4753 = vand.u32 %v4657, 4294901760
      %v4754 = vsub.f32 %v4657, %v4753
      %4755 = vmatmul.f32.gmra.mxu0 %v4754
      %v4756 = vpop.f32.mrf.mxu0
      %v4757 = vadd.f32 %v4727, %v4756
      %4758 = vdwg.mxu0
      %4759 = vmatpush.msra.mxu0 0.0
      %4760 = vmatpush.msra.mxu0 0.0
      %4761 = vmatpush.msra.mxu0 0.0
      %4762 = vmatpush.msra.mxu0 0.0
      %4763 = vmatpush.msra.mxu0 0.0
      %4764 = vmatpush.msra.mxu0 0.0
      %4765 = vmatpush.msra.mxu0 0.0
      %4766 = vmatpush.msra.mxu0 0.0
      %4767 = vmatpush.msra.mxu0 0.0
      %4768 = vmatpush.msra.mxu0 0.0
      %4769 = vmatpush.msra.mxu0 0.0
      %4770 = vmatpush.msra.mxu0 0.0
      %v4771 = vand.u32 %v4654, 4294901760
      %4772 = vmatpush.msra.mxu0 %v4771
      %v4773 = vand.u32 %v4653, 4294901760
      %4774 = vmatpush.msra.mxu0 %v4773
      %v4775 = vand.u32 %v4652, 4294901760
      %4776 = vmatpush.msra.mxu0 %v4775
      %v4777 = vand.u32 %v4651, 4294901760
      %4778 = vmatpush.msra.mxu0 %v4777
      %v4779 = vand.u32 %v4657, 4294901760
      %v4780 = vsub.f32 %v4657, %v4779
      %v4781 = vand.u32 %v4780, 4294901760
      %4782 = vmatmul.f32.gmra.mxu0 %v4781
      %v4783 = vpop.f32.mrf.mxu0
      %v4784 = vadd.f32 %v4757, %v4783
      %4785 = vdwg.mxu0
      %4786 = vmatpush.msra.mxu0 0.0
      %4787 = vmatpush.msra.mxu0 0.0
      %4788 = vmatpush.msra.mxu0 0.0
      %4789 = vmatpush.msra.mxu0 0.0
      %4790 = vmatpush.msra.mxu0 0.0
      %4791 = vmatpush.msra.mxu0 0.0
      %4792 = vmatpush.msra.mxu0 0.0
      %4793 = vmatpush.msra.mxu0 0.0
      %4794 = vmatpush.msra.mxu0 0.0
      %4795 = vmatpush.msra.mxu0 0.0
      %4796 = vmatpush.msra.mxu0 0.0
      %4797 = vmatpush.msra.mxu0 0.0
      %v4798 = vand.u32 %v4654, 4294901760
      %v4799 = vsub.f32 %v4654, %v4798
      %v4800 = vand.u32 %v4799, 4294901760
      %4801 = vmatpush.msra.mxu0 %v4800
      %v4802 = vand.u32 %v4653, 4294901760
      %v4803 = vsub.f32 %v4653, %v4802
      %v4804 = vand.u32 %v4803, 4294901760
      %4805 = vmatpush.msra.mxu0 %v4804
      %v4806 = vand.u32 %v4652, 4294901760
      %v4807 = vsub.f32 %v4652, %v4806
      %v4808 = vand.u32 %v4807, 4294901760
      %4809 = vmatpush.msra.mxu0 %v4808
      %v4810 = vand.u32 %v4651, 4294901760
      %v4811 = vsub.f32 %v4651, %v4810
      %v4812 = vand.u32 %v4811, 4294901760
      %4813 = vmatpush.msra.mxu0 %v4812
      %v4814 = vand.u32 %v4657, 4294901760
      %4815 = vmatmul.f32.gmra.mxu0 %v4814
      %v4816 = vpop.f32.mrf.mxu0
      %v4817 = vadd.f32 %v4784, %v4816
      %4818 = vdwg.mxu0
      %4819 = vmatpush.msra.mxu0 0.0
      %4820 = vmatpush.msra.mxu0 0.0
      %4821 = vmatpush.msra.mxu0 0.0
      %4822 = vmatpush.msra.mxu0 0.0
      %4823 = vmatpush.msra.mxu0 0.0
      %4824 = vmatpush.msra.mxu0 0.0
      %4825 = vmatpush.msra.mxu0 0.0
      %4826 = vmatpush.msra.mxu0 0.0
      %4827 = vmatpush.msra.mxu0 0.0
      %4828 = vmatpush.msra.mxu0 0.0
      %4829 = vmatpush.msra.mxu0 0.0
      %4830 = vmatpush.msra.mxu0 0.0
      %v4831 = vand.u32 %v4654, 4294901760
      %4832 = vmatpush.msra.mxu0 %v4831
      %v4833 = vand.u32 %v4653, 4294901760
      %4834 = vmatpush.msra.mxu0 %v4833
      %v4835 = vand.u32 %v4652, 4294901760
      %4836 = vmatpush.msra.mxu0 %v4835
      %v4837 = vand.u32 %v4651, 4294901760
      %4838 = vmatpush.msra.mxu0 %v4837
      %v4839 = vand.u32 %v4657, 4294901760
      %4840 = vmatmul.f32.gmra.mxu0 %v4839
      %v4841 = vpop.f32.mrf.mxu0
      %v4842 = vadd.f32 %v4817, %v4841
      %4843 = vdwg.mxu0
      %v4844 = vmax.f32 %v4842, 0.0
      %v4845 = vld [vmem:[%s1 + $0x168] sm:$0xff]
      %v4846 = vld [vmem:[%s1 + $0x170] sm:$0xff]
      %v4847 = vld [vmem:[%s1 + $0x178] sm:$0xff]
      %v4848 = vld [vmem:[%s1 + $0x180] sm:$0xff]
      %v4850 = vsel %vm4280, %v4845, 0
      %v4853 = vsel %vm4280, %v4846, 0
      %v4856 = vsel %vm4280, %v4847, 0
      %v4859 = vsel %vm4280, %v4848, 0
      %v4862 = vsel %vm754, %v4844, 0
      %4864 = vmatpush.msra.mxu0 0.0
      %4865 = vmatpush.msra.mxu0 0.0
      %4866 = vmatpush.msra.mxu0 0.0
      %4867 = vmatpush.msra.mxu0 0.0
      %4868 = vmatpush.msra.mxu0 0.0
      %4869 = vmatpush.msra.mxu0 0.0
      %4870 = vmatpush.msra.mxu0 0.0
      %4871 = vmatpush.msra.mxu0 0.0
      %4872 = vmatpush.msra.mxu0 0.0
      %4873 = vmatpush.msra.mxu0 0.0
      %4874 = vmatpush.msra.mxu0 0.0
      %4875 = vmatpush.msra.mxu0 0.0
      %4876 = vmatpush.msra.mxu0 0.0
      %4877 = vmatpush.msra.mxu0 0.0
      %4878 = vmatpush.msra.mxu0 0.0
      %v4879 = vand.u32 %v4862, 4294901760
      %4880 = vmatpush.msra.mxu0 %v4879
      %v4881 = vand.u32 %v4850, 4294901760
      %v4882 = vsub.f32 %v4850, %v4881
      %v4883 = vand.u32 %v4882, 4294901760
      %v4884 = vsub.f32 %v4882, %v4883
      %v4885 = vand.u32 %v4884, 4294901760
      %4886 = vmatmul.f32.gmra.mxu0 %v4885
      %v4887 = vpop.f32.mrf.mxu0
      %v4888 = vadd.f32 0.0, %v4887
      %v4889 = vand.u32 %v4853, 4294901760
      %v4890 = vsub.f32 %v4853, %v4889
      %v4891 = vand.u32 %v4890, 4294901760
      %v4892 = vsub.f32 %v4890, %v4891
      %v4893 = vand.u32 %v4892, 4294901760
      %4894 = vmatmul.f32.gmra.mxu0 %v4893
      %v4895 = vpop.f32.mrf.mxu0
      %v4896 = vadd.f32 0.0, %v4895
      %v4897 = vand.u32 %v4856, 4294901760
      %v4898 = vsub.f32 %v4856, %v4897
      %v4899 = vand.u32 %v4898, 4294901760
      %v4900 = vsub.f32 %v4898, %v4899
      %v4901 = vand.u32 %v4900, 4294901760
      %4902 = vmatmul.f32.gmra.mxu0 %v4901
      %v4903 = vpop.f32.mrf.mxu0
      %v4904 = vadd.f32 0.0, %v4903
      %v4905 = vand.u32 %v4859, 4294901760
      %v4906 = vsub.f32 %v4859, %v4905
      %v4907 = vand.u32 %v4906, 4294901760
      %v4908 = vsub.f32 %v4906, %v4907
      %v4909 = vand.u32 %v4908, 4294901760
      %4910 = vmatmul.f32.gmra.mxu0 %v4909
      %v4911 = vpop.f32.mrf.mxu0
      %v4912 = vadd.f32 0.0, %v4911
      %4913 = vdwg.mxu0
      %4914 = vmatpush.msra.mxu0 0.0
      %4915 = vmatpush.msra.mxu0 0.0
      %4916 = vmatpush.msra.mxu0 0.0
      %4917 = vmatpush.msra.mxu0 0.0
      %4918 = vmatpush.msra.mxu0 0.0
      %4919 = vmatpush.msra.mxu0 0.0
      %4920 = vmatpush.msra.mxu0 0.0
      %4921 = vmatpush.msra.mxu0 0.0
      %4922 = vmatpush.msra.mxu0 0.0
      %4923 = vmatpush.msra.mxu0 0.0
      %4924 = vmatpush.msra.mxu0 0.0
      %4925 = vmatpush.msra.mxu0 0.0
      %4926 = vmatpush.msra.mxu0 0.0
      %4927 = vmatpush.msra.mxu0 0.0
      %4928 = vmatpush.msra.mxu0 0.0
      %v4929 = vand.u32 %v4862, 4294901760
      %v4930 = vsub.f32 %v4862, %v4929
      %v4931 = vand.u32 %v4930, 4294901760
      %v4932 = vsub.f32 %v4930, %v4931
      %v4933 = vand.u32 %v4932, 4294901760
      %4934 = vmatpush.msra.mxu0 %v4933
      %v4935 = vand.u32 %v4850, 4294901760
      %4936 = vmatmul.f32.gmra.mxu0 %v4935
      %v4937 = vpop.f32.mrf.mxu0
      %v4938 = vadd.f32 %v4888, %v4937
      %v4939 = vand.u32 %v4853, 4294901760
      %4940 = vmatmul.f32.gmra.mxu0 %v4939
      %v4941 = vpop.f32.mrf.mxu0
      %v4942 = vadd.f32 %v4896, %v4941
      %v4943 = vand.u32 %v4856, 4294901760
      %4944 = vmatmul.f32.gmra.mxu0 %v4943
      %v4945 = vpop.f32.mrf.mxu0
      %v4946 = vadd.f32 %v4904, %v4945
      %v4947 = vand.u32 %v4859, 4294901760
      %4948 = vmatmul.f32.gmra.mxu0 %v4947
      %v4949 = vpop.f32.mrf.mxu0
      %v4950 = vadd.f32 %v4912, %v4949
      %4951 = vdwg.mxu0
      %4952 = vmatpush.msra.mxu0 0.0
      %4953 = vmatpush.msra.mxu0 0.0
      %4954 = vmatpush.msra.mxu0 0.0
      %4955 = vmatpush.msra.mxu0 0.0
      %4956 = vmatpush.msra.mxu0 0.0
      %4957 = vmatpush.msra.mxu0 0.0
      %4958 = vmatpush.msra.mxu0 0.0
      %4959 = vmatpush.msra.mxu0 0.0
      %4960 = vmatpush.msra.mxu0 0.0
      %4961 = vmatpush.msra.mxu0 0.0
      %4962 = vmatpush.msra.mxu0 0.0
      %4963 = vmatpush.msra.mxu0 0.0
      %4964 = vmatpush.msra.mxu0 0.0
      %4965 = vmatpush.msra.mxu0 0.0
      %4966 = vmatpush.msra.mxu0 0.0
      %v4967 = vand.u32 %v4862, 4294901760
      %v4968 = vsub.f32 %v4862, %v4967
      %4969 = vmatpush.msra.mxu0 %v4968
      %v4970 = vand.u32 %v4850, 4294901760
      %v4971 = vsub.f32 %v4850, %v4970
      %4972 = vmatmul.f32.gmra.mxu0 %v4971
      %v4973 = vpop.f32.mrf.mxu0
      %v4974 = vadd.f32 %v4938, %v4973
      %v4975 = vand.u32 %v4853, 4294901760
      %v4976 = vsub.f32 %v4853, %v4975
      %4977 = vmatmul.f32.gmra.mxu0 %v4976
      %v4978 = vpop.f32.mrf.mxu0
      %v4979 = vadd.f32 %v4942, %v4978
      %v4980 = vand.u32 %v4856, 4294901760
      %v4981 = vsub.f32 %v4856, %v4980
      %4982 = vmatmul.f32.gmra.mxu0 %v4981
      %v4983 = vpop.f32.mrf.mxu0
      %v4984 = vadd.f32 %v4946, %v4983
      %v4985 = vand.u32 %v4859, 4294901760
      %v4986 = vsub.f32 %v4859, %v4985
      %4987 = vmatmul.f32.gmra.mxu0 %v4986
      %v4988 = vpop.f32.mrf.mxu0
      %v4989 = vadd.f32 %v4950, %v4988
      %4990 = vdwg.mxu0
      %4991 = vmatpush.msra.mxu0 0.0
      %4992 = vmatpush.msra.mxu0 0.0
      %4993 = vmatpush.msra.mxu0 0.0
      %4994 = vmatpush.msra.mxu0 0.0
      %4995 = vmatpush.msra.mxu0 0.0
      %4996 = vmatpush.msra.mxu0 0.0
      %4997 = vmatpush.msra.mxu0 0.0
      %4998 = vmatpush.msra.mxu0 0.0
      %4999 = vmatpush.msra.mxu0 0.0
      %5000 = vmatpush.msra.mxu0 0.0
      %5001 = vmatpush.msra.mxu0 0.0
      %5002 = vmatpush.msra.mxu0 0.0
      %5003 = vmatpush.msra.mxu0 0.0
      %5004 = vmatpush.msra.mxu0 0.0
      %5005 = vmatpush.msra.mxu0 0.0
      %v5006 = vand.u32 %v4862, 4294901760
      %5007 = vmatpush.msra.mxu0 %v5006
      %v5008 = vand.u32 %v4850, 4294901760
      %v5009 = vsub.f32 %v4850, %v5008
      %v5010 = vand.u32 %v5009, 4294901760
      %5011 = vmatmul.f32.gmra.mxu0 %v5010
      %v5012 = vpop.f32.mrf.mxu0
      %v5013 = vadd.f32 %v4974, %v5012
      %v5014 = vand.u32 %v4853, 4294901760
      %v5015 = vsub.f32 %v4853, %v5014
      %v5016 = vand.u32 %v5015, 4294901760
      %5017 = vmatmul.f32.gmra.mxu0 %v5016
      %v5018 = vpop.f32.mrf.mxu0
      %v5019 = vadd.f32 %v4979, %v5018
      %v5020 = vand.u32 %v4856, 4294901760
      %v5021 = vsub.f32 %v4856, %v5020
      %v5022 = vand.u32 %v5021, 4294901760
      %5023 = vmatmul.f32.gmra.mxu0 %v5022
      %v5024 = vpop.f32.mrf.mxu0
      %v5025 = vadd.f32 %v4984, %v5024
      %v5026 = vand.u32 %v4859, 4294901760
      %v5027 = vsub.f32 %v4859, %v5026
      %v5028 = vand.u32 %v5027, 4294901760
      %5029 = vmatmul.f32.gmra.mxu0 %v5028
      %v5030 = vpop.f32.mrf.mxu0
      %v5031 = vadd.f32 %v4989, %v5030
      %5032 = vdwg.mxu0
      %5033 = vmatpush.msra.mxu0 0.0
      %5034 = vmatpush.msra.mxu0 0.0
      %5035 = vmatpush.msra.mxu0 0.0
      %5036 = vmatpush.msra.mxu0 0.0
      %5037 = vmatpush.msra.mxu0 0.0
      %5038 = vmatpush.msra.mxu0 0.0
      %5039 = vmatpush.msra.mxu0 0.0
      %5040 = vmatpush.msra.mxu0 0.0
      %5041 = vmatpush.msra.mxu0 0.0
      %5042 = vmatpush.msra.mxu0 0.0
      %5043 = vmatpush.msra.mxu0 0.0
      %5044 = vmatpush.msra.mxu0 0.0
      %5045 = vmatpush.msra.mxu0 0.0
      %5046 = vmatpush.msra.mxu0 0.0
      %5047 = vmatpush.msra.mxu0 0.0
      %v5048 = vand.u32 %v4862, 4294901760
      %v5049 = vsub.f32 %v4862, %v5048
      %v5050 = vand.u32 %v5049, 4294901760
      %5051 = vmatpush.msra.mxu0 %v5050
      %v5052 = vand.u32 %v4850, 4294901760
      %5053 = vmatmul.f32.gmra.mxu0 %v5052
      %v5054 = vpop.f32.mrf.mxu0
      %v5055 = vadd.f32 %v5013, %v5054
      %v5056 = vand.u32 %v4853, 4294901760
      %5057 = vmatmul.f32.gmra.mxu0 %v5056
      %v5058 = vpop.f32.mrf.mxu0
      %v5059 = vadd.f32 %v5019, %v5058
      %v5060 = vand.u32 %v4856, 4294901760
      %5061 = vmatmul.f32.gmra.mxu0 %v5060
      %v5062 = vpop.f32.mrf.mxu0
      %v5063 = vadd.f32 %v5025, %v5062
      %v5064 = vand.u32 %v4859, 4294901760
      %5065 = vmatmul.f32.gmra.mxu0 %v5064
      %v5066 = vpop.f32.mrf.mxu0
      %v5067 = vadd.f32 %v5031, %v5066
      %5068 = vdwg.mxu0
      %5069 = vmatpush.msra.mxu0 0.0
      %5070 = vmatpush.msra.mxu0 0.0
      %5071 = vmatpush.msra.mxu0 0.0
      %5072 = vmatpush.msra.mxu0 0.0
      %5073 = vmatpush.msra.mxu0 0.0
      %5074 = vmatpush.msra.mxu0 0.0
      %5075 = vmatpush.msra.mxu0 0.0
      %5076 = vmatpush.msra.mxu0 0.0
      %5077 = vmatpush.msra.mxu0 0.0
      %5078 = vmatpush.msra.mxu0 0.0
      %5079 = vmatpush.msra.mxu0 0.0
      %5080 = vmatpush.msra.mxu0 0.0
      %5081 = vmatpush.msra.mxu0 0.0
      %5082 = vmatpush.msra.mxu0 0.0
      %5083 = vmatpush.msra.mxu0 0.0
      %v5084 = vand.u32 %v4862, 4294901760
      %5085 = vmatpush.msra.mxu0 %v5084
      %v5086 = vand.u32 %v4850, 4294901760
      %5087 = vmatmul.f32.gmra.mxu0 %v5086
      %v5088 = vpop.f32.mrf.mxu0
      %v5089 = vadd.f32 %v5055, %v5088
      %v5090 = vand.u32 %v4853, 4294901760
      %5091 = vmatmul.f32.gmra.mxu0 %v5090
      %v5092 = vpop.f32.mrf.mxu0
      %v5093 = vadd.f32 %v5059, %v5092
      %v5094 = vand.u32 %v4856, 4294901760
      %5095 = vmatmul.f32.gmra.mxu0 %v5094
      %v5096 = vpop.f32.mrf.mxu0
      %v5097 = vadd.f32 %v5063, %v5096
      %v5098 = vand.u32 %v4859, 4294901760
      %5099 = vmatmul.f32.gmra.mxu0 %v5098
      %v5100 = vpop.f32.mrf.mxu0
      %v5101 = vadd.f32 %v5067, %v5100
      %5102 = vdwg.mxu0
      %v5103 = vxor.u32 %v5089, 2147483648
      %v5104 = vxor.u32 %v5093, 2147483648
      %v5105 = vxor.u32 %v5097, 2147483648
      %v5106 = vxor.u32 %v5101, 2147483648
      %v5107 = vmul.f32 %v5103, 1.442695
      %v5108 = vpow.pop %v5107
      %v5109 = vmul.f32 %v5104, 1.442695
      %v5110 = vpow.pop %v5109
      %v5111 = vmul.f32 %v5105, 1.442695
      %v5112 = vpow.pop %v5111
      %v5113 = vmul.f32 %v5106, 1.442695
      %v5114 = vpow.pop %v5113
      %v5115 = vadd.f32 %v5108, 1.0
      %v5116 = vadd.f32 %v5110, 1.0
      %v5117 = vadd.f32 %v5112, 1.0
      %v5118 = vadd.f32 %v5114, 1.0
      %v5119 = vrcp.pop %v5115
      %v5120 = vmul.f32 %v5115, %v5119
      %v5121 = vsub.f32 1.0, %v5120
      %v5122 = vmul.f32 %v5119, %v5121
      %v5123 = vadd.f32 %v5119, %v5122
      %vm5124 = vweird.f32 %v5115
      %vm5125 = vweird.f32 %v5119
      %vm5126 = vmor %vm5124, %vm5125
      %v5127 = vsel %vm5126, %v5119, %v5123
      %v5128 = vand.u32 2147483647, %v5115
      %vm5129 = vcmp.eq.f32.partialorder %v5128, 8.507059e+37
      %v5130 = vand.u32 %v5115, 2147483648
      %v5131 = vor.u32 1.1754944e-38, %v5130
      %v5132 = vsel %vm5129, %v5131, %v5127
      %v5133 = vmul.f32 1.0, %v5132
      %v5134 = vrcp.pop %v5116
      %v5135 = vmul.f32 %v5116, %v5134
      %v5136 = vsub.f32 1.0, %v5135
      %v5137 = vmul.f32 %v5134, %v5136
      %v5138 = vadd.f32 %v5134, %v5137
      %vm5139 = vweird.f32 %v5116
      %vm5140 = vweird.f32 %v5134
      %vm5141 = vmor %vm5139, %vm5140
      %v5142 = vsel %vm5141, %v5134, %v5138
      %v5143 = vand.u32 2147483647, %v5116
      %vm5144 = vcmp.eq.f32.partialorder %v5143, 8.507059e+37
      %v5145 = vand.u32 %v5116, 2147483648
      %v5146 = vor.u32 1.1754944e-38, %v5145
      %v5147 = vsel %vm5144, %v5146, %v5142
      %v5148 = vmul.f32 1.0, %v5147
      %v5149 = vrcp.pop %v5117
      %v5150 = vmul.f32 %v5117, %v5149
      %v5151 = vsub.f32 1.0, %v5150
      %v5152 = vmul.f32 %v5149, %v5151
      %v5153 = vadd.f32 %v5149, %v5152
      %vm5154 = vweird.f32 %v5117
      %vm5155 = vweird.f32 %v5149
      %vm5156 = vmor %vm5154, %vm5155
      %v5157 = vsel %vm5156, %v5149, %v5153
      %v5158 = vand.u32 2147483647, %v5117
      %vm5159 = vcmp.eq.f32.partialorder %v5158, 8.507059e+37
      %v5160 = vand.u32 %v5117, 2147483648
      %v5161 = vor.u32 1.1754944e-38, %v5160
      %v5162 = vsel %vm5159, %v5161, %v5157
      %v5163 = vmul.f32 1.0, %v5162
      %v5164 = vrcp.pop %v5118
      %v5165 = vmul.f32 %v5118, %v5164
      %v5166 = vsub.f32 1.0, %v5165
      %v5167 = vmul.f32 %v5164, %v5166
      %v5168 = vadd.f32 %v5164, %v5167
      %vm5169 = vweird.f32 %v5118
      %vm5170 = vweird.f32 %v5164
      %vm5171 = vmor %vm5169, %vm5170
      %v5172 = vsel %vm5171, %v5164, %v5168
      %v5173 = vand.u32 2147483647, %v5118
      %vm5174 = vcmp.eq.f32.partialorder %v5173, 8.507059e+37
      %v5175 = vand.u32 %v5118, 2147483648
      %v5176 = vor.u32 1.1754944e-38, %v5175
      %v5177 = vsel %vm5174, %v5176, %v5172
      %v5178 = vmul.f32 1.0, %v5177
      %5180 = vset.pattern.permute.xlu0 0
      %5181 = vperm.xlu0 %5180, %v5133
      %v5182 = vpop.permute.xlu0 %5181
      %5185 = vset.pattern.permute.xlu0 0
      %5186 = vperm.xlu0 %5185, %v5148
      %v5187 = vpop.permute.xlu0 %5186
      %5190 = vset.pattern.permute.xlu0 0
      %5191 = vperm.xlu0 %5190, %v5163
      %v5192 = vpop.permute.xlu0 %5191
      %5195 = vset.pattern.permute.xlu0 0
      %5196 = vperm.xlu0 %5195, %v5178
      %v5197 = vpop.permute.xlu0 %5196
      %v5199 = vmul.f32 %v199, %v5182
      %v5200 = vmul.f32 %v200, %v5182
      %v5201 = vmul.f32 %v201, %v5187
      %v5202 = vmul.f32 %v202, %v5187
      %v5203 = vmul.f32 %v203, %v5192
      %v5204 = vmul.f32 %v204, %v5192
      %v5205 = vmul.f32 %v205, %v5197
      %v5206 = vmul.f32 %v206, %v5197
      %v5207 = vadd.f32 %v199, %v5199
      %v5208 = vadd.f32 %v200, %v5200
      %v5209 = vadd.f32 %v201, %v5201
      %v5210 = vadd.f32 %v202, %v5202
      %v5211 = vadd.f32 %v203, %v5203
      %v5212 = vadd.f32 %v204, %v5204
      %v5213 = vadd.f32 %v205, %v5205
      %v5214 = vadd.f32 %v206, %v5206
      %v5215 = vadd.f32 %v5207, %v4064
      %v5216 = vadd.f32 %v5208, %v4065
      %v5217 = vadd.f32 %v5209, %v4066
      %v5218 = vadd.f32 %v5210, %v4067
      %v5219 = vadd.f32 %v5211, %v4068
      %v5220 = vadd.f32 %v5212, %v4069
      %v5221 = vadd.f32 %v5213, %v3274
      %v5222 = vadd.f32 %v5214, %v3275
      %v5223 = vadd.f32 %v5215, %v4631
      %v5224 = vadd.f32 %v5216, %v4632
      %v5225 = vadd.f32 %v5217, %v4633
      %v5226 = vadd.f32 %v5218, %v4634
      %v5227 = vadd.f32 %v5219, %v4635
      %v5228 = vadd.f32 %v5220, %v4636
      %v5229 = vadd.f32 %v5221, %v4637
      %v5230 = vadd.f32 %v5222, %v4638
      %v5231 = vld [vmem:[%s1 + $0x188] sm:$0xff]
      %v5232 = vld [vmem:[%s1 + $0x190] sm:$0xff]
      %v5233 = vld [vmem:[%s1 + $0x198] sm:$0xff]
      %v5234 = vld [vmem:[%s1 + $0x1a0] sm:$0xff]
      %vm5235 = vcmp.ge.f32.partialorder %v5223, 0.0
      %vm5236 = vcmp.ge.f32.partialorder %v5224, 0.0
      %vm5237 = vcmp.ge.f32.partialorder %v5225, 0.0
      %vm5238 = vcmp.ge.f32.partialorder %v5226, 0.0
      %vm5239 = vcmp.ge.f32.partialorder %v5227, 0.0
      %vm5240 = vcmp.ge.f32.partialorder %v5228, 0.0
      %vm5241 = vcmp.ge.f32.partialorder %v5229, 0.0
      %vm5242 = vcmp.ge.f32.partialorder %v5230, 0.0
      %5244 = vset.pattern.permute.xlu0 0
      %5245 = vperm.xlu0 %5244, %v5231
      %v5246 = vpop.permute.xlu0 %5245
      %5249 = vset.pattern.permute.xlu0 0
      %5250 = vperm.xlu0 %5249, %v5232
      %v5251 = vpop.permute.xlu0 %5250
      %5254 = vset.pattern.permute.xlu0 0
      %5255 = vperm.xlu0 %5254, %v5233
      %v5256 = vpop.permute.xlu0 %5255
      %5259 = vset.pattern.permute.xlu0 0
      %5260 = vperm.xlu0 %5259, %v5234
      %v5261 = vpop.permute.xlu0 %5260
      %v5263 = vmul.f32 %v5246, %v5223
      %v5264 = vmul.f32 %v5246, %v5224
      %v5265 = vmul.f32 %v5251, %v5225
      %v5266 = vmul.f32 %v5251, %v5226
      %v5267 = vmul.f32 %v5256, %v5227
      %v5268 = vmul.f32 %v5256, %v5228
      %v5269 = vmul.f32 %v5261, %v5229
      %v5270 = vmul.f32 %v5261, %v5230
      %v5271 = vsel %vm5235, %v5223, %v5263
      %v5272 = vsel %vm5236, %v5224, %v5264
      %v5273 = vsel %vm5237, %v5225, %v5265
      %v5274 = vsel %vm5238, %v5226, %v5266
      %v5275 = vsel %vm5239, %v5227, %v5267
      %v5276 = vsel %vm5240, %v5228, %v5268
      %v5277 = vsel %vm5241, %v5229, %v5269
      %v5278 = vsel %vm5242, %v5230, %v5270
      %5279 = vst [vmem:[%s197] sm:$0xff] %v5271
      %5280 = vst [vmem:[%s197 + $0x8] sm:$0xff] %v5272
      %5281 = vst [vmem:[%s197 + $0x10] sm:$0xff] %v5273
      %5282 = vst [vmem:[%s197 + $0x18] sm:$0xff] %v5274
      %5283 = vst [vmem:[%s197 + $0x20] sm:$0xff] %v5275
      %5284 = vst [vmem:[%s197 + $0x28] sm:$0xff] %v5276
      %5285 = vst [vmem:[%s197 + $0x30] sm:$0xff] %v5277
      %5286 = vst [vmem:[%s197 + $0x38] sm:$0xff] %v5278
      %p5287 = scmp.lt.s32.totalorder %s15, 1
      %s5288 = scalar_select %p5287, %s15, 1
      %s5289 = smul.addr %s5288, 8
      %s5290 = smul.addr %s5289, 8
      %s5291 = scalar_lea.vmem %s4, %s5290
      // Predicated region
      $region37: #{_lambda_.1} parent=35 // pred_check
        %p5292 = pneg %p122
      $region38: #{_lambda_.1} parent=35 // pred_check_branch
        %5294 = sbr.rel (%p5292) target = $region40
      $region39: #{_lambda_.1} parent=35 // pred_region
        _
      $region40: #{_lambda_.1} parent=35 // pred_fallthru
        _
    $region36: #{_lambda_.1} parent=5 // pred_fallthru
      _
    %p5295 = scmp.le.s32.totalorder 2, %s10
    // Predicated region
    $region41: #{_lambda_.1} parent=5 // pred_check
      %p5296 = pneg %p5295
    $region42: #{_lambda_.1} parent=5 // pred_check_branch
      %5298 = sbr.rel (%p5296) target = $region44
    $region43: #{_lambda_.1} parent=5 // pred_region
      %s5299 = ssub.s32 %s10, 2
      // Predicated region
      $region45: #{_lambda_.1} parent=43 // pred_check
        %p5300 = pneg %p128
      $region46: #{_lambda_.1} parent=43 // pred_check_branch
        %5302 = sbr.rel (%p5300) target = $region48
      $region47: #{_lambda_.1} parent=43 // pred_region
        %p5303 = scmp.lt.s32.totalorder %s16, 1
        %s5304 = scalar_select %p5303, %s16, 1
        %s5305 = smul.addr %s5304, 8
        %s5306 = smul.addr %s5305, 8
        %s5307 = scalar_lea.vmem %s4, %s5306
      $region48: #{_lambda_.1} parent=43 // pred_fallthru
        _
    $region44: #{_lambda_.1} parent=5 // pred_fallthru
      _
  $region6: #{_lambda_.1} parent=0 // loop_footer
    %s14 = sadd.s32 1, %s10
  $region7: #{_lambda_.1} parent=0 // loop_footer_branch
    %9 = sbr.rel target = $region3
  $region8: #{_lambda_.1} parent=0 // loop_exit
    _

</llo_original>
